<compile_context>
chip_gen: v5e
topology: v5e:2x2
jax: 0.10.0
libtpu: 0.0.40
codegen_flags: <defaults>
</compile_context>

<pallas_src>
import jax
import jax.numpy as jnp
from jax import lax
from jax.experimental import pallas as pl
from jax.experimental.pallas import tpu as pltpu

# Keep f32 matmuls at full precision on both the XLA (reference/wrapper) and
# Mosaic (kernel) sides so the numerical check is meaningful.
jax.config.update("jax_default_matmul_precision", "highest")

# Module-level hyperparameters (globals in the original PyTorch file).
PAD = 0
bidirectional = True
emb_size = 8


# ----------------------------- Pallas kernel ------------------------------ #

def encoder_kernel(gi_ref, mask_ref, whh_ref, bhn_ref,
                   wlf_ref, wlb_ref, blin_ref, wb2u_ref, bb2u_ref,
                   out_ref, hid_ref,
                   of_scr, ob_scr):
    T, Bt, sixH = gi_ref.shape
    twoH = sixH // 3
    H = twoH // 2

    w_hh = whh_ref[...]                       # (2H, 6H) block-structured, both dirs
    b_hn = bhn_ref[...]                       # (1, 2H)  [b_hh_n_f | b_hh_n_b]

    def step(i, h2):                          # h2 = [h_f | h_b]  (Bt, 2H)
        gi = gi_ref[i]                        # (Bt, 6H) input proj + folded r/z biases
        m = mask_ref[i]                       # (Bt, 2H) 1.0 where step is valid (per dir)
        gh = jnp.dot(h2, w_hh, precision=lax.Precision.HIGHEST,
                     preferred_element_type=jnp.float32)              # (Bt, 6H)
        r = jax.nn.sigmoid(gi[:, :twoH] + gh[:, :twoH])
        z = jax.nn.sigmoid(gi[:, twoH:2 * twoH] + gh[:, twoH:2 * twoH])
        n = jnp.tanh(gi[:, 2 * twoH:] + r * (gh[:, 2 * twoH:] + b_hn))
        h_new = (1.0 - z) * n + z * h2
        keep = m > 0.5
        masked = jnp.where(keep, h_new, 0.0)  # padded steps -> 0 (pack_padded semantics)
        of_scr[i] = masked[:, :H]             # forward output at time i
        ob_scr[T - 1 - i] = masked[:, H:]     # backward output at time T-1-i
        return jnp.where(keep, h_new, h2)     # freeze h past sequence length

    h2 = lax.fori_loop(0, T, step, jnp.zeros((Bt, twoH), jnp.float32),
                       unroll=True)

    # Output Linear off the critical path: split weight (no lane concatenate),
    # batched GEMMs over the full slabs, single large store.
    wlf3 = jnp.broadcast_to(wlf_ref[...][None], (T, H, H))
    wlb3 = jnp.broadcast_to(wlb_ref[...][None], (T, H, H))
    out3 = (jnp.einsum('tbh,thk->tbk', of_scr[...], wlf3,
                       precision=lax.Precision.HIGHEST,
                       preferred_element_type=jnp.float32)
            + jnp.einsum('tbh,thk->tbk', ob_scr[...], wlb3,
                         precision=lax.Precision.HIGHEST,
                         preferred_element_type=jnp.float32)
            + blin_ref[...][None])
    out_ref[...] = out3

    # bi_to_uni + ReLU: h2 is already cat(h_fwd, h_bwd) along lanes.
    hid = (jnp.dot(h2, wb2u_ref[...], precision=lax.Precision.HIGHEST,
                   preferred_element_type=jnp.float32) + bb2u_ref[...])
    hid_ref[0] = jnp.maximum(hid, 0.0)


# ------------------------------ wrapper ------------------------------------ #

def _pack_params(p, H):
    """Pack PyTorch-convention GRU/Linear weights into the kernel's grouped layout."""
    f32 = jnp.float32
    wih_f = jnp.asarray(p['w_ih_f'], f32); wih_b = jnp.asarray(p['w_ih_b'], f32)
    whh_f = jnp.asarray(p['w_hh_f'], f32); whh_b = jnp.asarray(p['w_hh_b'], f32)
    bih_f = jnp.asarray(p['b_ih_f'], f32); bhh_f = jnp.asarray(p['b_hh_f'], f32)
    bih_b = jnp.asarray(p['b_ih_b'], f32); bhh_b = jnp.asarray(p['b_hh_b'], f32)
    emb_t = jnp.asarray(p['embedding'], f32)                       # (V, E)

    # Input projection folded into the embedding table (vocab is tiny):
    proj_f = emb_t @ wih_f.T                                       # (V, 3H) [r, z, n]
    proj_b = emb_t @ wih_b.T
    V = emb_t.shape[0]
    tab_f = jnp.zeros((V, 6 * H), jnp.float32)                     # fwd lanes only
    tab_b = jnp.zeros((V, 6 * H), jnp.float32)                     # bwd lanes only
    w_hh = jnp.zeros((2 * H, 6 * H), jnp.float32)                  # block-structured
    for g in range(3):                                             # 0=r, 1=z, 2=n
        fcol = slice(2 * g * H, (2 * g + 1) * H)
        bcol = slice((2 * g + 1) * H, (2 * g + 2) * H)
        grow = slice(g * H, (g + 1) * H)
        tab_f = tab_f.at[:, fcol].set(proj_f[:, grow])
        tab_b = tab_b.at[:, bcol].set(proj_b[:, grow])
        w_hh = w_hh.at[:H, fcol].set(whh_f[grow, :].T)
        w_hh = w_hh.at[H:, bcol].set(whh_b[grow, :].T)

    # Folded biases: r/z get b_ih + b_hh; n keeps only b_ih (b_hh_n stays in-loop).
    b_in = jnp.concatenate([
        bih_f[:H] + bhh_f[:H],            bih_b[:H] + bhh_b[:H],
        bih_f[H:2 * H] + bhh_f[H:2 * H],  bih_b[H:2 * H] + bhh_b[H:2 * H],
        bih_f[2 * H:],                    bih_b[2 * H:],
    ])                                                             # (6H,)
    b_hn = jnp.concatenate([bhh_f[2 * H:], bhh_b[2 * H:]]).reshape(1, 2 * H)

    w_lin = jnp.asarray(p['w_lin'], f32)                           # (H, 2H)
    wlf = w_lin[:, :H].T                                           # (H, H)
    wlb = w_lin[:, H:].T
    blin = jnp.asarray(p['b_lin'], f32).reshape(1, H)
    wb2u = jnp.asarray(p['w_b2u'], f32).T                          # (2H, H)
    bb2u = jnp.asarray(p['b_b2u'], f32).reshape(1, H)
    return tab_f, tab_b, b_in, w_hh, b_hn, wlf, wlb, blin, wb2u, bb2u


def encoder_forward(seqs, input_lengths, params, *, batch_tile=None):
    T, B = seqs.shape
    H = params['w_hh_f'].shape[1]
    Bt = B if batch_tile is None else batch_tile
    # Keep (8,128) tiling legal: either full batch or a sublane-aligned tile.
    assert B % Bt == 0 and (Bt == B or Bt % 8 == 0)

    (tab_f, tab_b, b_in, w_hh, b_hn,
     wlf, wlb, blin, wb2u, bb2u) = _pack_params(params, H)

    # Hoisted input projection via table gather: fwd lanes use token at time t,
    # bwd lanes use token at time T-1-t, so the in-kernel loop reads one slab.
    gi_comb = tab_f[seqs] + tab_b[seqs[::-1]] + b_in[None, None, :]      # (T, B, 6H)

    # Per-direction validity masks (pack_padded_sequence semantics).
    lens = input_lengths.astype(jnp.int32)
    t_idx = jnp.arange(T)
    m_f = (lens[None, :] > t_idx[:, None]).astype(jnp.float32)           # (T, B)
    m_b = (lens[None, :] > (T - 1 - t_idx)[:, None]).astype(jnp.float32)
    mask_comb = jnp.concatenate(
        [jnp.broadcast_to(m_f[:, :, None], (T, B, H)),
         jnp.broadcast_to(m_b[:, :, None], (T, B, H))], axis=-1)         # (T, B, 2H)

    def full2d(shape):                                 # untiled weight blocks
        return pl.BlockSpec(shape, lambda b: (0, 0))

    outputs, hidden = pl.pallas_call(
        encoder_kernel,
        out_shape=(jax.ShapeDtypeStruct((T, B, H), jnp.float32),
                   jax.ShapeDtypeStruct((1, B, H), jnp.float32)),
        grid=(B // Bt,),                               # batch axis: embarrassingly parallel
        in_specs=[
            pl.BlockSpec((T, Bt, 6 * H), lambda b: (0, b, 0)),   # gi_comb
            pl.BlockSpec((T, Bt, 2 * H), lambda b: (0, b, 0)),   # mask_comb
            full2d((2 * H, 6 * H)),                              # w_hh
            full2d((1, 2 * H)),                                  # b_hh_n
            full2d((H, H)), full2d((H, H)), full2d((1, H)),      # output Linear (split)
            full2d((2 * H, H)), full2d((1, H)),                  # bi_to_uni
        ],
        out_specs=(pl.BlockSpec((T, Bt, H), lambda b: (0, b, 0)),
                   pl.BlockSpec((1, Bt, H), lambda b: (0, b, 0))),
        scratch_shapes=[pltpu.VMEM((T, Bt, H), jnp.float32),     # fwd per-step outputs
                        pltpu.VMEM((T, Bt, H), jnp.float32)],    # bwd per-step outputs
        compiler_params=pltpu.CompilerParams(
            dimension_semantics=("parallel",)),
    )(gi_comb, mask_comb, w_hh, b_hn, wlf, wlb, blin, wb2u, bb2u)
    return outputs, hidden


# --------------------------- reference (plain JAX) -------------------------- #

def reference_forward(seqs, input_lengths, p):
    T, B = seqs.shape
    H = p['w_hh_f'].shape[1]
    emb = p['embedding'][seqs].astype(jnp.float32)
    lens = input_lengths.astype(jnp.int32)

    def cell(x, h, wih, whh, bih, bhh):
        gi = x @ wih.T + bih
        gh = h @ whh.T + bhh
        r = jax.nn.sigmoid(gi[:, :H] + gh[:, :H])
        z = jax.nn.sigmoid(gi[:, H:2 * H] + gh[:, H:2 * H])
        n = jnp.tanh(gi[:, 2 * H:] + r * gh[:, 2 * H:])
        return (1.0 - z) * n + z * h

    h = jnp.zeros((B, H), jnp.float32)
    outs_f = []
    for t in range(T):
        hc = cell(emb[t], h, p['w_ih_f'], p['w_hh_f'], p['b_ih_f'], p['b_hh_f'])
        m = (lens > t)[:, None]
        h = jnp.where(m, hc, h)
        outs_f.append(jnp.where(m, hc, 0.0))
    h_f = h

    h = jnp.zeros((B, H), jnp.float32)
    outs_b = [None] * T
    for t in range(T - 1, -1, -1):
        hc = cell(emb[t], h, p['w_ih_b'], p['w_hh_b'], p['b_ih_b'], p['b_hh_b'])
        m = (lens > t)[:, None]
        h = jnp.where(m, hc, h)
        outs_b[t] = jnp.where(m, hc, 0.0)
    h_b = h

    cat = jnp.concatenate([jnp.stack(outs_f), jnp.stack(outs_b)], axis=-1)   # (T,B,2H)
    outputs = cat @ p['w_lin'].T + p['b_lin']
    hidden = jnp.maximum(
        jnp.concatenate([h_f, h_b], -1) @ p['w_b2u'].T + p['b_b2u'], 0.0)[None]
    return outputs, hidden


# ------------------------------ param init ---------------------------------- #

def init_params(key, input_size, hidden_size):
    E, H = emb_size, hidden_size
    ks = jax.random.split(key, 15)
    kg = 1.0 / float(jnp.sqrt(H))
    kl = 1.0 / float(jnp.sqrt(2 * H))

    def u(k, shape, s):
        return jax.random.uniform(k, shape, jnp.float32, -s, s)

    emb_w = jax.random.normal(ks[0], (input_size, E), jnp.float32)
    emb_w = emb_w.at[PAD].set(0.0)                      # padding_idx row is zero

    return dict(
        embedding=emb_w,
        w_ih_f=u(ks[1], (3 * H, E), kg), w_hh_f=u(ks[2], (3 * H, H), kg),
        b_ih_f=u(ks[3], (3 * H,), kg),   b_hh_f=u(ks[4], (3 * H,), kg),
        w_ih_b=u(ks[5], (3 * H, E), kg), w_hh_b=u(ks[6], (3 * H, H), kg),
        b_ih_b=u(ks[7], (3 * H,), kg),   b_hh_b=u(ks[8], (3 * H,), kg),
        w_lin=u(ks[9], (H, 2 * H), kl),  b_lin=u(ks[10], (H,), kl),
        w_b2u=u(ks[11], (H, 2 * H), kl), b_b2u=u(ks[12], (H,), kl),
    )


# --------------------------------- main ------------------------------------- #

if __name__ == "__main__":
    T, B = 8, 4
    vocab, hidden_size = 16, 16

    key = jax.random.PRNGKey(0)
    k_param, k_seq = jax.random.split(key)

    params = init_params(k_param, vocab, hidden_size)

    # Sorted-descending lengths (pack_padded_sequence convention), PAD after length.
    input_lengths = jnp.array([8, 7, 5, 3], dtype=jnp.int32)
    seqs = jax.random.randint(k_seq, (T, B), 1, vocab, dtype=jnp.int32)
    t_idx = jnp.arange(T)[:, None]
    seqs = jnp.where(t_idx < input_lengths[None, :], seqs, PAD)

    outputs, hidden = encoder_forward(seqs, input_lengths, params)
    outputs = jax.block_until_ready(outputs)
    hidden = jax.block_until_ready(hidden)

    ref_out, ref_hid = reference_forward(seqs, input_lengths, params)

    assert outputs.shape == (T, B, hidden_size)
    assert hidden.shape == (1, B, hidden_size)
    assert jnp.allclose(outputs, ref_out, atol=1e-3, rtol=1e-3), "outputs mismatch"
    assert jnp.allclose(hidden, ref_hid, atol=1e-3, rtol=1e-3), "hidden mismatch"

    print("KERNEL_OK")
</pallas_src>

<mosaic_0001>
module attributes {stable_mosaic.version = 11 : i64} {
  func.func @encoder_kernel(%arg0: i32, %arg1: memref<8x4x96xf32, #tpu.memory_space<vmem>>, %arg2: memref<8x4x32xf32, #tpu.memory_space<vmem>>, %arg3: memref<32x96xf32, #tpu.memory_space<vmem>>, %arg4: memref<1x32xf32, #tpu.memory_space<vmem>>, %arg5: memref<16x16xf32, #tpu.memory_space<vmem>>, %arg6: memref<16x16xf32, #tpu.memory_space<vmem>>, %arg7: memref<1x16xf32, #tpu.memory_space<vmem>>, %arg8: memref<32x16xf32, #tpu.memory_space<vmem>>, %arg9: memref<1x16xf32, #tpu.memory_space<vmem>>, %arg10: memref<8x4x16xf32, #tpu.memory_space<vmem>>, %arg11: memref<1x4x16xf32, #tpu.memory_space<vmem>>, %arg12: memref<8x4x16xf32, #tpu.memory_space<vmem>>, %arg13: memref<8x4x16xf32, #tpu.memory_space<vmem>>) attributes {dimension_semantics = [#tpu.dimension_semantics<parallel>], iteration_bounds = array<i64: 1>, scalar_prefetch = 0 : i64, scratch_operands = 2 : i64, tpu.core_type = #tpu.core_type<tc>, window_params = [{transform_indices = @transform_0, window_bounds = array<i64: 8, 4, 96>}, {transform_indices = @transform_1, window_bounds = array<i64: 8, 4, 32>}, {pipeline_mode = #tpu.pipeline_mode<synchronous>, transform_indices = @transform_2, window_bounds = array<i64: 32, 96>}, {pipeline_mode = #tpu.pipeline_mode<synchronous>, transform_indices = @transform_3, window_bounds = array<i64: 1, 32>}, {pipeline_mode = #tpu.pipeline_mode<synchronous>, transform_indices = @transform_4, window_bounds = array<i64: 16, 16>}, {pipeline_mode = #tpu.pipeline_mode<synchronous>, transform_indices = @transform_5, window_bounds = array<i64: 16, 16>}, {pipeline_mode = #tpu.pipeline_mode<synchronous>, transform_indices = @transform_6, window_bounds = array<i64: 1, 16>}, {pipeline_mode = #tpu.pipeline_mode<synchronous>, transform_indices = @transform_7, window_bounds = array<i64: 32, 16>}, {pipeline_mode = #tpu.pipeline_mode<synchronous>, transform_indices = @transform_8, window_bounds = array<i64: 1, 16>}, {transform_indices = @transform_9, window_bounds = array<i64: 8, 4, 16>}, {transform_indices = @transform_10, window_bounds = array<i64: 1, 4, 16>}]} {
    %c0 = arith.constant 0 : index
    %c0_0 = arith.constant 0 : index
    %0 = vector.load %arg3[%c0, %c0_0] : memref<32x96xf32, #tpu.memory_space<vmem>>, vector<32x96xf32>
    %c0_1 = arith.constant 0 : index
    %c0_2 = arith.constant 0 : index
    %1 = vector.load %arg4[%c0_1, %c0_2] : memref<1x32xf32, #tpu.memory_space<vmem>>, vector<1x32xf32>
    %cst = arith.constant 0.000000e+00 : f32
    %2 = vector.broadcast %cst : f32 to vector<4x32xf32>
    %c0_i32 = arith.constant 0 : i32
    %3 = arith.index_cast %c0_i32 : i32 to index
    %c0_3 = arith.constant 0 : index
    %c0_4 = arith.constant 0 : index
    %4 = vector.load %arg1[%3, %c0_3, %c0_4] : memref<8x4x96xf32, #tpu.memory_space<vmem>>, vector<1x4x96xf32>
    %5 = vector.shape_cast %4 : vector<1x4x96xf32> to vector<4x96xf32>
    %6 = arith.index_cast %c0_i32 : i32 to index
    %c0_5 = arith.constant 0 : index
    %c0_6 = arith.constant 0 : index
    %7 = vector.load %arg2[%6, %c0_5, %c0_6] : memref<8x4x32xf32, #tpu.memory_space<vmem>>, vector<1x4x32xf32>
    %8 = vector.shape_cast %7 : vector<1x4x32xf32> to vector<4x32xf32>
    %cst_7 = arith.constant dense<0.000000e+00> : vector<4x96xf32>
    %9 = tpu.matmul %2, %0, %cst_7 {dimension_numbers = #tpu.dot_dimension_numbers<[1], [0], [0], [1], [0, 0, 1, 1], [], []>, precision = #tpu.contract_precision<fp32>} : vector<4x32xf32>, vector<32x96xf32>, vector<4x96xf32> -> vector<4x96xf32>
    %10 = vector.extract_strided_slice %5 {offsets = [0, 0], sizes = [4, 32], strides = [1, 1]} : vector<4x96xf32> to vector<4x32xf32>
    %11 = vector.extract_strided_slice %9 {offsets = [0, 0], sizes = [4, 32], strides = [1, 1]} : vector<4x96xf32> to vector<4x32xf32>
    %12 = arith.addf %10, %11 : vector<4x32xf32>
    %13 = arith.negf %12 : vector<4x32xf32>
    %14 = math.exp %13 : vector<4x32xf32>
    %cst_8 = arith.constant 1.000000e+00 : f32
    %15 = vector.broadcast %cst_8 : f32 to vector<4x32xf32>
    %16 = arith.addf %15, %14 : vector<4x32xf32>
    %17 = arith.divf %15, %16 : vector<4x32xf32>
    %18 = vector.extract_strided_slice %5 {offsets = [0, 32], sizes = [4, 32], strides = [1, 1]} : vector<4x96xf32> to vector<4x32xf32>
    %19 = vector.extract_strided_slice %9 {offsets = [0, 32], sizes = [4, 32], strides = [1, 1]} : vector<4x96xf32> to vector<4x32xf32>
    %20 = arith.addf %18, %19 : vector<4x32xf32>
    %21 = arith.negf %20 : vector<4x32xf32>
    %22 = math.exp %21 : vector<4x32xf32>
    %cst_9 = arith.constant 1.000000e+00 : f32
    %23 = vector.broadcast %cst_9 : f32 to vector<4x32xf32>
    %24 = arith.addf %23, %22 : vector<4x32xf32>
    %25 = arith.divf %23, %24 : vector<4x32xf32>
    %26 = vector.extract_strided_slice %5 {offsets = [0, 64], sizes = [4, 32], strides = [1, 1]} : vector<4x96xf32> to vector<4x32xf32>
    %27 = vector.extract_strided_slice %9 {offsets = [0, 64], sizes = [4, 32], strides = [1, 1]} : vector<4x96xf32> to vector<4x32xf32>
    %28 = vector.broadcast %1 : vector<1x32xf32> to vector<4x32xf32>
    %29 = arith.addf %27, %28 : vector<4x32xf32>
    %30 = arith.mulf %17, %29 : vector<4x32xf32>
    %31 = arith.addf %26, %30 : vector<4x32xf32>
    %32 = math.tanh %31 : vector<4x32xf32>
    %cst_10 = arith.constant 1.000000e+00 : f32
    %33 = vector.broadcast %cst_10 : f32 to vector<4x32xf32>
    %34 = arith.subf %33, %25 : vector<4x32xf32>
    %35 = arith.mulf %34, %32 : vector<4x32xf32>
    %36 = arith.mulf %25, %2 : vector<4x32xf32>
    %37 = arith.addf %35, %36 : vector<4x32xf32>
    %cst_11 = arith.constant 5.000000e-01 : f32
    %38 = vector.broadcast %cst_11 : f32 to vector<4x32xf32>
    %39 = arith.cmpf ogt, %8, %38 : vector<4x32xf32>
    %cst_12 = arith.constant 0.000000e+00 : f32
    %40 = vector.broadcast %cst_12 : f32 to vector<4x32xf32>
    %41 = arith.select %39, %37, %40 : vector<4x32xi1>, vector<4x32xf32>
    %42 = vector.extract_strided_slice %41 {offsets = [0, 0], sizes = [4, 16], strides = [1, 1]} : vector<4x32xf32> to vector<4x16xf32>
    %43 = arith.index_cast %c0_i32 : i32 to index
    %c0_13 = arith.constant 0 : index
    %c0_14 = arith.constant 0 : index
    %44 = vector.load %arg12[%43, %c0_13, %c0_14] : memref<8x4x16xf32, #tpu.memory_space<vmem>>, vector<1x4x16xf32>
    %45 = vector.shape_cast %44 : vector<1x4x16xf32> to vector<4x16xf32>
    %46 = vector.shape_cast %42 : vector<4x16xf32> to vector<1x4x16xf32>
    tpu.vector_store %arg12[%43, %c0_13, %c0_14], %46 {strides = array<i32>} : memref<8x4x16xf32, #tpu.memory_space<vmem>>, vector<1x4x16xf32>,
    %47 = vector.extract_strided_slice %41 {offsets = [0, 16], sizes = [4, 16], strides = [1, 1]} : vector<4x32xf32> to vector<4x16xf32>
    %c7_i32 = arith.constant 7 : i32
    %48 = arith.subi %c7_i32, %c0_i32 : i32
    %49 = arith.index_cast %48 : i32 to index
    %c0_15 = arith.constant 0 : index
    %c0_16 = arith.constant 0 : index
    %50 = vector.load %arg13[%49, %c0_15, %c0_16] : memref<8x4x16xf32, #tpu.memory_space<vmem>>, vector<1x4x16xf32>
    %51 = vector.shape_cast %50 : vector<1x4x16xf32> to vector<4x16xf32>
    %52 = vector.shape_cast %47 : vector<4x16xf32> to vector<1x4x16xf32>
    tpu.vector_store %arg13[%49, %c0_15, %c0_16], %52 {strides = array<i32>} : memref<8x4x16xf32, #tpu.memory_space<vmem>>, vector<1x4x16xf32>,
    %53 = arith.select %39, %37, %2 : vector<4x32xi1>, vector<4x32xf32>
    %c1_i32 = arith.constant 1 : i32
    %54 = arith.index_cast %c1_i32 : i32 to index
    %c0_17 = arith.constant 0 : index
    %c0_18 = arith.constant 0 : index
    %55 = vector.load %arg1[%54, %c0_17, %c0_18] : memref<8x4x96xf32, #tpu.memory_space<vmem>>, vector<1x4x96xf32>
    %56 = vector.shape_cast %55 : vector<1x4x96xf32> to vector<4x96xf32>
    %57 = arith.index_cast %c1_i32 : i32 to index
    %c0_19 = arith.constant 0 : index
    %c0_20 = arith.constant 0 : index
    %58 = vector.load %arg2[%57, %c0_19, %c0_20] : memref<8x4x32xf32, #tpu.memory_space<vmem>>, vector<1x4x32xf32>
    %59 = vector.shape_cast %58 : vector<1x4x32xf32> to vector<4x32xf32>
    %cst_21 = arith.constant dense<0.000000e+00> : vector<4x96xf32>
    %60 = tpu.matmul %53, %0, %cst_21 {dimension_numbers = #tpu.dot_dimension_numbers<[1], [0], [0], [1], [0, 0, 1, 1], [], []>, precision = #tpu.contract_precision<fp32>} : vector<4x32xf32>, vector<32x96xf32>, vector<4x96xf32> -> vector<4x96xf32>
    %61 = vector.extract_strided_slice %56 {offsets = [0, 0], sizes = [4, 32], strides = [1, 1]} : vector<4x96xf32> to vector<4x32xf32>
    %62 = vector.extract_strided_slice %60 {offsets = [0, 0], sizes = [4, 32], strides = [1, 1]} : vector<4x96xf32> to vector<4x32xf32>
    %63 = arith.addf %61, %62 : vector<4x32xf32>
    %64 = arith.negf %63 : vector<4x32xf32>
    %65 = math.exp %64 : vector<4x32xf32>
    %cst_22 = arith.constant 1.000000e+00 : f32
    %66 = vector.broadcast %cst_22 : f32 to vector<4x32xf32>
    %67 = arith.addf %66, %65 : vector<4x32xf32>
    %68 = arith.divf %66, %67 : vector<4x32xf32>
    %69 = vector.extract_strided_slice %56 {offsets = [0, 32], sizes = [4, 32], strides = [1, 1]} : vector<4x96xf32> to vector<4x32xf32>
    %70 = vector.extract_strided_slice %60 {offsets = [0, 32], sizes = [4, 32], strides = [1, 1]} : vector<4x96xf32> to vector<4x32xf32>
    %71 = arith.addf %69, %70 : vector<4x32xf32>
    %72 = arith.negf %71 : vector<4x32xf32>
    %73 = math.exp %72 : vector<4x32xf32>
    %cst_23 = arith.constant 1.000000e+00 : f32
    %74 = vector.broadcast %cst_23 : f32 to vector<4x32xf32>
    %75 = arith.addf %74, %73 : vector<4x32xf32>
    %76 = arith.divf %74, %75 : vector<4x32xf32>
    %77 = vector.extract_strided_slice %56 {offsets = [0, 64], sizes = [4, 32], strides = [1, 1]} : vector<4x96xf32> to vector<4x32xf32>
    %78 = vector.extract_strided_slice %60 {offsets = [0, 64], sizes = [4, 32], strides = [1, 1]} : vector<4x96xf32> to vector<4x32xf32>
    %79 = vector.broadcast %1 : vector<1x32xf32> to vector<4x32xf32>
    %80 = arith.addf %78, %79 : vector<4x32xf32>
    %81 = arith.mulf %68, %80 : vector<4x32xf32>
    %82 = arith.addf %77, %81 : vector<4x32xf32>
    %83 = math.tanh %82 : vector<4x32xf32>
    %cst_24 = arith.constant 1.000000e+00 : f32
    %84 = vector.broadcast %cst_24 : f32 to vector<4x32xf32>
    %85 = arith.subf %84, %76 : vector<4x32xf32>
    %86 = arith.mulf %85, %83 : vector<4x32xf32>
    %87 = arith.mulf %76, %53 : vector<4x32xf32>
    %88 = arith.addf %86, %87 : vector<4x32xf32>
    %cst_25 = arith.constant 5.000000e-01 : f32
    %89 = vector.broadcast %cst_25 : f32 to vector<4x32xf32>
    %90 = arith.cmpf ogt, %59, %89 : vector<4x32xf32>
    %cst_26 = arith.constant 0.000000e+00 : f32
    %91 = vector.broadcast %cst_26 : f32 to vector<4x32xf32>
    %92 = arith.select %90, %88, %91 : vector<4x32xi1>, vector<4x32xf32>
    %93 = vector.extract_strided_slice %92 {offsets = [0, 0], sizes = [4, 16], strides = [1, 1]} : vector<4x32xf32> to vector<4x16xf32>
    %94 = arith.index_cast %c1_i32 : i32 to index
    %c0_27 = arith.constant 0 : index
    %c0_28 = arith.constant 0 : index
    %95 = vector.load %arg12[%94, %c0_27, %c0_28] : memref<8x4x16xf32, #tpu.memory_space<vmem>>, vector<1x4x16xf32>
    %96 = vector.shape_cast %95 : vector<1x4x16xf32> to vector<4x16xf32>
    %97 = vector.shape_cast %93 : vector<4x16xf32> to vector<1x4x16xf32>
    tpu.vector_store %arg12[%94, %c0_27, %c0_28], %97 {strides = array<i32>} : memref<8x4x16xf32, #tpu.memory_space<vmem>>, vector<1x4x16xf32>,
    %98 = vector.extract_strided_slice %92 {offsets = [0, 16], sizes = [4, 16], strides = [1, 1]} : vector<4x32xf32> to vector<4x16xf32>
    %c7_i32_29 = arith.constant 7 : i32
    %99 = arith.subi %c7_i32_29, %c1_i32 : i32
    %100 = arith.index_cast %99 : i32 to index
    %c0_30 = arith.constant 0 : index
    %c0_31 = arith.constant 0 : index
    %101 = vector.load %arg13[%100, %c0_30, %c0_31] : memref<8x4x16xf32, #tpu.memory_space<vmem>>, vector<1x4x16xf32>
    %102 = vector.shape_cast %101 : vector<1x4x16xf32> to vector<4x16xf32>
    %103 = vector.shape_cast %98 : vector<4x16xf32> to vector<1x4x16xf32>
    tpu.vector_store %arg13[%100, %c0_30, %c0_31], %103 {strides = array<i32>} : memref<8x4x16xf32, #tpu.memory_space<vmem>>, vector<1x4x16xf32>,
    %104 = arith.select %90, %88, %53 : vector<4x32xi1>, vector<4x32xf32>
    %c2_i32 = arith.constant 2 : i32
    %105 = arith.index_cast %c2_i32 : i32 to index
    %c0_32 = arith.constant 0 : index
    %c0_33 = arith.constant 0 : index
    %106 = vector.load %arg1[%105, %c0_32, %c0_33] : memref<8x4x96xf32, #tpu.memory_space<vmem>>, vector<1x4x96xf32>
    %107 = vector.shape_cast %106 : vector<1x4x96xf32> to vector<4x96xf32>
    %108 = arith.index_cast %c2_i32 : i32 to index
    %c0_34 = arith.constant 0 : index
    %c0_35 = arith.constant 0 : index
    %109 = vector.load %arg2[%108, %c0_34, %c0_35] : memref<8x4x32xf32, #tpu.memory_space<vmem>>, vector<1x4x32xf32>
    %110 = vector.shape_cast %109 : vector<1x4x32xf32> to vector<4x32xf32>
    %cst_36 = arith.constant dense<0.000000e+00> : vector<4x96xf32>
    %111 = tpu.matmul %104, %0, %cst_36 {dimension_numbers = #tpu.dot_dimension_numbers<[1], [0], [0], [1], [0, 0, 1, 1], [], []>, precision = #tpu.contract_precision<fp32>} : vector<4x32xf32>, vector<32x96xf32>, vector<4x96xf32> -> vector<4x96xf32>
    %112 = vector.extract_strided_slice %107 {offsets = [0, 0], sizes = [4, 32], strides = [1, 1]} : vector<4x96xf32> to vector<4x32xf32>
    %113 = vector.extract_strided_slice %111 {offsets = [0, 0], sizes = [4, 32], strides = [1, 1]} : vector<4x96xf32> to vector<4x32xf32>
    %114 = arith.addf %112, %113 : vector<4x32xf32>
    %115 = arith.negf %114 : vector<4x32xf32>
    %116 = math.exp %115 : vector<4x32xf32>
    %cst_37 = arith.constant 1.000000e+00 : f32
    %117 = vector.broadcast %cst_37 : f32 to vector<4x32xf32>
    %118 = arith.addf %117, %116 : vector<4x32xf32>
    %119 = arith.divf %117, %118 : vector<4x32xf32>
    %120 = vector.extract_strided_slice %107 {offsets = [0, 32], sizes = [4, 32], strides = [1, 1]} : vector<4x96xf32> to vector<4x32xf32>
    %121 = vector.extract_strided_slice %111 {offsets = [0, 32], sizes = [4, 32], strides = [1, 1]} : vector<4x96xf32> to vector<4x32xf32>
    %122 = arith.addf %120, %121 : vector<4x32xf32>
    %123 = arith.negf %122 : vector<4x32xf32>
    %124 = math.exp %123 : vector<4x32xf32>
    %cst_38 = arith.constant 1.000000e+00 : f32
    %125 = vector.broadcast %cst_38 : f32 to vector<4x32xf32>
    %126 = arith.addf %125, %124 : vector<4x32xf32>
    %127 = arith.divf %125, %126 : vector<4x32xf32>
    %128 = vector.extract_strided_slice %107 {offsets = [0, 64], sizes = [4, 32], strides = [1, 1]} : vector<4x96xf32> to vector<4x32xf32>
    %129 = vector.extract_strided_slice %111 {offsets = [0, 64], sizes = [4, 32], strides = [1, 1]} : vector<4x96xf32> to vector<4x32xf32>
    %130 = vector.broadcast %1 : vector<1x32xf32> to vector<4x32xf32>
    %131 = arith.addf %129, %130 : vector<4x32xf32>
    %132 = arith.mulf %119, %131 : vector<4x32xf32>
    %133 = arith.addf %128, %132 : vector<4x32xf32>
    %134 = math.tanh %133 : vector<4x32xf32>
    %cst_39 = arith.constant 1.000000e+00 : f32
    %135 = vector.broadcast %cst_39 : f32 to vector<4x32xf32>
    %136 = arith.subf %135, %127 : vector<4x32xf32>
    %137 = arith.mulf %136, %134 : vector<4x32xf32>
    %138 = arith.mulf %127, %104 : vector<4x32xf32>
    %139 = arith.addf %137, %138 : vector<4x32xf32>
    %cst_40 = arith.constant 5.000000e-01 : f32
    %140 = vector.broadcast %cst_40 : f32 to vector<4x32xf32>
    %141 = arith.cmpf ogt, %110, %140 : vector<4x32xf32>
    %cst_41 = arith.constant 0.000000e+00 : f32
    %142 = vector.broadcast %cst_41 : f32 to vector<4x32xf32>
    %143 = arith.select %141, %139, %142 : vector<4x32xi1>, vector<4x32xf32>
    %144 = vector.extract_strided_slice %143 {offsets = [0, 0], sizes = [4, 16], strides = [1, 1]} : vector<4x32xf32> to vector<4x16xf32>
    %145 = arith.index_cast %c2_i32 : i32 to index
    %c0_42 = arith.constant 0 : index
    %c0_43 = arith.constant 0 : index
    %146 = vector.load %arg12[%145, %c0_42, %c0_43] : memref<8x4x16xf32, #tpu.memory_space<vmem>>, vector<1x4x16xf32>
    %147 = vector.shape_cast %146 : vector<1x4x16xf32> to vector<4x16xf32>
    %148 = vector.shape_cast %144 : vector<4x16xf32> to vector<1x4x16xf32>
    tpu.vector_store %arg12[%145, %c0_42, %c0_43], %148 {strides = array<i32>} : memref<8x4x16xf32, #tpu.memory_space<vmem>>, vector<1x4x16xf32>,
    %149 = vector.extract_strided_slice %143 {offsets = [0, 16], sizes = [4, 16], strides = [1, 1]} : vector<4x32xf32> to vector<4x16xf32>
    %c7_i32_44 = arith.constant 7 : i32
    %150 = arith.subi %c7_i32_44, %c2_i32 : i32
    %151 = arith.index_cast %150 : i32 to index
    %c0_45 = arith.constant 0 : index
    %c0_46 = arith.constant 0 : index
    %152 = vector.load %arg13[%151, %c0_45, %c0_46] : memref<8x4x16xf32, #tpu.memory_space<vmem>>, vector<1x4x16xf32>
    %153 = vector.shape_cast %152 : vector<1x4x16xf32> to vector<4x16xf32>
    %154 = vector.shape_cast %149 : vector<4x16xf32> to vector<1x4x16xf32>
    tpu.vector_store %arg13[%151, %c0_45, %c0_46], %154 {strides = array<i32>} : memref<8x4x16xf32, #tpu.memory_space<vmem>>, vector<1x4x16xf32>,
    %155 = arith.select %141, %139, %104 : vector<4x32xi1>, vector<4x32xf32>
    %c3_i32 = arith.constant 3 : i32
    %156 = arith.index_cast %c3_i32 : i32 to index
    %c0_47 = arith.constant 0 : index
    %c0_48 = arith.constant 0 : index
    %157 = vector.load %arg1[%156, %c0_47, %c0_48] : memref<8x4x96xf32, #tpu.memory_space<vmem>>, vector<1x4x96xf32>
    %158 = vector.shape_cast %157 : vector<1x4x96xf32> to vector<4x96xf32>
    %159 = arith.index_cast %c3_i32 : i32 to index
    %c0_49 = arith.constant 0 : index
    %c0_50 = arith.constant 0 : index
    %160 = vector.load %arg2[%159, %c0_49, %c0_50] : memref<8x4x32xf32, #tpu.memory_space<vmem>>, vector<1x4x32xf32>
    %161 = vector.shape_cast %160 : vector<1x4x32xf32> to vector<4x32xf32>
    %cst_51 = arith.constant dense<0.000000e+00> : vector<4x96xf32>
    %162 = tpu.matmul %155, %0, %cst_51 {dimension_numbers = #tpu.dot_dimension_numbers<[1], [0], [0], [1], [0, 0, 1, 1], [], []>, precision = #tpu.contract_precision<fp32>} : vector<4x32xf32>, vector<32x96xf32>, vector<4x96xf32> -> vector<4x96xf32>
    %163 = vector.extract_strided_slice %158 {offsets = [0, 0], sizes = [4, 32], strides = [1, 1]} : vector<4x96xf32> to vector<4x32xf32>
    %164 = vector.extract_strided_slice %162 {offsets = [0, 0], sizes = [4, 32], strides = [1, 1]} : vector<4x96xf32> to vector<4x32xf32>
    %165 = arith.addf %163, %164 : vector<4x32xf32>
    %166 = arith.negf %165 : vector<4x32xf32>
    %167 = math.exp %166 : vector<4x32xf32>
    %cst_52 = arith.constant 1.000000e+00 : f32
    %168 = vector.broadcast %cst_52 : f32 to vector<4x32xf32>
    %169 = arith.addf %168, %167 : vector<4x32xf32>
    %170 = arith.divf %168, %169 : vector<4x32xf32>
    %171 = vector.extract_strided_slice %158 {offsets = [0, 32], sizes = [4, 32], strides = [1, 1]} : vector<4x96xf32> to vector<4x32xf32>
    %172 = vector.extract_strided_slice %162 {offsets = [0, 32], sizes = [4, 32], strides = [1, 1]} : vector<4x96xf32> to vector<4x32xf32>
    %173 = arith.addf %171, %172 : vector<4x32xf32>
    %174 = arith.negf %173 : vector<4x32xf32>
    %175 = math.exp %174 : vector<4x32xf32>
    %cst_53 = arith.constant 1.000000e+00 : f32
    %176 = vector.broadcast %cst_53 : f32 to vector<4x32xf32>
    %177 = arith.addf %176, %175 : vector<4x32xf32>
    %178 = arith.divf %176, %177 : vector<4x32xf32>
    %179 = vector.extract_strided_slice %158 {offsets = [0, 64], sizes = [4, 32], strides = [1, 1]} : vector<4x96xf32> to vector<4x32xf32>
    %180 = vector.extract_strided_slice %162 {offsets = [0, 64], sizes = [4, 32], strides = [1, 1]} : vector<4x96xf32> to vector<4x32xf32>
    %181 = vector.broadcast %1 : vector<1x32xf32> to vector<4x32xf32>
    %182 = arith.addf %180, %181 : vector<4x32xf32>
    %183 = arith.mulf %170, %182 : vector<4x32xf32>
    %184 = arith.addf %179, %183 : vector<4x32xf32>
    %185 = math.tanh %184 : vector<4x32xf32>
    %cst_54 = arith.constant 1.000000e+00 : f32
    %186 = vector.broadcast %cst_54 : f32 to vector<4x32xf32>
    %187 = arith.subf %186, %178 : vector<4x32xf32>
    %188 = arith.mulf %187, %185 : vector<4x32xf32>
    %189 = arith.mulf %178, %155 : vector<4x32xf32>
    %190 = arith.addf %188, %189 : vector<4x32xf32>
    %cst_55 = arith.constant 5.000000e-01 : f32
    %191 = vector.broadcast %cst_55 : f32 to vector<4x32xf32>
    %192 = arith.cmpf ogt, %161, %191 : vector<4x32xf32>
    %cst_56 = arith.constant 0.000000e+00 : f32
    %193 = vector.broadcast %cst_56 : f32 to vector<4x32xf32>
    %194 = arith.select %192, %190, %193 : vector<4x32xi1>, vector<4x32xf32>
    %195 = vector.extract_strided_slice %194 {offsets = [0, 0], sizes = [4, 16], strides = [1, 1]} : vector<4x32xf32> to vector<4x16xf32>
    %196 = arith.index_cast %c3_i32 : i32 to index
    %c0_57 = arith.constant 0 : index
    %c0_58 = arith.constant 0 : index
    %197 = vector.load %arg12[%196, %c0_57, %c0_58] : memref<8x4x16xf32, #tpu.memory_space<vmem>>, vector<1x4x16xf32>
    %198 = vector.shape_cast %197 : vector<1x4x16xf32> to vector<4x16xf32>
    %199 = vector.shape_cast %195 : vector<4x16xf32> to vector<1x4x16xf32>
    tpu.vector_store %arg12[%196, %c0_57, %c0_58], %199 {strides = array<i32>} : memref<8x4x16xf32, #tpu.memory_space<vmem>>, vector<1x4x16xf32>,
    %200 = vector.extract_strided_slice %194 {offsets = [0, 16], sizes = [4, 16], strides = [1, 1]} : vector<4x32xf32> to vector<4x16xf32>
    %c7_i32_59 = arith.constant 7 : i32
    %201 = arith.subi %c7_i32_59, %c3_i32 : i32
    %202 = arith.index_cast %201 : i32 to index
    %c0_60 = arith.constant 0 : index
    %c0_61 = arith.constant 0 : index
    %203 = vector.load %arg13[%202, %c0_60, %c0_61] : memref<8x4x16xf32, #tpu.memory_space<vmem>>, vector<1x4x16xf32>
    %204 = vector.shape_cast %203 : vector<1x4x16xf32> to vector<4x16xf32>
    %205 = vector.shape_cast %200 : vector<4x16xf32> to vector<1x4x16xf32>
    tpu.vector_store %arg13[%202, %c0_60, %c0_61], %205 {strides = array<i32>} : memref<8x4x16xf32, #tpu.memory_space<vmem>>, vector<1x4x16xf32>,
    %206 = arith.select %192, %190, %155 : vector<4x32xi1>, vector<4x32xf32>
    %c4_i32 = arith.constant 4 : i32
    %207 = arith.index_cast %c4_i32 : i32 to index
    %c0_62 = arith.constant 0 : index
    %c0_63 = arith.constant 0 : index
    %208 = vector.load %arg1[%207, %c0_62, %c0_63] : memref<8x4x96xf32, #tpu.memory_space<vmem>>, vector<1x4x96xf32>
    %209 = vector.shape_cast %208 : vector<1x4x96xf32> to vector<4x96xf32>
    %210 = arith.index_cast %c4_i32 : i32 to index
    %c0_64 = arith.constant 0 : index
    %c0_65 = arith.constant 0 : index
    %211 = vector.load %arg2[%210, %c0_64, %c0_65] : memref<8x4x32xf32, #tpu.memory_space<vmem>>, vector<1x4x32xf32>
    %212 = vector.shape_cast %211 : vector<1x4x32xf32> to vector<4x32xf32>
    %cst_66 = arith.constant dense<0.000000e+00> : vector<4x96xf32>
    %213 = tpu.matmul %206, %0, %cst_66 {dimension_numbers = #tpu.dot_dimension_numbers<[1], [0], [0], [1], [0, 0, 1, 1], [], []>, precision = #tpu.contract_precision<fp32>} : vector<4x32xf32>, vector<32x96xf32>, vector<4x96xf32> -> vector<4x96xf32>
    %214 = vector.extract_strided_slice %209 {offsets = [0, 0], sizes = [4, 32], strides = [1, 1]} : vector<4x96xf32> to vector<4x32xf32>
    %215 = vector.extract_strided_slice %213 {offsets = [0, 0], sizes = [4, 32], strides = [1, 1]} : vector<4x96xf32> to vector<4x32xf32>
    %216 = arith.addf %214, %215 : vector<4x32xf32>
    %217 = arith.negf %216 : vector<4x32xf32>
    %218 = math.exp %217 : vector<4x32xf32>
    %cst_67 = arith.constant 1.000000e+00 : f32
    %219 = vector.broadcast %cst_67 : f32 to vector<4x32xf32>
    %220 = arith.addf %219, %218 : vector<4x32xf32>
    %221 = arith.divf %219, %220 : vector<4x32xf32>
    %222 = vector.extract_strided_slice %209 {offsets = [0, 32], sizes = [4, 32], strides = [1, 1]} : vector<4x96xf32> to vector<4x32xf32>
    %223 = vector.extract_strided_slice %213 {offsets = [0, 32], sizes = [4, 32], strides = [1, 1]} : vector<4x96xf32> to vector<4x32xf32>
    %224 = arith.addf %222, %223 : vector<4x32xf32>
    %225 = arith.negf %224 : vector<4x32xf32>
    %226 = math.exp %225 : vector<4x32xf32>
    %cst_68 = arith.constant 1.000000e+00 : f32
    %227 = vector.broadcast %cst_68 : f32 to vector<4x32xf32>
    %228 = arith.addf %227, %226 : vector<4x32xf32>
    %229 = arith.divf %227, %228 : vector<4x32xf32>
    %230 = vector.extract_strided_slice %209 {offsets = [0, 64], sizes = [4, 32], strides = [1, 1]} : vector<4x96xf32> to vector<4x32xf32>
    %231 = vector.extract_strided_slice %213 {offsets = [0, 64], sizes = [4, 32], strides = [1, 1]} : vector<4x96xf32> to vector<4x32xf32>
    %232 = vector.broadcast %1 : vector<1x32xf32> to vector<4x32xf32>
    %233 = arith.addf %231, %232 : vector<4x32xf32>
    %234 = arith.mulf %221, %233 : vector<4x32xf32>
    %235 = arith.addf %230, %234 : vector<4x32xf32>
    %236 = math.tanh %235 : vector<4x32xf32>
    %cst_69 = arith.constant 1.000000e+00 : f32
    %237 = vector.broadcast %cst_69 : f32 to vector<4x32xf32>
    %238 = arith.subf %237, %229 : vector<4x32xf32>
    %239 = arith.mulf %238, %236 : vector<4x32xf32>
    %240 = arith.mulf %229, %206 : vector<4x32xf32>
    %241 = arith.addf %239, %240 : vector<4x32xf32>
    %cst_70 = arith.constant 5.000000e-01 : f32
    %242 = vector.broadcast %cst_70 : f32 to vector<4x32xf32>
    %243 = arith.cmpf ogt, %212, %242 : vector<4x32xf32>
    %cst_71 = arith.constant 0.000000e+00 : f32
    %244 = vector.broadcast %cst_71 : f32 to vector<4x32xf32>
    %245 = arith.select %243, %241, %244 : vector<4x32xi1>, vector<4x32xf32>
    %246 = vector.extract_strided_slice %245 {offsets = [0, 0], sizes = [4, 16], strides = [1, 1]} : vector<4x32xf32> to vector<4x16xf32>
    %247 = arith.index_cast %c4_i32 : i32 to index
    %c0_72 = arith.constant 0 : index
    %c0_73 = arith.constant 0 : index
    %248 = vector.load %arg12[%247, %c0_72, %c0_73] : memref<8x4x16xf32, #tpu.memory_space<vmem>>, vector<1x4x16xf32>
    %249 = vector.shape_cast %248 : vector<1x4x16xf32> to vector<4x16xf32>
    %250 = vector.shape_cast %246 : vector<4x16xf32> to vector<1x4x16xf32>
    tpu.vector_store %arg12[%247, %c0_72, %c0_73], %250 {strides = array<i32>} : memref<8x4x16xf32, #tpu.memory_space<vmem>>, vector<1x4x16xf32>,
    %251 = vector.extract_strided_slice %245 {offsets = [0, 16], sizes = [4, 16], strides = [1, 1]} : vector<4x32xf32> to vector<4x16xf32>
    %c7_i32_74 = arith.constant 7 : i32
    %252 = arith.subi %c7_i32_74, %c4_i32 : i32
    %253 = arith.index_cast %252 : i32 to index
    %c0_75 = arith.constant 0 : index
    %c0_76 = arith.constant 0 : index
    %254 = vector.load %arg13[%253, %c0_75, %c0_76] : memref<8x4x16xf32, #tpu.memory_space<vmem>>, vector<1x4x16xf32>
    %255 = vector.shape_cast %254 : vector<1x4x16xf32> to vector<4x16xf32>
    %256 = vector.shape_cast %251 : vector<4x16xf32> to vector<1x4x16xf32>
    tpu.vector_store %arg13[%253, %c0_75, %c0_76], %256 {strides = array<i32>} : memref<8x4x16xf32, #tpu.memory_space<vmem>>, vector<1x4x16xf32>,
    %257 = arith.select %243, %241, %206 : vector<4x32xi1>, vector<4x32xf32>
    %c5_i32 = arith.constant 5 : i32
    %258 = arith.index_cast %c5_i32 : i32 to index
    %c0_77 = arith.constant 0 : index
    %c0_78 = arith.constant 0 : index
    %259 = vector.load %arg1[%258, %c0_77, %c0_78] : memref<8x4x96xf32, #tpu.memory_space<vmem>>, vector<1x4x96xf32>
    %260 = vector.shape_cast %259 : vector<1x4x96xf32> to vector<4x96xf32>
    %261 = arith.index_cast %c5_i32 : i32 to index
    %c0_79 = arith.constant 0 : index
    %c0_80 = arith.constant 0 : index
    %262 = vector.load %arg2[%261, %c0_79, %c0_80] : memref<8x4x32xf32, #tpu.memory_space<vmem>>, vector<1x4x32xf32>
    %263 = vector.shape_cast %262 : vector<1x4x32xf32> to vector<4x32xf32>
    %cst_81 = arith.constant dense<0.000000e+00> : vector<4x96xf32>
    %264 = tpu.matmul %257, %0, %cst_81 {dimension_numbers = #tpu.dot_dimension_numbers<[1], [0], [0], [1], [0, 0, 1, 1], [], []>, precision = #tpu.contract_precision<fp32>} : vector<4x32xf32>, vector<32x96xf32>, vector<4x96xf32> -> vector<4x96xf32>
    %265 = vector.extract_strided_slice %260 {offsets = [0, 0], sizes = [4, 32], strides = [1, 1]} : vector<4x96xf32> to vector<4x32xf32>
    %266 = vector.extract_strided_slice %264 {offsets = [0, 0], sizes = [4, 32], strides = [1, 1]} : vector<4x96xf32> to vector<4x32xf32>
    %267 = arith.addf %265, %266 : vector<4x32xf32>
    %268 = arith.negf %267 : vector<4x32xf32>
    %269 = math.exp %268 : vector<4x32xf32>
    %cst_82 = arith.constant 1.000000e+00 : f32
    %270 = vector.broadcast %cst_82 : f32 to vector<4x32xf32>
    %271 = arith.addf %270, %269 : vector<4x32xf32>
    %272 = arith.divf %270, %271 : vector<4x32xf32>
    %273 = vector.extract_strided_slice %260 {offsets = [0, 32], sizes = [4, 32], strides = [1, 1]} : vector<4x96xf32> to vector<4x32xf32>
    %274 = vector.extract_strided_slice %264 {offsets = [0, 32], sizes = [4, 32], strides = [1, 1]} : vector<4x96xf32> to vector<4x32xf32>
    %275 = arith.addf %273, %274 : vector<4x32xf32>
    %276 = arith.negf %275 : vector<4x32xf32>
    %277 = math.exp %276 : vector<4x32xf32>
    %cst_83 = arith.constant 1.000000e+00 : f32
    %278 = vector.broadcast %cst_83 : f32 to vector<4x32xf32>
    %279 = arith.addf %278, %277 : vector<4x32xf32>
    %280 = arith.divf %278, %279 : vector<4x32xf32>
    %281 = vector.extract_strided_slice %260 {offsets = [0, 64], sizes = [4, 32], strides = [1, 1]} : vector<4x96xf32> to vector<4x32xf32>
    %282 = vector.extract_strided_slice %264 {offsets = [0, 64], sizes = [4, 32], strides = [1, 1]} : vector<4x96xf32> to vector<4x32xf32>
    %283 = vector.broadcast %1 : vector<1x32xf32> to vector<4x32xf32>
    %284 = arith.addf %282, %283 : vector<4x32xf32>
    %285 = arith.mulf %272, %284 : vector<4x32xf32>
    %286 = arith.addf %281, %285 : vector<4x32xf32>
    %287 = math.tanh %286 : vector<4x32xf32>
    %cst_84 = arith.constant 1.000000e+00 : f32
    %288 = vector.broadcast %cst_84 : f32 to vector<4x32xf32>
    %289 = arith.subf %288, %280 : vector<4x32xf32>
    %290 = arith.mulf %289, %287 : vector<4x32xf32>
    %291 = arith.mulf %280, %257 : vector<4x32xf32>
    %292 = arith.addf %290, %291 : vector<4x32xf32>
    %cst_85 = arith.constant 5.000000e-01 : f32
    %293 = vector.broadcast %cst_85 : f32 to vector<4x32xf32>
    %294 = arith.cmpf ogt, %263, %293 : vector<4x32xf32>
    %cst_86 = arith.constant 0.000000e+00 : f32
    %295 = vector.broadcast %cst_86 : f32 to vector<4x32xf32>
    %296 = arith.select %294, %292, %295 : vector<4x32xi1>, vector<4x32xf32>
    %297 = vector.extract_strided_slice %296 {offsets = [0, 0], sizes = [4, 16], strides = [1, 1]} : vector<4x32xf32> to vector<4x16xf32>
    %298 = arith.index_cast %c5_i32 : i32 to index
    %c0_87 = arith.constant 0 : index
    %c0_88 = arith.constant 0 : index
    %299 = vector.load %arg12[%298, %c0_87, %c0_88] : memref<8x4x16xf32, #tpu.memory_space<vmem>>, vector<1x4x16xf32>
    %300 = vector.shape_cast %299 : vector<1x4x16xf32> to vector<4x16xf32>
    %301 = vector.shape_cast %297 : vector<4x16xf32> to vector<1x4x16xf32>
    tpu.vector_store %arg12[%298, %c0_87, %c0_88], %301 {strides = array<i32>} : memref<8x4x16xf32, #tpu.memory_space<vmem>>, vector<1x4x16xf32>,
    %302 = vector.extract_strided_slice %296 {offsets = [0, 16], sizes = [4, 16], strides = [1, 1]} : vector<4x32xf32> to vector<4x16xf32>
    %c7_i32_89 = arith.constant 7 : i32
    %303 = arith.subi %c7_i32_89, %c5_i32 : i32
    %304 = arith.index_cast %303 : i32 to index
    %c0_90 = arith.constant 0 : index
    %c0_91 = arith.constant 0 : index
    %305 = vector.load %arg13[%304, %c0_90, %c0_91] : memref<8x4x16xf32, #tpu.memory_space<vmem>>, vector<1x4x16xf32>
    %306 = vector.shape_cast %305 : vector<1x4x16xf32> to vector<4x16xf32>
    %307 = vector.shape_cast %302 : vector<4x16xf32> to vector<1x4x16xf32>
    tpu.vector_store %arg13[%304, %c0_90, %c0_91], %307 {strides = array<i32>} : memref<8x4x16xf32, #tpu.memory_space<vmem>>, vector<1x4x16xf32>,
    %308 = arith.select %294, %292, %257 : vector<4x32xi1>, vector<4x32xf32>
    %c6_i32 = arith.constant 6 : i32
    %309 = arith.index_cast %c6_i32 : i32 to index
    %c0_92 = arith.constant 0 : index
    %c0_93 = arith.constant 0 : index
    %310 = vector.load %arg1[%309, %c0_92, %c0_93] : memref<8x4x96xf32, #tpu.memory_space<vmem>>, vector<1x4x96xf32>
    %311 = vector.shape_cast %310 : vector<1x4x96xf32> to vector<4x96xf32>
    %312 = arith.index_cast %c6_i32 : i32 to index
    %c0_94 = arith.constant 0 : index
    %c0_95 = arith.constant 0 : index
    %313 = vector.load %arg2[%312, %c0_94, %c0_95] : memref<8x4x32xf32, #tpu.memory_space<vmem>>, vector<1x4x32xf32>
    %314 = vector.shape_cast %313 : vector<1x4x32xf32> to vector<4x32xf32>
    %cst_96 = arith.constant dense<0.000000e+00> : vector<4x96xf32>
    %315 = tpu.matmul %308, %0, %cst_96 {dimension_numbers = #tpu.dot_dimension_numbers<[1], [0], [0], [1], [0, 0, 1, 1], [], []>, precision = #tpu.contract_precision<fp32>} : vector<4x32xf32>, vector<32x96xf32>, vector<4x96xf32> -> vector<4x96xf32>
    %316 = vector.extract_strided_slice %311 {offsets = [0, 0], sizes = [4, 32], strides = [1, 1]} : vector<4x96xf32> to vector<4x32xf32>
    %317 = vector.extract_strided_slice %315 {offsets = [0, 0], sizes = [4, 32], strides = [1, 1]} : vector<4x96xf32> to vector<4x32xf32>
    %318 = arith.addf %316, %317 : vector<4x32xf32>
    %319 = arith.negf %318 : vector<4x32xf32>
    %320 = math.exp %319 : vector<4x32xf32>
    %cst_97 = arith.constant 1.000000e+00 : f32
    %321 = vector.broadcast %cst_97 : f32 to vector<4x32xf32>
    %322 = arith.addf %321, %320 : vector<4x32xf32>
    %323 = arith.divf %321, %322 : vector<4x32xf32>
    %324 = vector.extract_strided_slice %311 {offsets = [0, 32], sizes = [4, 32], strides = [1, 1]} : vector<4x96xf32> to vector<4x32xf32>
    %325 = vector.extract_strided_slice %315 {offsets = [0, 32], sizes = [4, 32], strides = [1, 1]} : vector<4x96xf32> to vector<4x32xf32>
    %326 = arith.addf %324, %325 : vector<4x32xf32>
    %327 = arith.negf %326 : vector<4x32xf32>
    %328 = math.exp %327 : vector<4x32xf32>
    %cst_98 = arith.constant 1.000000e+00 : f32
    %329 = vector.broadcast %cst_98 : f32 to vector<4x32xf32>
    %330 = arith.addf %329, %328 : vector<4x32xf32>
    %331 = arith.divf %329, %330 : vector<4x32xf32>
    %332 = vector.extract_strided_slice %311 {offsets = [0, 64], sizes = [4, 32], strides = [1, 1]} : vector<4x96xf32> to vector<4x32xf32>
    %333 = vector.extract_strided_slice %315 {offsets = [0, 64], sizes = [4, 32], strides = [1, 1]} : vector<4x96xf32> to vector<4x32xf32>
    %334 = vector.broadcast %1 : vector<1x32xf32> to vector<4x32xf32>
    %335 = arith.addf %333, %334 : vector<4x32xf32>
    %336 = arith.mulf %323, %335 : vector<4x32xf32>
    %337 = arith.addf %332, %336 : vector<4x32xf32>
    %338 = math.tanh %337 : vector<4x32xf32>
    %cst_99 = arith.constant 1.000000e+00 : f32
    %339 = vector.broadcast %cst_99 : f32 to vector<4x32xf32>
    %340 = arith.subf %339, %331 : vector<4x32xf32>
    %341 = arith.mulf %340, %338 : vector<4x32xf32>
    %342 = arith.mulf %331, %308 : vector<4x32xf32>
    %343 = arith.addf %341, %342 : vector<4x32xf32>
    %cst_100 = arith.constant 5.000000e-01 : f32
    %344 = vector.broadcast %cst_100 : f32 to vector<4x32xf32>
    %345 = arith.cmpf ogt, %314, %344 : vector<4x32xf32>
    %cst_101 = arith.constant 0.000000e+00 : f32
    %346 = vector.broadcast %cst_101 : f32 to vector<4x32xf32>
    %347 = arith.select %345, %343, %346 : vector<4x32xi1>, vector<4x32xf32>
    %348 = vector.extract_strided_slice %347 {offsets = [0, 0], sizes = [4, 16], strides = [1, 1]} : vector<4x32xf32> to vector<4x16xf32>
    %349 = arith.index_cast %c6_i32 : i32 to index
    %c0_102 = arith.constant 0 : index
    %c0_103 = arith.constant 0 : index
    %350 = vector.load %arg12[%349, %c0_102, %c0_103] : memref<8x4x16xf32, #tpu.memory_space<vmem>>, vector<1x4x16xf32>
    %351 = vector.shape_cast %350 : vector<1x4x16xf32> to vector<4x16xf32>
    %352 = vector.shape_cast %348 : vector<4x16xf32> to vector<1x4x16xf32>
    tpu.vector_store %arg12[%349, %c0_102, %c0_103], %352 {strides = array<i32>} : memref<8x4x16xf32, #tpu.memory_space<vmem>>, vector<1x4x16xf32>,
    %353 = vector.extract_strided_slice %347 {offsets = [0, 16], sizes = [4, 16], strides = [1, 1]} : vector<4x32xf32> to vector<4x16xf32>
    %c7_i32_104 = arith.constant 7 : i32
    %354 = arith.subi %c7_i32_104, %c6_i32 : i32
    %355 = arith.index_cast %354 : i32 to index
    %c0_105 = arith.constant 0 : index
    %c0_106 = arith.constant 0 : index
    %356 = vector.load %arg13[%355, %c0_105, %c0_106] : memref<8x4x16xf32, #tpu.memory_space<vmem>>, vector<1x4x16xf32>
    %357 = vector.shape_cast %356 : vector<1x4x16xf32> to vector<4x16xf32>
    %358 = vector.shape_cast %353 : vector<4x16xf32> to vector<1x4x16xf32>
    tpu.vector_store %arg13[%355, %c0_105, %c0_106], %358 {strides = array<i32>} : memref<8x4x16xf32, #tpu.memory_space<vmem>>, vector<1x4x16xf32>,
    %359 = arith.select %345, %343, %308 : vector<4x32xi1>, vector<4x32xf32>
    %c7_i32_107 = arith.constant 7 : i32
    %360 = arith.index_cast %c7_i32_107 : i32 to index
    %c0_108 = arith.constant 0 : index
    %c0_109 = arith.constant 0 : index
    %361 = vector.load %arg1[%360, %c0_108, %c0_109] : memref<8x4x96xf32, #tpu.memory_space<vmem>>, vector<1x4x96xf32>
    %362 = vector.shape_cast %361 : vector<1x4x96xf32> to vector<4x96xf32>
    %363 = arith.index_cast %c7_i32_107 : i32 to index
    %c0_110 = arith.constant 0 : index
    %c0_111 = arith.constant 0 : index
    %364 = vector.load %arg2[%363, %c0_110, %c0_111] : memref<8x4x32xf32, #tpu.memory_space<vmem>>, vector<1x4x32xf32>
    %365 = vector.shape_cast %364 : vector<1x4x32xf32> to vector<4x32xf32>
    %cst_112 = arith.constant dense<0.000000e+00> : vector<4x96xf32>
    %366 = tpu.matmul %359, %0, %cst_112 {dimension_numbers = #tpu.dot_dimension_numbers<[1], [0], [0], [1], [0, 0, 1, 1], [], []>, precision = #tpu.contract_precision<fp32>} : vector<4x32xf32>, vector<32x96xf32>, vector<4x96xf32> -> vector<4x96xf32>
    %367 = vector.extract_strided_slice %362 {offsets = [0, 0], sizes = [4, 32], strides = [1, 1]} : vector<4x96xf32> to vector<4x32xf32>
    %368 = vector.extract_strided_slice %366 {offsets = [0, 0], sizes = [4, 32], strides = [1, 1]} : vector<4x96xf32> to vector<4x32xf32>
    %369 = arith.addf %367, %368 : vector<4x32xf32>
    %370 = arith.negf %369 : vector<4x32xf32>
    %371 = math.exp %370 : vector<4x32xf32>
    %cst_113 = arith.constant 1.000000e+00 : f32
    %372 = vector.broadcast %cst_113 : f32 to vector<4x32xf32>
    %373 = arith.addf %372, %371 : vector<4x32xf32>
    %374 = arith.divf %372, %373 : vector<4x32xf32>
    %375 = vector.extract_strided_slice %362 {offsets = [0, 32], sizes = [4, 32], strides = [1, 1]} : vector<4x96xf32> to vector<4x32xf32>
    %376 = vector.extract_strided_slice %366 {offsets = [0, 32], sizes = [4, 32], strides = [1, 1]} : vector<4x96xf32> to vector<4x32xf32>
    %377 = arith.addf %375, %376 : vector<4x32xf32>
    %378 = arith.negf %377 : vector<4x32xf32>
    %379 = math.exp %378 : vector<4x32xf32>
    %cst_114 = arith.constant 1.000000e+00 : f32
    %380 = vector.broadcast %cst_114 : f32 to vector<4x32xf32>
    %381 = arith.addf %380, %379 : vector<4x32xf32>
    %382 = arith.divf %380, %381 : vector<4x32xf32>
    %383 = vector.extract_strided_slice %362 {offsets = [0, 64], sizes = [4, 32], strides = [1, 1]} : vector<4x96xf32> to vector<4x32xf32>
    %384 = vector.extract_strided_slice %366 {offsets = [0, 64], sizes = [4, 32], strides = [1, 1]} : vector<4x96xf32> to vector<4x32xf32>
    %385 = vector.broadcast %1 : vector<1x32xf32> to vector<4x32xf32>
    %386 = arith.addf %384, %385 : vector<4x32xf32>
    %387 = arith.mulf %374, %386 : vector<4x32xf32>
    %388 = arith.addf %383, %387 : vector<4x32xf32>
    %389 = math.tanh %388 : vector<4x32xf32>
    %cst_115 = arith.constant 1.000000e+00 : f32
    %390 = vector.broadcast %cst_115 : f32 to vector<4x32xf32>
    %391 = arith.subf %390, %382 : vector<4x32xf32>
    %392 = arith.mulf %391, %389 : vector<4x32xf32>
    %393 = arith.mulf %382, %359 : vector<4x32xf32>
    %394 = arith.addf %392, %393 : vector<4x32xf32>
    %cst_116 = arith.constant 5.000000e-01 : f32
    %395 = vector.broadcast %cst_116 : f32 to vector<4x32xf32>
    %396 = arith.cmpf ogt, %365, %395 : vector<4x32xf32>
    %cst_117 = arith.constant 0.000000e+00 : f32
    %397 = vector.broadcast %cst_117 : f32 to vector<4x32xf32>
    %398 = arith.select %396, %394, %397 : vector<4x32xi1>, vector<4x32xf32>
    %399 = vector.extract_strided_slice %398 {offsets = [0, 0], sizes = [4, 16], strides = [1, 1]} : vector<4x32xf32> to vector<4x16xf32>
    %400 = arith.index_cast %c7_i32_107 : i32 to index
    %c0_118 = arith.constant 0 : index
    %c0_119 = arith.constant 0 : index
    %401 = vector.load %arg12[%400, %c0_118, %c0_119] : memref<8x4x16xf32, #tpu.memory_space<vmem>>, vector<1x4x16xf32>
    %402 = vector.shape_cast %401 : vector<1x4x16xf32> to vector<4x16xf32>
    %403 = vector.shape_cast %399 : vector<4x16xf32> to vector<1x4x16xf32>
    tpu.vector_store %arg12[%400, %c0_118, %c0_119], %403 {strides = array<i32>} : memref<8x4x16xf32, #tpu.memory_space<vmem>>, vector<1x4x16xf32>,
    %404 = vector.extract_strided_slice %398 {offsets = [0, 16], sizes = [4, 16], strides = [1, 1]} : vector<4x32xf32> to vector<4x16xf32>
    %c7_i32_120 = arith.constant 7 : i32
    %405 = arith.subi %c7_i32_120, %c7_i32_107 : i32
    %406 = arith.index_cast %405 : i32 to index
    %c0_121 = arith.constant 0 : index
    %c0_122 = arith.constant 0 : index
    %407 = vector.load %arg13[%406, %c0_121, %c0_122] : memref<8x4x16xf32, #tpu.memory_space<vmem>>, vector<1x4x16xf32>
    %408 = vector.shape_cast %407 : vector<1x4x16xf32> to vector<4x16xf32>
    %409 = vector.shape_cast %404 : vector<4x16xf32> to vector<1x4x16xf32>
    tpu.vector_store %arg13[%406, %c0_121, %c0_122], %409 {strides = array<i32>} : memref<8x4x16xf32, #tpu.memory_space<vmem>>, vector<1x4x16xf32>,
    %410 = arith.select %396, %394, %359 : vector<4x32xi1>, vector<4x32xf32>
    %c8_i32 = arith.constant 8 : i32
    %c0_123 = arith.constant 0 : index
    %c0_124 = arith.constant 0 : index
    %411 = vector.load %arg5[%c0_123, %c0_124] : memref<16x16xf32, #tpu.memory_space<vmem>>, vector<16x16xf32>
    %412 = vector.shape_cast %411 : vector<16x16xf32> to vector<1x16x16xf32>
    %413 = vector.shape_cast %412 : vector<1x16x16xf32> to vector<1x16x16xf32>
    %414 = vector.broadcast %413 : vector<1x16x16xf32> to vector<8x16x16xf32>
    %c0_125 = arith.constant 0 : index
    %c0_126 = arith.constant 0 : index
    %415 = vector.load %arg6[%c0_125, %c0_126] : memref<16x16xf32, #tpu.memory_space<vmem>>, vector<16x16xf32>
    %416 = vector.shape_cast %415 : vector<16x16xf32> to vector<1x16x16xf32>
    %417 = vector.shape_cast %416 : vector<1x16x16xf32> to vector<1x16x16xf32>
    %418 = vector.broadcast %417 : vector<1x16x16xf32> to vector<8x16x16xf32>
    %c0_127 = arith.constant 0 : index
    %c0_128 = arith.constant 0 : index
    %c0_129 = arith.constant 0 : index
    %419 = vector.load %arg12[%c0_127, %c0_128, %c0_129] : memref<8x4x16xf32, #tpu.memory_space<vmem>>, vector<8x4x16xf32>
    "tpu.trace_start"() <{level = 10 : i32, message = "tbh,thk->tbk"}> : () -> ()
    %cst_130 = arith.constant dense<0.000000e+00> : vector<8x4x16xf32>
    %420 = tpu.matmul %419, %414, %cst_130 {dimension_numbers = #tpu.dot_dimension_numbers<[2], [1], [1], [2], [0, 0, 0, 1, 1, 2], [0], [0]>, precision = #tpu.contract_precision<fp32>} : vector<8x4x16xf32>, vector<8x16x16xf32>, vector<8x4x16xf32> -> vector<8x4x16xf32>
    "tpu.trace_stop"() : () -> ()
    %c0_131 = arith.constant 0 : index
    %c0_132 = arith.constant 0 : index
    %c0_133 = arith.constant 0 : index
    %421 = vector.load %arg13[%c0_131, %c0_132, %c0_133] : memref<8x4x16xf32, #tpu.memory_space<vmem>>, vector<8x4x16xf32>
    "tpu.trace_start"() <{level = 10 : i32, message = "tbh,thk->tbk"}> : () -> ()
    %cst_134 = arith.constant dense<0.000000e+00> : vector<8x4x16xf32>
    %422 = tpu.matmul %421, %418, %cst_134 {dimension_numbers = #tpu.dot_dimension_numbers<[2], [1], [1], [2], [0, 0, 0, 1, 1, 2], [0], [0]>, precision = #tpu.contract_precision<fp32>} : vector<8x4x16xf32>, vector<8x16x16xf32>, vector<8x4x16xf32> -> vector<8x4x16xf32>
    "tpu.trace_stop"() : () -> ()
    %423 = arith.addf %420, %422 : vector<8x4x16xf32>
    %c0_135 = arith.constant 0 : index
    %c0_136 = arith.constant 0 : index
    %424 = vector.load %arg7[%c0_135, %c0_136] : memref<1x16xf32, #tpu.memory_space<vmem>>, vector<1x16xf32>
    %425 = vector.shape_cast %424 : vector<1x16xf32> to vector<1x1x16xf32>
    %426 = vector.broadcast %425 : vector<1x1x16xf32> to vector<8x4x16xf32>
    %427 = arith.addf %423, %426 : vector<8x4x16xf32>
    %c0_137 = arith.constant 0 : index
    %c0_138 = arith.constant 0 : index
    %c0_139 = arith.constant 0 : index
    %428 = vector.load %arg10[%c0_137, %c0_138, %c0_139] : memref<8x4x16xf32, #tpu.memory_space<vmem>>, vector<8x4x16xf32>
    tpu.vector_store %arg10[%c0_137, %c0_138, %c0_139], %427 {strides = array<i32>} : memref<8x4x16xf32, #tpu.memory_space<vmem>>, vector<8x4x16xf32>,
    %c0_140 = arith.constant 0 : index
    %c0_141 = arith.constant 0 : index
    %429 = vector.load %arg8[%c0_140, %c0_141] : memref<32x16xf32, #tpu.memory_space<vmem>>, vector<32x16xf32>
    %cst_142 = arith.constant dense<0.000000e+00> : vector<4x16xf32>
    %430 = tpu.matmul %410, %429, %cst_142 {dimension_numbers = #tpu.dot_dimension_numbers<[1], [0], [0], [1], [0, 0, 1, 1], [], []>, precision = #tpu.contract_precision<fp32>} : vector<4x32xf32>, vector<32x16xf32>, vector<4x16xf32> -> vector<4x16xf32>
    %c0_143 = arith.constant 0 : index
    %c0_144 = arith.constant 0 : index
    %431 = vector.load %arg9[%c0_143, %c0_144] : memref<1x16xf32, #tpu.memory_space<vmem>>, vector<1x16xf32>
    %432 = vector.broadcast %431 : vector<1x16xf32> to vector<4x16xf32>
    %433 = arith.addf %430, %432 : vector<4x16xf32>
    %cst_145 = arith.constant 0.000000e+00 : f32
    %434 = vector.broadcast %cst_145 : f32 to vector<4x16xf32>
    %435 = arith.maximumf %433, %434 : vector<4x16xf32>
    %c0_146 = arith.constant 0 : index
    %c0_147 = arith.constant 0 : index
    %c0_148 = arith.constant 0 : index
    %436 = vector.load %arg11[%c0_146, %c0_147, %c0_148] : memref<1x4x16xf32, #tpu.memory_space<vmem>>, vector<1x4x16xf32>
    %437 = vector.shape_cast %436 : vector<1x4x16xf32> to vector<4x16xf32>
    %438 = vector.shape_cast %435 : vector<4x16xf32> to vector<1x4x16xf32>
    tpu.vector_store %arg11[%c0_146, %c0_147, %c0_148], %438 {strides = array<i32>} : memref<1x4x16xf32, #tpu.memory_space<vmem>>, vector<1x4x16xf32>,
    return
  }
  func.func @transform_0(%arg0: i32) -> (i32, i32, i32) {
    %c0_i32 = arith.constant 0 : i32
    %c0_i32_0 = arith.constant 0 : i32
    %c0_i32_1 = arith.constant 0 : i32
    return %c0_i32, %arg0, %c0_i32_0 : i32, i32, i32
  }
  func.func @transform_1(%arg0: i32) -> (i32, i32, i32) {
    %c0_i32 = arith.constant 0 : i32
    %c0_i32_0 = arith.constant 0 : i32
    %c0_i32_1 = arith.constant 0 : i32
    return %c0_i32, %arg0, %c0_i32_0 : i32, i32, i32
  }
  func.func @transform_2(%arg0: i32) -> (i32, i32) {
    %c0_i32 = arith.constant 0 : i32
    %c0_i32_0 = arith.constant 0 : i32
    %c0_i32_1 = arith.constant 0 : i32
    return %c0_i32, %c0_i32_0 : i32, i32
  }
  func.func @transform_3(%arg0: i32) -> (i32, i32) {
    %c0_i32 = arith.constant 0 : i32
    %c0_i32_0 = arith.constant 0 : i32
    %c0_i32_1 = arith.constant 0 : i32
    return %c0_i32, %c0_i32_0 : i32, i32
  }
  func.func @transform_4(%arg0: i32) -> (i32, i32) {
    %c0_i32 = arith.constant 0 : i32
    %c0_i32_0 = arith.constant 0 : i32
    %c0_i32_1 = arith.constant 0 : i32
    return %c0_i32, %c0_i32_0 : i32, i32
  }
  func.func @transform_5(%arg0: i32) -> (i32, i32) {
    %c0_i32 = arith.constant 0 : i32
    %c0_i32_0 = arith.constant 0 : i32
    %c0_i32_1 = arith.constant 0 : i32
    return %c0_i32, %c0_i32_0 : i32, i32
  }
  func.func @transform_6(%arg0: i32) -> (i32, i32) {
    %c0_i32 = arith.constant 0 : i32
    %c0_i32_0 = arith.constant 0 : i32
    %c0_i32_1 = arith.constant 0 : i32
    return %c0_i32, %c0_i32_0 : i32, i32
  }
  func.func @transform_7(%arg0: i32) -> (i32, i32) {
    %c0_i32 = arith.constant 0 : i32
    %c0_i32_0 = arith.constant 0 : i32
    %c0_i32_1 = arith.constant 0 : i32
    return %c0_i32, %c0_i32_0 : i32, i32
  }
  func.func @transform_8(%arg0: i32) -> (i32, i32) {
    %c0_i32 = arith.constant 0 : i32
    %c0_i32_0 = arith.constant 0 : i32
    %c0_i32_1 = arith.constant 0 : i32
    return %c0_i32, %c0_i32_0 : i32, i32
  }
  func.func @transform_9(%arg0: i32) -> (i32, i32, i32) {
    %c0_i32 = arith.constant 0 : i32
    %c0_i32_0 = arith.constant 0 : i32
    %c0_i32_1 = arith.constant 0 : i32
    return %c0_i32, %arg0, %c0_i32_0 : i32, i32, i32
  }
  func.func @transform_10(%arg0: i32) -> (i32, i32, i32) {
    %c0_i32 = arith.constant 0 : i32
    %c0_i32_0 = arith.constant 0 : i32
    %c0_i32_1 = arith.constant 0 : i32
    return %c0_i32, %arg0, %c0_i32_0 : i32, i32, i32
  }
}

</mosaic_0001>

<llo_original>
// kernel: tpu_custom_call.1
$region0: #{tpu_custom_call.1}
  #allocation0 [shape = 'u32[]', space=smem, size = 0x4, offset = 0x4, fixed_abs, tag = 'smem constant byte address 0x4 - core index']
  #allocation1 [shape = 'u32[72,128]{1,0:T(1,128)}', space=vmem, size = 0x9000, scoped, tag = 'internal scratch']
  #allocation2 [shape = 'f32[8,4,16]{2,1,0:T(4,128)}', space=vmem, size = 0x4000, scoped, tag = 'scratch operand']
  #allocation3 [shape = 'f32[8,4,16]{2,1,0:T(4,128)}', space=vmem, size = 0x4000, scoped, tag = 'scratch operand']
  %s0 = inlined_call_operand.vmem [shape: f32[8,4,96], index: 0, kind: input, shape index: {}]
  %s1 = inlined_call_operand.hbm [shape: f32[8,4,32], index: 1, kind: input, shape index: {}]
  %s2 = inlined_call_operand.hbm [shape: f32[32,96], index: 2, kind: input, shape index: {}]
  %s3 = inlined_call_operand.vmem [shape: f32[1,32], index: 3, kind: input, shape index: {}]
  %s4 = inlined_call_operand.vmem [shape: f32[16,16], index: 4, kind: input, shape index: {}]
  %s5 = inlined_call_operand.hbm [shape: f32[16,16], index: 5, kind: input, shape index: {}]
  %s6 = inlined_call_operand.vmem [shape: f32[1,16], index: 6, kind: input, shape index: {}]
  %s7 = inlined_call_operand.vmem [shape: f32[32,16], index: 7, kind: input, shape index: {}]
  %s8 = inlined_call_operand.vmem [shape: f32[1,16], index: 8, kind: input, shape index: {}]
  %s9 = inlined_call_operand.hbm [shape: f32[8,4,16], index: 9, kind: output, shape index: {0}]
  %s10 = inlined_call_operand.hbm [shape: f32[1,4,16], index: 10, kind: output, shape index: {1}]
  %11 = xla_tuple %s9, %s10
  %s12 = sld [smem:[#allocation0]]
  $region66: #{tpu_custom_call.1} parent=0
    _
  %s14 = ssub.s32 1, %s12
  %s15 = scalar_select 0, %s14, %s12
  $region1: #{tpu_custom_call.1} parent=0
    #allocation4 [shape = 'u8[16384]{0}', space=vmem, size = 0x4000, scoped, tag = 'input window, operand 1, single buffered']
    #allocation5 [shape = 's32[1]{0}', space=sflag, size = 0x4, scoped, tag = 'scoped memory for tpu_custom_call.1']
    #allocation6 [shape = 's32[1]{0}', space=sflag, size = 0x4, scoped, tag = 'scoped memory for tpu_custom_call.1']
    #allocation7 [shape = 'u8[16384]{0}', space=vmem, size = 0x4000, scoped, tag = 'input window, operand 2, single buffered']
    #allocation8 [shape = 's32[1]{0}', space=sflag, size = 0x4, scoped, tag = 'scoped memory for tpu_custom_call.1']
    #allocation9 [shape = 'u8[8192]{0}', space=vmem, size = 0x2000, scoped, tag = 'input window, operand 5, single buffered']
    #allocation10 [shape = 'u8[16384]{0}', space=vmem, size = 0x4000, scoped, tag = 'output window, operand 0, single buffered']
    #allocation11 [shape = 'u8[2048]{0}', space=vmem, size = 0x800, scoped, tag = 'output window, operand 1, single buffered']
    #allocation12 [shape = 's32[1]{0}', space=sflag, size = 0x4, scoped, tag = 'scoped memory for tpu_custom_call.1']
    %16 = vsyncpa [#allocation5], 0
    %17 = vsyncpa [#allocation8], 0
    %18 = vsyncpa [#allocation6], 0
    %19 = vsyncpa [#allocation12], 0
    // Predicated region
    $region2: #{tpu_custom_call.1} parent=1 // pred_check
      _
    $region3: #{tpu_custom_call.1} parent=1 // pred_check_branch
      %21 = sbr.rel (0) target = $region5
    $region4: #{tpu_custom_call.1} parent=1 // pred_region
      _
    $region5: #{tpu_custom_call.1} parent=1 // pred_fallthru
      _
    // Predicated region
    $region6: #{tpu_custom_call.1} parent=1 // pred_check
      _
    $region7: #{tpu_custom_call.1} parent=1 // pred_check_branch
      %23 = sbr.rel (0) target = $region9
    $region8: #{tpu_custom_call.1} parent=1 // pred_region
      %25 = vsyncadd [#allocation5], 0
      %s26 = sshll.u32 %s1, 4
      %s27 = int_to_ptr.hbm [resolvable:$true] %s26
      %s28 = sshll.u32 [#allocation4], 4
      %s29 = int_to_ptr.vmem [resolvable:$true] %s28
      %34 = dma.hbm_to_vmem [thread:$0]  %s27, 512, %s29, [#allocation5], 64, 64, 4
    $region9: #{tpu_custom_call.1} parent=1 // pred_fallthru
      _
    // Predicated region
    $region10: #{tpu_custom_call.1} parent=1 // pred_check
      _
    $region11: #{tpu_custom_call.1} parent=1 // pred_check_branch
      %36 = sbr.rel (0) target = $region13
    $region12: #{tpu_custom_call.1} parent=1 // pred_region
      %38 = vsyncadd [#allocation8], 0
      %s39 = sshll.u32 %s2, 4
      %s40 = int_to_ptr.hbm [resolvable:$true] %s39
      %s41 = sshll.u32 [#allocation7], 4
      %s42 = int_to_ptr.vmem [resolvable:$true] %s41
      %47 = dma.hbm_to_vmem [thread:$0]  %s40, 512, %s42, [#allocation8], 128, 128, 8
    $region13: #{tpu_custom_call.1} parent=1 // pred_fallthru
      _
    // Predicated region
    $region14: #{tpu_custom_call.1} parent=1 // pred_check
      _
    $region15: #{tpu_custom_call.1} parent=1 // pred_check_branch
      %49 = sbr.rel (0) target = $region17
    $region16: #{tpu_custom_call.1} parent=1 // pred_region
      _
    $region17: #{tpu_custom_call.1} parent=1 // pred_fallthru
      _
    // Predicated region
    $region18: #{tpu_custom_call.1} parent=1 // pred_check
      _
    $region19: #{tpu_custom_call.1} parent=1 // pred_check_branch
      %51 = sbr.rel (0) target = $region21
    $region20: #{tpu_custom_call.1} parent=1 // pred_region
      _
    $region21: #{tpu_custom_call.1} parent=1 // pred_fallthru
      _
    // Predicated region
    $region22: #{tpu_custom_call.1} parent=1 // pred_check
      _
    $region23: #{tpu_custom_call.1} parent=1 // pred_check_branch
      %53 = sbr.rel (0) target = $region25
    $region24: #{tpu_custom_call.1} parent=1 // pred_region
      %55 = vsyncadd [#allocation8], 0
      %s56 = sshll.u32 %s5, 4
      %s57 = int_to_ptr.hbm [resolvable:$true] %s56
      %s58 = sshll.u32 [#allocation9], 4
      %s59 = int_to_ptr.vmem [resolvable:$true] %s58
      %64 = dma.hbm_to_vmem [thread:$0]  %s57, 256, %s59, [#allocation8], 128, 128, 8
    $region25: #{tpu_custom_call.1} parent=1 // pred_fallthru
      _
    // Predicated region
    $region26: #{tpu_custom_call.1} parent=1 // pred_check
      _
    $region27: #{tpu_custom_call.1} parent=1 // pred_check_branch
      %66 = sbr.rel (0) target = $region29
    $region28: #{tpu_custom_call.1} parent=1 // pred_region
      _
    $region29: #{tpu_custom_call.1} parent=1 // pred_fallthru
      _
    // Predicated region
    $region30: #{tpu_custom_call.1} parent=1 // pred_check
      _
    $region31: #{tpu_custom_call.1} parent=1 // pred_check_branch
      %68 = sbr.rel (0) target = $region33
    $region32: #{tpu_custom_call.1} parent=1 // pred_region
      _
    $region33: #{tpu_custom_call.1} parent=1 // pred_fallthru
      _
    // Predicated region
    $region34: #{tpu_custom_call.1} parent=1 // pred_check
      _
    $region35: #{tpu_custom_call.1} parent=1 // pred_check_branch
      %70 = sbr.rel (0) target = $region37
    $region36: #{tpu_custom_call.1} parent=1 // pred_region
      _
    $region37: #{tpu_custom_call.1} parent=1 // pred_fallthru
      _
    // Predicated region
    $region38: #{tpu_custom_call.1} parent=1 // pred_check
      _
    $region39: #{tpu_custom_call.1} parent=1 // pred_check_branch
      %72 = sbr.rel (0) target = $region41
    $region40: #{tpu_custom_call.1} parent=1 // pred_region
      %74 = dma.done [#allocation5], 512
    $region41: #{tpu_custom_call.1} parent=1 // pred_fallthru
      _
    // Predicated region
    $region42: #{tpu_custom_call.1} parent=1 // pred_check
      _
    $region43: #{tpu_custom_call.1} parent=1 // pred_check_branch
      %76 = sbr.rel (0) target = $region45
    $region44: #{tpu_custom_call.1} parent=1 // pred_region
      %78 = dma.done [#allocation8], 512
    $region45: #{tpu_custom_call.1} parent=1 // pred_fallthru
      _
    // Predicated region
    $region46: #{tpu_custom_call.1} parent=1 // pred_check
      _
    $region47: #{tpu_custom_call.1} parent=1 // pred_check_branch
      %80 = sbr.rel (0) target = $region49
    $region48: #{tpu_custom_call.1} parent=1 // pred_region
      %82 = dma.done [#allocation8], 256
    $region49: #{tpu_custom_call.1} parent=1 // pred_fallthru
      _
    %v83 = vld [vmem:[#allocation7] sm:$0xff]
    %v84 = vld [vmem:[#allocation7 + $0x8] sm:$0xff]
    %v85 = vld [vmem:[#allocation7 + $0x10] sm:$0xff]
    %v86 = vld [vmem:[#allocation7 + $0x18] sm:$0xff]
    %v87 = vld [vmem:[%s3] sm:$0x1]
    %v88 = vld [vmem:[%s0] sm:$0xf]
    %v89 = vld [vmem:[#allocation4] sm:$0xf]
    %vm90 = vcmask 261120
    %v92 = vsel %vm90, 0.0, 0
    %94 = vmatpush.msra.mxu0 0.0
    %95 = vmatpush.msra.mxu0 0.0
    %96 = vmatpush.msra.mxu0 0.0
    %97 = vmatpush.msra.mxu0 0.0
    %98 = vmatpush.msra.mxu0 0.0
    %99 = vmatpush.msra.mxu0 0.0
    %100 = vmatpush.msra.mxu0 0.0
    %101 = vmatpush.msra.mxu0 0.0
    %102 = vmatpush.msra.mxu0 0.0
    %103 = vmatpush.msra.mxu0 0.0
    %104 = vmatpush.msra.mxu0 0.0
    %105 = vmatpush.msra.mxu0 0.0
    %v106 = vand.u32 %v86, 4294901760
    %107 = vmatpush.msra.mxu0 %v106
    %v108 = vand.u32 %v85, 4294901760
    %109 = vmatpush.msra.mxu0 %v108
    %v110 = vand.u32 %v84, 4294901760
    %111 = vmatpush.msra.mxu0 %v110
    %v112 = vand.u32 %v83, 4294901760
    %113 = vmatpush.msra.mxu0 %v112
    %v114 = vand.u32 %v92, 4294901760
    %v115 = vsub.f32 %v92, %v114
    %v116 = vand.u32 %v115, 4294901760
    %v117 = vsub.f32 %v115, %v116
    %v118 = vand.u32 %v117, 4294901760
    %119 = vmatmul.f32.gmra.mxu0 %v118
    %v120 = vpop.f32.mrf.mxu0
    %v121 = vadd.f32 0.0, %v120
    %122 = vdwg.mxu0
    %123 = vmatpush.msra.mxu0 0.0
    %124 = vmatpush.msra.mxu0 0.0
    %125 = vmatpush.msra.mxu0 0.0
    %126 = vmatpush.msra.mxu0 0.0
    %127 = vmatpush.msra.mxu0 0.0
    %128 = vmatpush.msra.mxu0 0.0
    %129 = vmatpush.msra.mxu0 0.0
    %130 = vmatpush.msra.mxu0 0.0
    %131 = vmatpush.msra.mxu0 0.0
    %132 = vmatpush.msra.mxu0 0.0
    %133 = vmatpush.msra.mxu0 0.0
    %134 = vmatpush.msra.mxu0 0.0
    %v135 = vand.u32 %v86, 4294901760
    %v136 = vsub.f32 %v86, %v135
    %v137 = vand.u32 %v136, 4294901760
    %v138 = vsub.f32 %v136, %v137
    %v139 = vand.u32 %v138, 4294901760
    %140 = vmatpush.msra.mxu0 %v139
    %v141 = vand.u32 %v85, 4294901760
    %v142 = vsub.f32 %v85, %v141
    %v143 = vand.u32 %v142, 4294901760
    %v144 = vsub.f32 %v142, %v143
    %v145 = vand.u32 %v144, 4294901760
    %146 = vmatpush.msra.mxu0 %v145
    %v147 = vand.u32 %v84, 4294901760
    %v148 = vsub.f32 %v84, %v147
    %v149 = vand.u32 %v148, 4294901760
    %v150 = vsub.f32 %v148, %v149
    %v151 = vand.u32 %v150, 4294901760
    %152 = vmatpush.msra.mxu0 %v151
    %v153 = vand.u32 %v83, 4294901760
    %v154 = vsub.f32 %v83, %v153
    %v155 = vand.u32 %v154, 4294901760
    %v156 = vsub.f32 %v154, %v155
    %v157 = vand.u32 %v156, 4294901760
    %158 = vmatpush.msra.mxu0 %v157
    %v159 = vand.u32 %v92, 4294901760
    %160 = vmatmul.f32.gmra.mxu0 %v159
    %v161 = vpop.f32.mrf.mxu0
    %v162 = vadd.f32 %v121, %v161
    %163 = vdwg.mxu0
    %164 = vmatpush.msra.mxu0 0.0
    %165 = vmatpush.msra.mxu0 0.0
    %166 = vmatpush.msra.mxu0 0.0
    %167 = vmatpush.msra.mxu0 0.0
    %168 = vmatpush.msra.mxu0 0.0
    %169 = vmatpush.msra.mxu0 0.0
    %170 = vmatpush.msra.mxu0 0.0
    %171 = vmatpush.msra.mxu0 0.0
    %172 = vmatpush.msra.mxu0 0.0
    %173 = vmatpush.msra.mxu0 0.0
    %174 = vmatpush.msra.mxu0 0.0
    %175 = vmatpush.msra.mxu0 0.0
    %v176 = vand.u32 %v86, 4294901760
    %v177 = vsub.f32 %v86, %v176
    %178 = vmatpush.msra.mxu0 %v177
    %v179 = vand.u32 %v85, 4294901760
    %v180 = vsub.f32 %v85, %v179
    %181 = vmatpush.msra.mxu0 %v180
    %v182 = vand.u32 %v84, 4294901760
    %v183 = vsub.f32 %v84, %v182
    %184 = vmatpush.msra.mxu0 %v183
    %v185 = vand.u32 %v83, 4294901760
    %v186 = vsub.f32 %v83, %v185
    %187 = vmatpush.msra.mxu0 %v186
    %v188 = vand.u32 %v92, 4294901760
    %v189 = vsub.f32 %v92, %v188
    %190 = vmatmul.f32.gmra.mxu0 %v189
    %v191 = vpop.f32.mrf.mxu0
    %v192 = vadd.f32 %v162, %v191
    %193 = vdwg.mxu0
    %194 = vmatpush.msra.mxu0 0.0
    %195 = vmatpush.msra.mxu0 0.0
    %196 = vmatpush.msra.mxu0 0.0
    %197 = vmatpush.msra.mxu0 0.0
    %198 = vmatpush.msra.mxu0 0.0
    %199 = vmatpush.msra.mxu0 0.0
    %200 = vmatpush.msra.mxu0 0.0
    %201 = vmatpush.msra.mxu0 0.0
    %202 = vmatpush.msra.mxu0 0.0
    %203 = vmatpush.msra.mxu0 0.0
    %204 = vmatpush.msra.mxu0 0.0
    %205 = vmatpush.msra.mxu0 0.0
    %v206 = vand.u32 %v86, 4294901760
    %207 = vmatpush.msra.mxu0 %v206
    %v208 = vand.u32 %v85, 4294901760
    %209 = vmatpush.msra.mxu0 %v208
    %v210 = vand.u32 %v84, 4294901760
    %211 = vmatpush.msra.mxu0 %v210
    %v212 = vand.u32 %v83, 4294901760
    %213 = vmatpush.msra.mxu0 %v212
    %v214 = vand.u32 %v92, 4294901760
    %v215 = vsub.f32 %v92, %v214
    %v216 = vand.u32 %v215, 4294901760
    %217 = vmatmul.f32.gmra.mxu0 %v216
    %v218 = vpop.f32.mrf.mxu0
    %v219 = vadd.f32 %v192, %v218
    %220 = vdwg.mxu0
    %221 = vmatpush.msra.mxu0 0.0
    %222 = vmatpush.msra.mxu0 0.0
    %223 = vmatpush.msra.mxu0 0.0
    %224 = vmatpush.msra.mxu0 0.0
    %225 = vmatpush.msra.mxu0 0.0
    %226 = vmatpush.msra.mxu0 0.0
    %227 = vmatpush.msra.mxu0 0.0
    %228 = vmatpush.msra.mxu0 0.0
    %229 = vmatpush.msra.mxu0 0.0
    %230 = vmatpush.msra.mxu0 0.0
    %231 = vmatpush.msra.mxu0 0.0
    %232 = vmatpush.msra.mxu0 0.0
    %v233 = vand.u32 %v86, 4294901760
    %v234 = vsub.f32 %v86, %v233
    %v235 = vand.u32 %v234, 4294901760
    %236 = vmatpush.msra.mxu0 %v235
    %v237 = vand.u32 %v85, 4294901760
    %v238 = vsub.f32 %v85, %v237
    %v239 = vand.u32 %v238, 4294901760
    %240 = vmatpush.msra.mxu0 %v239
    %v241 = vand.u32 %v84, 4294901760
    %v242 = vsub.f32 %v84, %v241
    %v243 = vand.u32 %v242, 4294901760
    %244 = vmatpush.msra.mxu0 %v243
    %v245 = vand.u32 %v83, 4294901760
    %v246 = vsub.f32 %v83, %v245
    %v247 = vand.u32 %v246, 4294901760
    %248 = vmatpush.msra.mxu0 %v247
    %v249 = vand.u32 %v92, 4294901760
    %250 = vmatmul.f32.gmra.mxu0 %v249
    %v251 = vpop.f32.mrf.mxu0
    %v252 = vadd.f32 %v219, %v251
    %253 = vdwg.mxu0
    %254 = vmatpush.msra.mxu0 0.0
    %255 = vmatpush.msra.mxu0 0.0
    %256 = vmatpush.msra.mxu0 0.0
    %257 = vmatpush.msra.mxu0 0.0
    %258 = vmatpush.msra.mxu0 0.0
    %259 = vmatpush.msra.mxu0 0.0
    %260 = vmatpush.msra.mxu0 0.0
    %261 = vmatpush.msra.mxu0 0.0
    %262 = vmatpush.msra.mxu0 0.0
    %263 = vmatpush.msra.mxu0 0.0
    %264 = vmatpush.msra.mxu0 0.0
    %265 = vmatpush.msra.mxu0 0.0
    %v266 = vand.u32 %v86, 4294901760
    %267 = vmatpush.msra.mxu0 %v266
    %v268 = vand.u32 %v85, 4294901760
    %269 = vmatpush.msra.mxu0 %v268
    %v270 = vand.u32 %v84, 4294901760
    %271 = vmatpush.msra.mxu0 %v270
    %v272 = vand.u32 %v83, 4294901760
    %273 = vmatpush.msra.mxu0 %v272
    %v274 = vand.u32 %v92, 4294901760
    %275 = vmatmul.f32.gmra.mxu0 %v274
    %v276 = vpop.f32.mrf.mxu0
    %v277 = vadd.f32 %v252, %v276
    %278 = vdwg.mxu0
    %v279 = vadd.f32 %v88, %v277
    %v280 = vxor.u32 %v279, 2147483648
    %v281 = vmul.f32 %v280, 1.442695
    %v282 = vpow.pop %v281
    %v283 = vadd.f32 %v282, 1.0
    %v284 = vrcp.pop %v283
    %v285 = vmul.f32 %v283, %v284
    %v286 = vsub.f32 1.0, %v285
    %v287 = vmul.f32 %v284, %v286
    %v288 = vadd.f32 %v284, %v287
    %vm289 = vweird.f32 %v283
    %vm290 = vweird.f32 %v284
    %vm291 = vmor %vm289, %vm290
    %v292 = vsel %vm291, %v284, %v288
    %v293 = vand.u32 2147483647, %v283
    %vm294 = vcmp.eq.f32.partialorder %v293, 8.507059e+37
    %v295 = vand.u32 %v283, 2147483648
    %v296 = vor.u32 1.1754944e-38, %v295
    %v297 = vsel %vm294, %v296, %v292
    %v298 = vmul.f32 1.0, %v297
    %v300 = vperm.slane %v87, 0
    %301 = vrot.lane.b32.xlu0 %v300, 64
    %v302 = vpop.permute.xlu0 %301
    %v304 = vadd.f32 %v277, %v302
    %306 = vrot.lane.b32.xlu0 %v304, 64
    %v307 = vpop.permute.xlu0 %306
    %v309 = vmul.f32 %v298, %v307
    %311 = vrot.lane.b32.xlu0 %v309, 64
    %v312 = vpop.permute.xlu0 %311
    %v314 = vadd.f32 %v88, %v312
    %v315 = vtanh.pop %v314
    %v316 = vsub.f32 1.0, %v298
    %318 = vrot.lane.b32.xlu0 %v315, 96
    %v319 = vpop.permute.xlu0 %318
    %v321 = vmul.f32 %v316, %v319
    %v322 = vmul.f32 %v298, 0.0
    %v323 = vadd.f32 %v321, %v322
    %vm324 = vcmp.gt.f32.partialorder %v89, 0.5
    %326 = vrot.lane.b32.xlu0 %v323, 96
    %v327 = vpop.permute.xlu0 %326
    %v329 = vsel %vm324, %v327, 0.0
    %vm330 = vcmask 125952
    %331 = vst.msk [vmem:[#allocation2] sm:$0xf] %vm330, %v329
    %333 = vrot.lane.b32.xlu0 %v329, 112
    %v334 = vpop.permute.xlu0 %333
    %s336 = scalar_lea.vmem [#allocation3], 28
    %337 = vst.msk [vmem:[%s336] sm:$0xf] %vm330, %v334
    %s338 = scalar_lea.vmem %s0, 4
    %v339 = vld [vmem:[%s338] sm:$0xf]
    %s340 = scalar_lea.vmem [#allocation4], 4
    %v341 = vld [vmem:[%s340] sm:$0xf]
    %v342 = vsel %vm90, %v329, 0
    %344 = vmatpush.msra.mxu0 0.0
    %345 = vmatpush.msra.mxu0 0.0
    %346 = vmatpush.msra.mxu0 0.0
    %347 = vmatpush.msra.mxu0 0.0
    %348 = vmatpush.msra.mxu0 0.0
    %349 = vmatpush.msra.mxu0 0.0
    %350 = vmatpush.msra.mxu0 0.0
    %351 = vmatpush.msra.mxu0 0.0
    %352 = vmatpush.msra.mxu0 0.0
    %353 = vmatpush.msra.mxu0 0.0
    %354 = vmatpush.msra.mxu0 0.0
    %355 = vmatpush.msra.mxu0 0.0
    %v356 = vand.u32 %v86, 4294901760
    %357 = vmatpush.msra.mxu0 %v356
    %v358 = vand.u32 %v85, 4294901760
    %359 = vmatpush.msra.mxu0 %v358
    %v360 = vand.u32 %v84, 4294901760
    %361 = vmatpush.msra.mxu0 %v360
    %v362 = vand.u32 %v83, 4294901760
    %363 = vmatpush.msra.mxu0 %v362
    %v364 = vand.u32 %v342, 4294901760
    %v365 = vsub.f32 %v342, %v364
    %v366 = vand.u32 %v365, 4294901760
    %v367 = vsub.f32 %v365, %v366
    %v368 = vand.u32 %v367, 4294901760
    %369 = vmatmul.f32.gmra.mxu0 %v368
    %v370 = vpop.f32.mrf.mxu0
    %v371 = vadd.f32 0.0, %v370
    %372 = vdwg.mxu0
    %373 = vmatpush.msra.mxu0 0.0
    %374 = vmatpush.msra.mxu0 0.0
    %375 = vmatpush.msra.mxu0 0.0
    %376 = vmatpush.msra.mxu0 0.0
    %377 = vmatpush.msra.mxu0 0.0
    %378 = vmatpush.msra.mxu0 0.0
    %379 = vmatpush.msra.mxu0 0.0
    %380 = vmatpush.msra.mxu0 0.0
    %381 = vmatpush.msra.mxu0 0.0
    %382 = vmatpush.msra.mxu0 0.0
    %383 = vmatpush.msra.mxu0 0.0
    %384 = vmatpush.msra.mxu0 0.0
    %v385 = vand.u32 %v86, 4294901760
    %v386 = vsub.f32 %v86, %v385
    %v387 = vand.u32 %v386, 4294901760
    %v388 = vsub.f32 %v386, %v387
    %v389 = vand.u32 %v388, 4294901760
    %390 = vmatpush.msra.mxu0 %v389
    %v391 = vand.u32 %v85, 4294901760
    %v392 = vsub.f32 %v85, %v391
    %v393 = vand.u32 %v392, 4294901760
    %v394 = vsub.f32 %v392, %v393
    %v395 = vand.u32 %v394, 4294901760
    %396 = vmatpush.msra.mxu0 %v395
    %v397 = vand.u32 %v84, 4294901760
    %v398 = vsub.f32 %v84, %v397
    %v399 = vand.u32 %v398, 4294901760
    %v400 = vsub.f32 %v398, %v399
    %v401 = vand.u32 %v400, 4294901760
    %402 = vmatpush.msra.mxu0 %v401
    %v403 = vand.u32 %v83, 4294901760
    %v404 = vsub.f32 %v83, %v403
    %v405 = vand.u32 %v404, 4294901760
    %v406 = vsub.f32 %v404, %v405
    %v407 = vand.u32 %v406, 4294901760
    %408 = vmatpush.msra.mxu0 %v407
    %v409 = vand.u32 %v342, 4294901760
    %410 = vmatmul.f32.gmra.mxu0 %v409
    %v411 = vpop.f32.mrf.mxu0
    %v412 = vadd.f32 %v371, %v411
    %413 = vdwg.mxu0
    %414 = vmatpush.msra.mxu0 0.0
    %415 = vmatpush.msra.mxu0 0.0
    %416 = vmatpush.msra.mxu0 0.0
    %417 = vmatpush.msra.mxu0 0.0
    %418 = vmatpush.msra.mxu0 0.0
    %419 = vmatpush.msra.mxu0 0.0
    %420 = vmatpush.msra.mxu0 0.0
    %421 = vmatpush.msra.mxu0 0.0
    %422 = vmatpush.msra.mxu0 0.0
    %423 = vmatpush.msra.mxu0 0.0
    %424 = vmatpush.msra.mxu0 0.0
    %425 = vmatpush.msra.mxu0 0.0
    %v426 = vand.u32 %v86, 4294901760
    %v427 = vsub.f32 %v86, %v426
    %428 = vmatpush.msra.mxu0 %v427
    %v429 = vand.u32 %v85, 4294901760
    %v430 = vsub.f32 %v85, %v429
    %431 = vmatpush.msra.mxu0 %v430
    %v432 = vand.u32 %v84, 4294901760
    %v433 = vsub.f32 %v84, %v432
    %434 = vmatpush.msra.mxu0 %v433
    %v435 = vand.u32 %v83, 4294901760
    %v436 = vsub.f32 %v83, %v435
    %437 = vmatpush.msra.mxu0 %v436
    %v438 = vand.u32 %v342, 4294901760
    %v439 = vsub.f32 %v342, %v438
    %440 = vmatmul.f32.gmra.mxu0 %v439
    %v441 = vpop.f32.mrf.mxu0
    %v442 = vadd.f32 %v412, %v441
    %443 = vdwg.mxu0
    %444 = vmatpush.msra.mxu0 0.0
    %445 = vmatpush.msra.mxu0 0.0
    %446 = vmatpush.msra.mxu0 0.0
    %447 = vmatpush.msra.mxu0 0.0
    %448 = vmatpush.msra.mxu0 0.0
    %449 = vmatpush.msra.mxu0 0.0
    %450 = vmatpush.msra.mxu0 0.0
    %451 = vmatpush.msra.mxu0 0.0
    %452 = vmatpush.msra.mxu0 0.0
    %453 = vmatpush.msra.mxu0 0.0
    %454 = vmatpush.msra.mxu0 0.0
    %455 = vmatpush.msra.mxu0 0.0
    %v456 = vand.u32 %v86, 4294901760
    %457 = vmatpush.msra.mxu0 %v456
    %v458 = vand.u32 %v85, 4294901760
    %459 = vmatpush.msra.mxu0 %v458
    %v460 = vand.u32 %v84, 4294901760
    %461 = vmatpush.msra.mxu0 %v460
    %v462 = vand.u32 %v83, 4294901760
    %463 = vmatpush.msra.mxu0 %v462
    %v464 = vand.u32 %v342, 4294901760
    %v465 = vsub.f32 %v342, %v464
    %v466 = vand.u32 %v465, 4294901760
    %467 = vmatmul.f32.gmra.mxu0 %v466
    %v468 = vpop.f32.mrf.mxu0
    %v469 = vadd.f32 %v442, %v468
    %470 = vdwg.mxu0
    %471 = vmatpush.msra.mxu0 0.0
    %472 = vmatpush.msra.mxu0 0.0
    %473 = vmatpush.msra.mxu0 0.0
    %474 = vmatpush.msra.mxu0 0.0
    %475 = vmatpush.msra.mxu0 0.0
    %476 = vmatpush.msra.mxu0 0.0
    %477 = vmatpush.msra.mxu0 0.0
    %478 = vmatpush.msra.mxu0 0.0
    %479 = vmatpush.msra.mxu0 0.0
    %480 = vmatpush.msra.mxu0 0.0
    %481 = vmatpush.msra.mxu0 0.0
    %482 = vmatpush.msra.mxu0 0.0
    %v483 = vand.u32 %v86, 4294901760
    %v484 = vsub.f32 %v86, %v483
    %v485 = vand.u32 %v484, 4294901760
    %486 = vmatpush.msra.mxu0 %v485
    %v487 = vand.u32 %v85, 4294901760
    %v488 = vsub.f32 %v85, %v487
    %v489 = vand.u32 %v488, 4294901760
    %490 = vmatpush.msra.mxu0 %v489
    %v491 = vand.u32 %v84, 4294901760
    %v492 = vsub.f32 %v84, %v491
    %v493 = vand.u32 %v492, 4294901760
    %494 = vmatpush.msra.mxu0 %v493
    %v495 = vand.u32 %v83, 4294901760
    %v496 = vsub.f32 %v83, %v495
    %v497 = vand.u32 %v496, 4294901760
    %498 = vmatpush.msra.mxu0 %v497
    %v499 = vand.u32 %v342, 4294901760
    %500 = vmatmul.f32.gmra.mxu0 %v499
    %v501 = vpop.f32.mrf.mxu0
    %v502 = vadd.f32 %v469, %v501
    %503 = vdwg.mxu0
    %504 = vmatpush.msra.mxu0 0.0
    %505 = vmatpush.msra.mxu0 0.0
    %506 = vmatpush.msra.mxu0 0.0
    %507 = vmatpush.msra.mxu0 0.0
    %508 = vmatpush.msra.mxu0 0.0
    %509 = vmatpush.msra.mxu0 0.0
    %510 = vmatpush.msra.mxu0 0.0
    %511 = vmatpush.msra.mxu0 0.0
    %512 = vmatpush.msra.mxu0 0.0
    %513 = vmatpush.msra.mxu0 0.0
    %514 = vmatpush.msra.mxu0 0.0
    %515 = vmatpush.msra.mxu0 0.0
    %v516 = vand.u32 %v86, 4294901760
    %517 = vmatpush.msra.mxu0 %v516
    %v518 = vand.u32 %v85, 4294901760
    %519 = vmatpush.msra.mxu0 %v518
    %v520 = vand.u32 %v84, 4294901760
    %521 = vmatpush.msra.mxu0 %v520
    %v522 = vand.u32 %v83, 4294901760
    %523 = vmatpush.msra.mxu0 %v522
    %v524 = vand.u32 %v342, 4294901760
    %525 = vmatmul.f32.gmra.mxu0 %v524
    %v526 = vpop.f32.mrf.mxu0
    %v527 = vadd.f32 %v502, %v526
    %528 = vdwg.mxu0
    %v529 = vadd.f32 %v339, %v527
    %v530 = vxor.u32 %v529, 2147483648
    %v531 = vmul.f32 %v530, 1.442695
    %v532 = vpow.pop %v531
    %v533 = vadd.f32 %v532, 1.0
    %v534 = vrcp.pop %v533
    %v535 = vmul.f32 %v533, %v534
    %v536 = vsub.f32 1.0, %v535
    %v537 = vmul.f32 %v534, %v536
    %v538 = vadd.f32 %v534, %v537
    %vm539 = vweird.f32 %v533
    %vm540 = vweird.f32 %v534
    %vm541 = vmor %vm539, %vm540
    %v542 = vsel %vm541, %v534, %v538
    %v543 = vand.u32 2147483647, %v533
    %vm544 = vcmp.eq.f32.partialorder %v543, 8.507059e+37
    %v545 = vand.u32 %v533, 2147483648
    %v546 = vor.u32 1.1754944e-38, %v545
    %v547 = vsel %vm544, %v546, %v542
    %v548 = vmul.f32 1.0, %v547
    %v549 = vadd.f32 %v527, %v302
    %551 = vrot.lane.b32.xlu0 %v549, 64
    %v552 = vpop.permute.xlu0 %551
    %v554 = vmul.f32 %v548, %v552
    %556 = vrot.lane.b32.xlu0 %v554, 64
    %v557 = vpop.permute.xlu0 %556
    %v559 = vadd.f32 %v339, %v557
    %v560 = vtanh.pop %v559
    %v561 = vsub.f32 1.0, %v548
    %563 = vrot.lane.b32.xlu0 %v560, 96
    %v564 = vpop.permute.xlu0 %563
    %v566 = vmul.f32 %v561, %v564
    %567 = vrot.lane.b32.xlu0 %v329, 32
    %v568 = vpop.permute.xlu0 %567
    %v570 = vmul.f32 %v548, %v568
    %v571 = vadd.f32 %v566, %v570
    %vm572 = vcmp.gt.f32.partialorder %v341, 0.5
    %574 = vrot.lane.b32.xlu0 %v571, 96
    %v575 = vpop.permute.xlu0 %574
    %v577 = vsel %vm572, %v575, 0.0
    %s578 = scalar_lea.vmem [#allocation2], 4
    %579 = vst.msk [vmem:[%s578] sm:$0xf] %vm330, %v577
    %581 = vrot.lane.b32.xlu0 %v577, 112
    %v582 = vpop.permute.xlu0 %581
    %s584 = scalar_lea.vmem [#allocation3], 24
    %585 = vst.msk [vmem:[%s584] sm:$0xf] %vm330, %v582
    %v586 = vsel %vm572, %v575, %v329
    %s587 = scalar_lea.vmem %s0, 8
    %v588 = vld [vmem:[%s587] sm:$0xf]
    %s589 = scalar_lea.vmem [#allocation4], 8
    %v590 = vld [vmem:[%s589] sm:$0xf]
    %v592 = vsel %vm90, %v586, 0
    %594 = vmatpush.msra.mxu0 0.0
    %595 = vmatpush.msra.mxu0 0.0
    %596 = vmatpush.msra.mxu0 0.0
    %597 = vmatpush.msra.mxu0 0.0
    %598 = vmatpush.msra.mxu0 0.0
    %599 = vmatpush.msra.mxu0 0.0
    %600 = vmatpush.msra.mxu0 0.0
    %601 = vmatpush.msra.mxu0 0.0
    %602 = vmatpush.msra.mxu0 0.0
    %603 = vmatpush.msra.mxu0 0.0
    %604 = vmatpush.msra.mxu0 0.0
    %605 = vmatpush.msra.mxu0 0.0
    %v606 = vand.u32 %v86, 4294901760
    %607 = vmatpush.msra.mxu0 %v606
    %v608 = vand.u32 %v85, 4294901760
    %609 = vmatpush.msra.mxu0 %v608
    %v610 = vand.u32 %v84, 4294901760
    %611 = vmatpush.msra.mxu0 %v610
    %v612 = vand.u32 %v83, 4294901760
    %613 = vmatpush.msra.mxu0 %v612
    %v614 = vand.u32 %v592, 4294901760
    %v615 = vsub.f32 %v592, %v614
    %v616 = vand.u32 %v615, 4294901760
    %v617 = vsub.f32 %v615, %v616
    %v618 = vand.u32 %v617, 4294901760
    %619 = vmatmul.f32.gmra.mxu0 %v618
    %v620 = vpop.f32.mrf.mxu0
    %v621 = vadd.f32 0.0, %v620
    %622 = vdwg.mxu0
    %623 = vmatpush.msra.mxu0 0.0
    %624 = vmatpush.msra.mxu0 0.0
    %625 = vmatpush.msra.mxu0 0.0
    %626 = vmatpush.msra.mxu0 0.0
    %627 = vmatpush.msra.mxu0 0.0
    %628 = vmatpush.msra.mxu0 0.0
    %629 = vmatpush.msra.mxu0 0.0
    %630 = vmatpush.msra.mxu0 0.0
    %631 = vmatpush.msra.mxu0 0.0
    %632 = vmatpush.msra.mxu0 0.0
    %633 = vmatpush.msra.mxu0 0.0
    %634 = vmatpush.msra.mxu0 0.0
    %v635 = vand.u32 %v86, 4294901760
    %v636 = vsub.f32 %v86, %v635
    %v637 = vand.u32 %v636, 4294901760
    %v638 = vsub.f32 %v636, %v637
    %v639 = vand.u32 %v638, 4294901760
    %640 = vmatpush.msra.mxu0 %v639
    %v641 = vand.u32 %v85, 4294901760
    %v642 = vsub.f32 %v85, %v641
    %v643 = vand.u32 %v642, 4294901760
    %v644 = vsub.f32 %v642, %v643
    %v645 = vand.u32 %v644, 4294901760
    %646 = vmatpush.msra.mxu0 %v645
    %v647 = vand.u32 %v84, 4294901760
    %v648 = vsub.f32 %v84, %v647
    %v649 = vand.u32 %v648, 4294901760
    %v650 = vsub.f32 %v648, %v649
    %v651 = vand.u32 %v650, 4294901760
    %652 = vmatpush.msra.mxu0 %v651
    %v653 = vand.u32 %v83, 4294901760
    %v654 = vsub.f32 %v83, %v653
    %v655 = vand.u32 %v654, 4294901760
    %v656 = vsub.f32 %v654, %v655
    %v657 = vand.u32 %v656, 4294901760
    %658 = vmatpush.msra.mxu0 %v657
    %v659 = vand.u32 %v592, 4294901760
    %660 = vmatmul.f32.gmra.mxu0 %v659
    %v661 = vpop.f32.mrf.mxu0
    %v662 = vadd.f32 %v621, %v661
    %663 = vdwg.mxu0
    %664 = vmatpush.msra.mxu0 0.0
    %665 = vmatpush.msra.mxu0 0.0
    %666 = vmatpush.msra.mxu0 0.0
    %667 = vmatpush.msra.mxu0 0.0
    %668 = vmatpush.msra.mxu0 0.0
    %669 = vmatpush.msra.mxu0 0.0
    %670 = vmatpush.msra.mxu0 0.0
    %671 = vmatpush.msra.mxu0 0.0
    %672 = vmatpush.msra.mxu0 0.0
    %673 = vmatpush.msra.mxu0 0.0
    %674 = vmatpush.msra.mxu0 0.0
    %675 = vmatpush.msra.mxu0 0.0
    %v676 = vand.u32 %v86, 4294901760
    %v677 = vsub.f32 %v86, %v676
    %678 = vmatpush.msra.mxu0 %v677
    %v679 = vand.u32 %v85, 4294901760
    %v680 = vsub.f32 %v85, %v679
    %681 = vmatpush.msra.mxu0 %v680
    %v682 = vand.u32 %v84, 4294901760
    %v683 = vsub.f32 %v84, %v682
    %684 = vmatpush.msra.mxu0 %v683
    %v685 = vand.u32 %v83, 4294901760
    %v686 = vsub.f32 %v83, %v685
    %687 = vmatpush.msra.mxu0 %v686
    %v688 = vand.u32 %v592, 4294901760
    %v689 = vsub.f32 %v592, %v688
    %690 = vmatmul.f32.gmra.mxu0 %v689
    %v691 = vpop.f32.mrf.mxu0
    %v692 = vadd.f32 %v662, %v691
    %693 = vdwg.mxu0
    %694 = vmatpush.msra.mxu0 0.0
    %695 = vmatpush.msra.mxu0 0.0
    %696 = vmatpush.msra.mxu0 0.0
    %697 = vmatpush.msra.mxu0 0.0
    %698 = vmatpush.msra.mxu0 0.0
    %699 = vmatpush.msra.mxu0 0.0
    %700 = vmatpush.msra.mxu0 0.0
    %701 = vmatpush.msra.mxu0 0.0
    %702 = vmatpush.msra.mxu0 0.0
    %703 = vmatpush.msra.mxu0 0.0
    %704 = vmatpush.msra.mxu0 0.0
    %705 = vmatpush.msra.mxu0 0.0
    %v706 = vand.u32 %v86, 4294901760
    %707 = vmatpush.msra.mxu0 %v706
    %v708 = vand.u32 %v85, 4294901760
    %709 = vmatpush.msra.mxu0 %v708
    %v710 = vand.u32 %v84, 4294901760
    %711 = vmatpush.msra.mxu0 %v710
    %v712 = vand.u32 %v83, 4294901760
    %713 = vmatpush.msra.mxu0 %v712
    %v714 = vand.u32 %v592, 4294901760
    %v715 = vsub.f32 %v592, %v714
    %v716 = vand.u32 %v715, 4294901760
    %717 = vmatmul.f32.gmra.mxu0 %v716
    %v718 = vpop.f32.mrf.mxu0
    %v719 = vadd.f32 %v692, %v718
    %720 = vdwg.mxu0
    %721 = vmatpush.msra.mxu0 0.0
    %722 = vmatpush.msra.mxu0 0.0
    %723 = vmatpush.msra.mxu0 0.0
    %724 = vmatpush.msra.mxu0 0.0
    %725 = vmatpush.msra.mxu0 0.0
    %726 = vmatpush.msra.mxu0 0.0
    %727 = vmatpush.msra.mxu0 0.0
    %728 = vmatpush.msra.mxu0 0.0
    %729 = vmatpush.msra.mxu0 0.0
    %730 = vmatpush.msra.mxu0 0.0
    %731 = vmatpush.msra.mxu0 0.0
    %732 = vmatpush.msra.mxu0 0.0
    %v733 = vand.u32 %v86, 4294901760
    %v734 = vsub.f32 %v86, %v733
    %v735 = vand.u32 %v734, 4294901760
    %736 = vmatpush.msra.mxu0 %v735
    %v737 = vand.u32 %v85, 4294901760
    %v738 = vsub.f32 %v85, %v737
    %v739 = vand.u32 %v738, 4294901760
    %740 = vmatpush.msra.mxu0 %v739
    %v741 = vand.u32 %v84, 4294901760
    %v742 = vsub.f32 %v84, %v741
    %v743 = vand.u32 %v742, 4294901760
    %744 = vmatpush.msra.mxu0 %v743
    %v745 = vand.u32 %v83, 4294901760
    %v746 = vsub.f32 %v83, %v745
    %v747 = vand.u32 %v746, 4294901760
    %748 = vmatpush.msra.mxu0 %v747
    %v749 = vand.u32 %v592, 4294901760
    %750 = vmatmul.f32.gmra.mxu0 %v749
    %v751 = vpop.f32.mrf.mxu0
    %v752 = vadd.f32 %v719, %v751
    %753 = vdwg.mxu0
    %754 = vmatpush.msra.mxu0 0.0
    %755 = vmatpush.msra.mxu0 0.0
    %756 = vmatpush.msra.mxu0 0.0
    %757 = vmatpush.msra.mxu0 0.0
    %758 = vmatpush.msra.mxu0 0.0
    %759 = vmatpush.msra.mxu0 0.0
    %760 = vmatpush.msra.mxu0 0.0
    %761 = vmatpush.msra.mxu0 0.0
    %762 = vmatpush.msra.mxu0 0.0
    %763 = vmatpush.msra.mxu0 0.0
    %764 = vmatpush.msra.mxu0 0.0
    %765 = vmatpush.msra.mxu0 0.0
    %v766 = vand.u32 %v86, 4294901760
    %767 = vmatpush.msra.mxu0 %v766
    %v768 = vand.u32 %v85, 4294901760
    %769 = vmatpush.msra.mxu0 %v768
    %v770 = vand.u32 %v84, 4294901760
    %771 = vmatpush.msra.mxu0 %v770
    %v772 = vand.u32 %v83, 4294901760
    %773 = vmatpush.msra.mxu0 %v772
    %v774 = vand.u32 %v592, 4294901760
    %775 = vmatmul.f32.gmra.mxu0 %v774
    %v776 = vpop.f32.mrf.mxu0
    %v777 = vadd.f32 %v752, %v776
    %778 = vdwg.mxu0
    %v779 = vadd.f32 %v588, %v777
    %v780 = vxor.u32 %v779, 2147483648
    %v781 = vmul.f32 %v780, 1.442695
    %v782 = vpow.pop %v781
    %v783 = vadd.f32 %v782, 1.0
    %v784 = vrcp.pop %v783
    %v785 = vmul.f32 %v783, %v784
    %v786 = vsub.f32 1.0, %v785
    %v787 = vmul.f32 %v784, %v786
    %v788 = vadd.f32 %v784, %v787
    %vm789 = vweird.f32 %v783
    %vm790 = vweird.f32 %v784
    %vm791 = vmor %vm789, %vm790
    %v792 = vsel %vm791, %v784, %v788
    %v793 = vand.u32 2147483647, %v783
    %vm794 = vcmp.eq.f32.partialorder %v793, 8.507059e+37
    %v795 = vand.u32 %v783, 2147483648
    %v796 = vor.u32 1.1754944e-38, %v795
    %v797 = vsel %vm794, %v796, %v792
    %v798 = vmul.f32 1.0, %v797
    %v799 = vadd.f32 %v777, %v302
    %801 = vrot.lane.b32.xlu0 %v799, 64
    %v802 = vpop.permute.xlu0 %801
    %v804 = vmul.f32 %v798, %v802
    %806 = vrot.lane.b32.xlu0 %v804, 64
    %v807 = vpop.permute.xlu0 %806
    %v809 = vadd.f32 %v588, %v807
    %v810 = vtanh.pop %v809
    %v811 = vsub.f32 1.0, %v798
    %813 = vrot.lane.b32.xlu0 %v810, 96
    %v814 = vpop.permute.xlu0 %813
    %v816 = vmul.f32 %v811, %v814
    %817 = vrot.lane.b32.xlu0 %v586, 32
    %v818 = vpop.permute.xlu0 %817
    %v820 = vmul.f32 %v798, %v818
    %v821 = vadd.f32 %v816, %v820
    %vm822 = vcmp.gt.f32.partialorder %v590, 0.5
    %824 = vrot.lane.b32.xlu0 %v821, 96
    %v825 = vpop.permute.xlu0 %824
    %v827 = vsel %vm822, %v825, 0.0
    %s828 = scalar_lea.vmem [#allocation2], 8
    %829 = vst.msk [vmem:[%s828] sm:$0xf] %vm330, %v827
    %831 = vrot.lane.b32.xlu0 %v827, 112
    %v832 = vpop.permute.xlu0 %831
    %s834 = scalar_lea.vmem [#allocation3], 20
    %835 = vst.msk [vmem:[%s834] sm:$0xf] %vm330, %v832
    %v836 = vsel %vm822, %v825, %v586
    %s837 = scalar_lea.vmem %s0, 12
    %v838 = vld [vmem:[%s837] sm:$0xf]
    %s839 = scalar_lea.vmem [#allocation4], 12
    %v840 = vld [vmem:[%s839] sm:$0xf]
    %v842 = vsel %vm90, %v836, 0
    %844 = vmatpush.msra.mxu0 0.0
    %845 = vmatpush.msra.mxu0 0.0
    %846 = vmatpush.msra.mxu0 0.0
    %847 = vmatpush.msra.mxu0 0.0
    %848 = vmatpush.msra.mxu0 0.0
    %849 = vmatpush.msra.mxu0 0.0
    %850 = vmatpush.msra.mxu0 0.0
    %851 = vmatpush.msra.mxu0 0.0
    %852 = vmatpush.msra.mxu0 0.0
    %853 = vmatpush.msra.mxu0 0.0
    %854 = vmatpush.msra.mxu0 0.0
    %855 = vmatpush.msra.mxu0 0.0
    %v856 = vand.u32 %v86, 4294901760
    %857 = vmatpush.msra.mxu0 %v856
    %v858 = vand.u32 %v85, 4294901760
    %859 = vmatpush.msra.mxu0 %v858
    %v860 = vand.u32 %v84, 4294901760
    %861 = vmatpush.msra.mxu0 %v860
    %v862 = vand.u32 %v83, 4294901760
    %863 = vmatpush.msra.mxu0 %v862
    %v864 = vand.u32 %v842, 4294901760
    %v865 = vsub.f32 %v842, %v864
    %v866 = vand.u32 %v865, 4294901760
    %v867 = vsub.f32 %v865, %v866
    %v868 = vand.u32 %v867, 4294901760
    %869 = vmatmul.f32.gmra.mxu0 %v868
    %v870 = vpop.f32.mrf.mxu0
    %v871 = vadd.f32 0.0, %v870
    %872 = vdwg.mxu0
    %873 = vmatpush.msra.mxu0 0.0
    %874 = vmatpush.msra.mxu0 0.0
    %875 = vmatpush.msra.mxu0 0.0
    %876 = vmatpush.msra.mxu0 0.0
    %877 = vmatpush.msra.mxu0 0.0
    %878 = vmatpush.msra.mxu0 0.0
    %879 = vmatpush.msra.mxu0 0.0
    %880 = vmatpush.msra.mxu0 0.0
    %881 = vmatpush.msra.mxu0 0.0
    %882 = vmatpush.msra.mxu0 0.0
    %883 = vmatpush.msra.mxu0 0.0
    %884 = vmatpush.msra.mxu0 0.0
    %v885 = vand.u32 %v86, 4294901760
    %v886 = vsub.f32 %v86, %v885
    %v887 = vand.u32 %v886, 4294901760
    %v888 = vsub.f32 %v886, %v887
    %v889 = vand.u32 %v888, 4294901760
    %890 = vmatpush.msra.mxu0 %v889
    %v891 = vand.u32 %v85, 4294901760
    %v892 = vsub.f32 %v85, %v891
    %v893 = vand.u32 %v892, 4294901760
    %v894 = vsub.f32 %v892, %v893
    %v895 = vand.u32 %v894, 4294901760
    %896 = vmatpush.msra.mxu0 %v895
    %v897 = vand.u32 %v84, 4294901760
    %v898 = vsub.f32 %v84, %v897
    %v899 = vand.u32 %v898, 4294901760
    %v900 = vsub.f32 %v898, %v899
    %v901 = vand.u32 %v900, 4294901760
    %902 = vmatpush.msra.mxu0 %v901
    %v903 = vand.u32 %v83, 4294901760
    %v904 = vsub.f32 %v83, %v903
    %v905 = vand.u32 %v904, 4294901760
    %v906 = vsub.f32 %v904, %v905
    %v907 = vand.u32 %v906, 4294901760
    %908 = vmatpush.msra.mxu0 %v907
    %v909 = vand.u32 %v842, 4294901760
    %910 = vmatmul.f32.gmra.mxu0 %v909
    %v911 = vpop.f32.mrf.mxu0
    %v912 = vadd.f32 %v871, %v911
    %913 = vdwg.mxu0
    %914 = vmatpush.msra.mxu0 0.0
    %915 = vmatpush.msra.mxu0 0.0
    %916 = vmatpush.msra.mxu0 0.0
    %917 = vmatpush.msra.mxu0 0.0
    %918 = vmatpush.msra.mxu0 0.0
    %919 = vmatpush.msra.mxu0 0.0
    %920 = vmatpush.msra.mxu0 0.0
    %921 = vmatpush.msra.mxu0 0.0
    %922 = vmatpush.msra.mxu0 0.0
    %923 = vmatpush.msra.mxu0 0.0
    %924 = vmatpush.msra.mxu0 0.0
    %925 = vmatpush.msra.mxu0 0.0
    %v926 = vand.u32 %v86, 4294901760
    %v927 = vsub.f32 %v86, %v926
    %928 = vmatpush.msra.mxu0 %v927
    %v929 = vand.u32 %v85, 4294901760
    %v930 = vsub.f32 %v85, %v929
    %931 = vmatpush.msra.mxu0 %v930
    %v932 = vand.u32 %v84, 4294901760
    %v933 = vsub.f32 %v84, %v932
    %934 = vmatpush.msra.mxu0 %v933
    %v935 = vand.u32 %v83, 4294901760
    %v936 = vsub.f32 %v83, %v935
    %937 = vmatpush.msra.mxu0 %v936
    %v938 = vand.u32 %v842, 4294901760
    %v939 = vsub.f32 %v842, %v938
    %940 = vmatmul.f32.gmra.mxu0 %v939
    %v941 = vpop.f32.mrf.mxu0
    %v942 = vadd.f32 %v912, %v941
    %943 = vdwg.mxu0
    %944 = vmatpush.msra.mxu0 0.0
    %945 = vmatpush.msra.mxu0 0.0
    %946 = vmatpush.msra.mxu0 0.0
    %947 = vmatpush.msra.mxu0 0.0
    %948 = vmatpush.msra.mxu0 0.0
    %949 = vmatpush.msra.mxu0 0.0
    %950 = vmatpush.msra.mxu0 0.0
    %951 = vmatpush.msra.mxu0 0.0
    %952 = vmatpush.msra.mxu0 0.0
    %953 = vmatpush.msra.mxu0 0.0
    %954 = vmatpush.msra.mxu0 0.0
    %955 = vmatpush.msra.mxu0 0.0
    %v956 = vand.u32 %v86, 4294901760
    %957 = vmatpush.msra.mxu0 %v956
    %v958 = vand.u32 %v85, 4294901760
    %959 = vmatpush.msra.mxu0 %v958
    %v960 = vand.u32 %v84, 4294901760
    %961 = vmatpush.msra.mxu0 %v960
    %v962 = vand.u32 %v83, 4294901760
    %963 = vmatpush.msra.mxu0 %v962
    %v964 = vand.u32 %v842, 4294901760
    %v965 = vsub.f32 %v842, %v964
    %v966 = vand.u32 %v965, 4294901760
    %967 = vmatmul.f32.gmra.mxu0 %v966
    %v968 = vpop.f32.mrf.mxu0
    %v969 = vadd.f32 %v942, %v968
    %970 = vdwg.mxu0
    %971 = vmatpush.msra.mxu0 0.0
    %972 = vmatpush.msra.mxu0 0.0
    %973 = vmatpush.msra.mxu0 0.0
    %974 = vmatpush.msra.mxu0 0.0
    %975 = vmatpush.msra.mxu0 0.0
    %976 = vmatpush.msra.mxu0 0.0
    %977 = vmatpush.msra.mxu0 0.0
    %978 = vmatpush.msra.mxu0 0.0
    %979 = vmatpush.msra.mxu0 0.0
    %980 = vmatpush.msra.mxu0 0.0
    %981 = vmatpush.msra.mxu0 0.0
    %982 = vmatpush.msra.mxu0 0.0
    %v983 = vand.u32 %v86, 4294901760
    %v984 = vsub.f32 %v86, %v983
    %v985 = vand.u32 %v984, 4294901760
    %986 = vmatpush.msra.mxu0 %v985
    %v987 = vand.u32 %v85, 4294901760
    %v988 = vsub.f32 %v85, %v987
    %v989 = vand.u32 %v988, 4294901760
    %990 = vmatpush.msra.mxu0 %v989
    %v991 = vand.u32 %v84, 4294901760
    %v992 = vsub.f32 %v84, %v991
    %v993 = vand.u32 %v992, 4294901760
    %994 = vmatpush.msra.mxu0 %v993
    %v995 = vand.u32 %v83, 4294901760
    %v996 = vsub.f32 %v83, %v995
    %v997 = vand.u32 %v996, 4294901760
    %998 = vmatpush.msra.mxu0 %v997
    %v999 = vand.u32 %v842, 4294901760
    %1000 = vmatmul.f32.gmra.mxu0 %v999
    %v1001 = vpop.f32.mrf.mxu0
    %v1002 = vadd.f32 %v969, %v1001
    %1003 = vdwg.mxu0
    %1004 = vmatpush.msra.mxu0 0.0
    %1005 = vmatpush.msra.mxu0 0.0
    %1006 = vmatpush.msra.mxu0 0.0
    %1007 = vmatpush.msra.mxu0 0.0
    %1008 = vmatpush.msra.mxu0 0.0
    %1009 = vmatpush.msra.mxu0 0.0
    %1010 = vmatpush.msra.mxu0 0.0
    %1011 = vmatpush.msra.mxu0 0.0
    %1012 = vmatpush.msra.mxu0 0.0
    %1013 = vmatpush.msra.mxu0 0.0
    %1014 = vmatpush.msra.mxu0 0.0
    %1015 = vmatpush.msra.mxu0 0.0
    %v1016 = vand.u32 %v86, 4294901760
    %1017 = vmatpush.msra.mxu0 %v1016
    %v1018 = vand.u32 %v85, 4294901760
    %1019 = vmatpush.msra.mxu0 %v1018
    %v1020 = vand.u32 %v84, 4294901760
    %1021 = vmatpush.msra.mxu0 %v1020
    %v1022 = vand.u32 %v83, 4294901760
    %1023 = vmatpush.msra.mxu0 %v1022
    %v1024 = vand.u32 %v842, 4294901760
    %1025 = vmatmul.f32.gmra.mxu0 %v1024
    %v1026 = vpop.f32.mrf.mxu0
    %v1027 = vadd.f32 %v1002, %v1026
    %1028 = vdwg.mxu0
    %v1029 = vadd.f32 %v838, %v1027
    %v1030 = vxor.u32 %v1029, 2147483648
    %v1031 = vmul.f32 %v1030, 1.442695
    %v1032 = vpow.pop %v1031
    %v1033 = vadd.f32 %v1032, 1.0
    %v1034 = vrcp.pop %v1033
    %v1035 = vmul.f32 %v1033, %v1034
    %v1036 = vsub.f32 1.0, %v1035
    %v1037 = vmul.f32 %v1034, %v1036
    %v1038 = vadd.f32 %v1034, %v1037
    %vm1039 = vweird.f32 %v1033
    %vm1040 = vweird.f32 %v1034
    %vm1041 = vmor %vm1039, %vm1040
    %v1042 = vsel %vm1041, %v1034, %v1038
    %v1043 = vand.u32 2147483647, %v1033
    %vm1044 = vcmp.eq.f32.partialorder %v1043, 8.507059e+37
    %v1045 = vand.u32 %v1033, 2147483648
    %v1046 = vor.u32 1.1754944e-38, %v1045
    %v1047 = vsel %vm1044, %v1046, %v1042
    %v1048 = vmul.f32 1.0, %v1047
    %v1049 = vadd.f32 %v1027, %v302
    %1051 = vrot.lane.b32.xlu0 %v1049, 64
    %v1052 = vpop.permute.xlu0 %1051
    %v1054 = vmul.f32 %v1048, %v1052
    %1056 = vrot.lane.b32.xlu0 %v1054, 64
    %v1057 = vpop.permute.xlu0 %1056
    %v1059 = vadd.f32 %v838, %v1057
    %v1060 = vtanh.pop %v1059
    %v1061 = vsub.f32 1.0, %v1048
    %1063 = vrot.lane.b32.xlu0 %v1060, 96
    %v1064 = vpop.permute.xlu0 %1063
    %v1066 = vmul.f32 %v1061, %v1064
    %1067 = vrot.lane.b32.xlu0 %v836, 32
    %v1068 = vpop.permute.xlu0 %1067
    %v1070 = vmul.f32 %v1048, %v1068
    %v1071 = vadd.f32 %v1066, %v1070
    %vm1072 = vcmp.gt.f32.partialorder %v840, 0.5
    %1074 = vrot.lane.b32.xlu0 %v1071, 96
    %v1075 = vpop.permute.xlu0 %1074
    %v1077 = vsel %vm1072, %v1075, 0.0
    %s1078 = scalar_lea.vmem [#allocation2], 12
    %1079 = vst.msk [vmem:[%s1078] sm:$0xf] %vm330, %v1077
    %1081 = vrot.lane.b32.xlu0 %v1077, 112
    %v1082 = vpop.permute.xlu0 %1081
    %s1084 = scalar_lea.vmem [#allocation3], 16
    %1085 = vst.msk [vmem:[%s1084] sm:$0xf] %vm330, %v1082
    %v1086 = vsel %vm1072, %v1075, %v836
    %s1087 = scalar_lea.vmem %s0, 16
    %v1088 = vld [vmem:[%s1087] sm:$0xf]
    %s1089 = scalar_lea.vmem [#allocation4], 16
    %v1090 = vld [vmem:[%s1089] sm:$0xf]
    %v1092 = vsel %vm90, %v1086, 0
    %1094 = vmatpush.msra.mxu0 0.0
    %1095 = vmatpush.msra.mxu0 0.0
    %1096 = vmatpush.msra.mxu0 0.0
    %1097 = vmatpush.msra.mxu0 0.0
    %1098 = vmatpush.msra.mxu0 0.0
    %1099 = vmatpush.msra.mxu0 0.0
    %1100 = vmatpush.msra.mxu0 0.0
    %1101 = vmatpush.msra.mxu0 0.0
    %1102 = vmatpush.msra.mxu0 0.0
    %1103 = vmatpush.msra.mxu0 0.0
    %1104 = vmatpush.msra.mxu0 0.0
    %1105 = vmatpush.msra.mxu0 0.0
    %v1106 = vand.u32 %v86, 4294901760
    %1107 = vmatpush.msra.mxu0 %v1106
    %v1108 = vand.u32 %v85, 4294901760
    %1109 = vmatpush.msra.mxu0 %v1108
    %v1110 = vand.u32 %v84, 4294901760
    %1111 = vmatpush.msra.mxu0 %v1110
    %v1112 = vand.u32 %v83, 4294901760
    %1113 = vmatpush.msra.mxu0 %v1112
    %v1114 = vand.u32 %v1092, 4294901760
    %v1115 = vsub.f32 %v1092, %v1114
    %v1116 = vand.u32 %v1115, 4294901760
    %v1117 = vsub.f32 %v1115, %v1116
    %v1118 = vand.u32 %v1117, 4294901760
    %1119 = vmatmul.f32.gmra.mxu0 %v1118
    %v1120 = vpop.f32.mrf.mxu0
    %v1121 = vadd.f32 0.0, %v1120
    %1122 = vdwg.mxu0
    %1123 = vmatpush.msra.mxu0 0.0
    %1124 = vmatpush.msra.mxu0 0.0
    %1125 = vmatpush.msra.mxu0 0.0
    %1126 = vmatpush.msra.mxu0 0.0
    %1127 = vmatpush.msra.mxu0 0.0
    %1128 = vmatpush.msra.mxu0 0.0
    %1129 = vmatpush.msra.mxu0 0.0
    %1130 = vmatpush.msra.mxu0 0.0
    %1131 = vmatpush.msra.mxu0 0.0
    %1132 = vmatpush.msra.mxu0 0.0
    %1133 = vmatpush.msra.mxu0 0.0
    %1134 = vmatpush.msra.mxu0 0.0
    %v1135 = vand.u32 %v86, 4294901760
    %v1136 = vsub.f32 %v86, %v1135
    %v1137 = vand.u32 %v1136, 4294901760
    %v1138 = vsub.f32 %v1136, %v1137
    %v1139 = vand.u32 %v1138, 4294901760
    %1140 = vmatpush.msra.mxu0 %v1139
    %v1141 = vand.u32 %v85, 4294901760
    %v1142 = vsub.f32 %v85, %v1141
    %v1143 = vand.u32 %v1142, 4294901760
    %v1144 = vsub.f32 %v1142, %v1143
    %v1145 = vand.u32 %v1144, 4294901760
    %1146 = vmatpush.msra.mxu0 %v1145
    %v1147 = vand.u32 %v84, 4294901760
    %v1148 = vsub.f32 %v84, %v1147
    %v1149 = vand.u32 %v1148, 4294901760
    %v1150 = vsub.f32 %v1148, %v1149
    %v1151 = vand.u32 %v1150, 4294901760
    %1152 = vmatpush.msra.mxu0 %v1151
    %v1153 = vand.u32 %v83, 4294901760
    %v1154 = vsub.f32 %v83, %v1153
    %v1155 = vand.u32 %v1154, 4294901760
    %v1156 = vsub.f32 %v1154, %v1155
    %v1157 = vand.u32 %v1156, 4294901760
    %1158 = vmatpush.msra.mxu0 %v1157
    %v1159 = vand.u32 %v1092, 4294901760
    %1160 = vmatmul.f32.gmra.mxu0 %v1159
    %v1161 = vpop.f32.mrf.mxu0
    %v1162 = vadd.f32 %v1121, %v1161
    %1163 = vdwg.mxu0
    %1164 = vmatpush.msra.mxu0 0.0
    %1165 = vmatpush.msra.mxu0 0.0
    %1166 = vmatpush.msra.mxu0 0.0
    %1167 = vmatpush.msra.mxu0 0.0
    %1168 = vmatpush.msra.mxu0 0.0
    %1169 = vmatpush.msra.mxu0 0.0
    %1170 = vmatpush.msra.mxu0 0.0
    %1171 = vmatpush.msra.mxu0 0.0
    %1172 = vmatpush.msra.mxu0 0.0
    %1173 = vmatpush.msra.mxu0 0.0
    %1174 = vmatpush.msra.mxu0 0.0
    %1175 = vmatpush.msra.mxu0 0.0
    %v1176 = vand.u32 %v86, 4294901760
    %v1177 = vsub.f32 %v86, %v1176
    %1178 = vmatpush.msra.mxu0 %v1177
    %v1179 = vand.u32 %v85, 4294901760
    %v1180 = vsub.f32 %v85, %v1179
    %1181 = vmatpush.msra.mxu0 %v1180
    %v1182 = vand.u32 %v84, 4294901760
    %v1183 = vsub.f32 %v84, %v1182
    %1184 = vmatpush.msra.mxu0 %v1183
    %v1185 = vand.u32 %v83, 4294901760
    %v1186 = vsub.f32 %v83, %v1185
    %1187 = vmatpush.msra.mxu0 %v1186
    %v1188 = vand.u32 %v1092, 4294901760
    %v1189 = vsub.f32 %v1092, %v1188
    %1190 = vmatmul.f32.gmra.mxu0 %v1189
    %v1191 = vpop.f32.mrf.mxu0
    %v1192 = vadd.f32 %v1162, %v1191
    %1193 = vdwg.mxu0
    %1194 = vmatpush.msra.mxu0 0.0
    %1195 = vmatpush.msra.mxu0 0.0
    %1196 = vmatpush.msra.mxu0 0.0
    %1197 = vmatpush.msra.mxu0 0.0
    %1198 = vmatpush.msra.mxu0 0.0
    %1199 = vmatpush.msra.mxu0 0.0
    %1200 = vmatpush.msra.mxu0 0.0
    %1201 = vmatpush.msra.mxu0 0.0
    %1202 = vmatpush.msra.mxu0 0.0
    %1203 = vmatpush.msra.mxu0 0.0
    %1204 = vmatpush.msra.mxu0 0.0
    %1205 = vmatpush.msra.mxu0 0.0
    %v1206 = vand.u32 %v86, 4294901760
    %1207 = vmatpush.msra.mxu0 %v1206
    %v1208 = vand.u32 %v85, 4294901760
    %1209 = vmatpush.msra.mxu0 %v1208
    %v1210 = vand.u32 %v84, 4294901760
    %1211 = vmatpush.msra.mxu0 %v1210
    %v1212 = vand.u32 %v83, 4294901760
    %1213 = vmatpush.msra.mxu0 %v1212
    %v1214 = vand.u32 %v1092, 4294901760
    %v1215 = vsub.f32 %v1092, %v1214
    %v1216 = vand.u32 %v1215, 4294901760
    %1217 = vmatmul.f32.gmra.mxu0 %v1216
    %v1218 = vpop.f32.mrf.mxu0
    %v1219 = vadd.f32 %v1192, %v1218
    %1220 = vdwg.mxu0
    %1221 = vmatpush.msra.mxu0 0.0
    %1222 = vmatpush.msra.mxu0 0.0
    %1223 = vmatpush.msra.mxu0 0.0
    %1224 = vmatpush.msra.mxu0 0.0
    %1225 = vmatpush.msra.mxu0 0.0
    %1226 = vmatpush.msra.mxu0 0.0
    %1227 = vmatpush.msra.mxu0 0.0
    %1228 = vmatpush.msra.mxu0 0.0
    %1229 = vmatpush.msra.mxu0 0.0
    %1230 = vmatpush.msra.mxu0 0.0
    %1231 = vmatpush.msra.mxu0 0.0
    %1232 = vmatpush.msra.mxu0 0.0
    %v1233 = vand.u32 %v86, 4294901760
    %v1234 = vsub.f32 %v86, %v1233
    %v1235 = vand.u32 %v1234, 4294901760
    %1236 = vmatpush.msra.mxu0 %v1235
    %v1237 = vand.u32 %v85, 4294901760
    %v1238 = vsub.f32 %v85, %v1237
    %v1239 = vand.u32 %v1238, 4294901760
    %1240 = vmatpush.msra.mxu0 %v1239
    %v1241 = vand.u32 %v84, 4294901760
    %v1242 = vsub.f32 %v84, %v1241
    %v1243 = vand.u32 %v1242, 4294901760
    %1244 = vmatpush.msra.mxu0 %v1243
    %v1245 = vand.u32 %v83, 4294901760
    %v1246 = vsub.f32 %v83, %v1245
    %v1247 = vand.u32 %v1246, 4294901760
    %1248 = vmatpush.msra.mxu0 %v1247
    %v1249 = vand.u32 %v1092, 4294901760
    %1250 = vmatmul.f32.gmra.mxu0 %v1249
    %v1251 = vpop.f32.mrf.mxu0
    %v1252 = vadd.f32 %v1219, %v1251
    %1253 = vdwg.mxu0
    %1254 = vmatpush.msra.mxu0 0.0
    %1255 = vmatpush.msra.mxu0 0.0
    %1256 = vmatpush.msra.mxu0 0.0
    %1257 = vmatpush.msra.mxu0 0.0
    %1258 = vmatpush.msra.mxu0 0.0
    %1259 = vmatpush.msra.mxu0 0.0
    %1260 = vmatpush.msra.mxu0 0.0
    %1261 = vmatpush.msra.mxu0 0.0
    %1262 = vmatpush.msra.mxu0 0.0
    %1263 = vmatpush.msra.mxu0 0.0
    %1264 = vmatpush.msra.mxu0 0.0
    %1265 = vmatpush.msra.mxu0 0.0
    %v1266 = vand.u32 %v86, 4294901760
    %1267 = vmatpush.msra.mxu0 %v1266
    %v1268 = vand.u32 %v85, 4294901760
    %1269 = vmatpush.msra.mxu0 %v1268
    %v1270 = vand.u32 %v84, 4294901760
    %1271 = vmatpush.msra.mxu0 %v1270
    %v1272 = vand.u32 %v83, 4294901760
    %1273 = vmatpush.msra.mxu0 %v1272
    %v1274 = vand.u32 %v1092, 4294901760
    %1275 = vmatmul.f32.gmra.mxu0 %v1274
    %v1276 = vpop.f32.mrf.mxu0
    %v1277 = vadd.f32 %v1252, %v1276
    %1278 = vdwg.mxu0
    %v1279 = vadd.f32 %v1088, %v1277
    %v1280 = vxor.u32 %v1279, 2147483648
    %v1281 = vmul.f32 %v1280, 1.442695
    %v1282 = vpow.pop %v1281
    %v1283 = vadd.f32 %v1282, 1.0
    %v1284 = vrcp.pop %v1283
    %v1285 = vmul.f32 %v1283, %v1284
    %v1286 = vsub.f32 1.0, %v1285
    %v1287 = vmul.f32 %v1284, %v1286
    %v1288 = vadd.f32 %v1284, %v1287
    %vm1289 = vweird.f32 %v1283
    %vm1290 = vweird.f32 %v1284
    %vm1291 = vmor %vm1289, %vm1290
    %v1292 = vsel %vm1291, %v1284, %v1288
    %v1293 = vand.u32 2147483647, %v1283
    %vm1294 = vcmp.eq.f32.partialorder %v1293, 8.507059e+37
    %v1295 = vand.u32 %v1283, 2147483648
    %v1296 = vor.u32 1.1754944e-38, %v1295
    %v1297 = vsel %vm1294, %v1296, %v1292
    %v1298 = vmul.f32 1.0, %v1297
    %v1299 = vadd.f32 %v1277, %v302
    %1301 = vrot.lane.b32.xlu0 %v1299, 64
    %v1302 = vpop.permute.xlu0 %1301
    %v1304 = vmul.f32 %v1298, %v1302
    %1306 = vrot.lane.b32.xlu0 %v1304, 64
    %v1307 = vpop.permute.xlu0 %1306
    %v1309 = vadd.f32 %v1088, %v1307
    %v1310 = vtanh.pop %v1309
    %v1311 = vsub.f32 1.0, %v1298
    %1313 = vrot.lane.b32.xlu0 %v1310, 96
    %v1314 = vpop.permute.xlu0 %1313
    %v1316 = vmul.f32 %v1311, %v1314
    %1317 = vrot.lane.b32.xlu0 %v1086, 32
    %v1318 = vpop.permute.xlu0 %1317
    %v1320 = vmul.f32 %v1298, %v1318
    %v1321 = vadd.f32 %v1316, %v1320
    %vm1322 = vcmp.gt.f32.partialorder %v1090, 0.5
    %1324 = vrot.lane.b32.xlu0 %v1321, 96
    %v1325 = vpop.permute.xlu0 %1324
    %v1327 = vsel %vm1322, %v1325, 0.0
    %s1328 = scalar_lea.vmem [#allocation2], 16
    %1329 = vst.msk [vmem:[%s1328] sm:$0xf] %vm330, %v1327
    %1331 = vrot.lane.b32.xlu0 %v1327, 112
    %v1332 = vpop.permute.xlu0 %1331
    %s1334 = scalar_lea.vmem [#allocation3], 12
    %1335 = vst.msk [vmem:[%s1334] sm:$0xf] %vm330, %v1332
    %v1336 = vsel %vm1322, %v1325, %v1086
    %s1337 = scalar_lea.vmem %s0, 20
    %v1338 = vld [vmem:[%s1337] sm:$0xf]
    %s1339 = scalar_lea.vmem [#allocation4], 20
    %v1340 = vld [vmem:[%s1339] sm:$0xf]
    %v1342 = vsel %vm90, %v1336, 0
    %1344 = vmatpush.msra.mxu0 0.0
    %1345 = vmatpush.msra.mxu0 0.0
    %1346 = vmatpush.msra.mxu0 0.0
    %1347 = vmatpush.msra.mxu0 0.0
    %1348 = vmatpush.msra.mxu0 0.0
    %1349 = vmatpush.msra.mxu0 0.0
    %1350 = vmatpush.msra.mxu0 0.0
    %1351 = vmatpush.msra.mxu0 0.0
    %1352 = vmatpush.msra.mxu0 0.0
    %1353 = vmatpush.msra.mxu0 0.0
    %1354 = vmatpush.msra.mxu0 0.0
    %1355 = vmatpush.msra.mxu0 0.0
    %v1356 = vand.u32 %v86, 4294901760
    %1357 = vmatpush.msra.mxu0 %v1356
    %v1358 = vand.u32 %v85, 4294901760
    %1359 = vmatpush.msra.mxu0 %v1358
    %v1360 = vand.u32 %v84, 4294901760
    %1361 = vmatpush.msra.mxu0 %v1360
    %v1362 = vand.u32 %v83, 4294901760
    %1363 = vmatpush.msra.mxu0 %v1362
    %v1364 = vand.u32 %v1342, 4294901760
    %v1365 = vsub.f32 %v1342, %v1364
    %v1366 = vand.u32 %v1365, 4294901760
    %v1367 = vsub.f32 %v1365, %v1366
    %v1368 = vand.u32 %v1367, 4294901760
    %1369 = vmatmul.f32.gmra.mxu0 %v1368
    %v1370 = vpop.f32.mrf.mxu0
    %v1371 = vadd.f32 0.0, %v1370
    %1372 = vdwg.mxu0
    %1373 = vmatpush.msra.mxu0 0.0
    %1374 = vmatpush.msra.mxu0 0.0
    %1375 = vmatpush.msra.mxu0 0.0
    %1376 = vmatpush.msra.mxu0 0.0
    %1377 = vmatpush.msra.mxu0 0.0
    %1378 = vmatpush.msra.mxu0 0.0
    %1379 = vmatpush.msra.mxu0 0.0
    %1380 = vmatpush.msra.mxu0 0.0
    %1381 = vmatpush.msra.mxu0 0.0
    %1382 = vmatpush.msra.mxu0 0.0
    %1383 = vmatpush.msra.mxu0 0.0
    %1384 = vmatpush.msra.mxu0 0.0
    %v1385 = vand.u32 %v86, 4294901760
    %v1386 = vsub.f32 %v86, %v1385
    %v1387 = vand.u32 %v1386, 4294901760
    %v1388 = vsub.f32 %v1386, %v1387
    %v1389 = vand.u32 %v1388, 4294901760
    %1390 = vmatpush.msra.mxu0 %v1389
    %v1391 = vand.u32 %v85, 4294901760
    %v1392 = vsub.f32 %v85, %v1391
    %v1393 = vand.u32 %v1392, 4294901760
    %v1394 = vsub.f32 %v1392, %v1393
    %v1395 = vand.u32 %v1394, 4294901760
    %1396 = vmatpush.msra.mxu0 %v1395
    %v1397 = vand.u32 %v84, 4294901760
    %v1398 = vsub.f32 %v84, %v1397
    %v1399 = vand.u32 %v1398, 4294901760
    %v1400 = vsub.f32 %v1398, %v1399
    %v1401 = vand.u32 %v1400, 4294901760
    %1402 = vmatpush.msra.mxu0 %v1401
    %v1403 = vand.u32 %v83, 4294901760
    %v1404 = vsub.f32 %v83, %v1403
    %v1405 = vand.u32 %v1404, 4294901760
    %v1406 = vsub.f32 %v1404, %v1405
    %v1407 = vand.u32 %v1406, 4294901760
    %1408 = vmatpush.msra.mxu0 %v1407
    %v1409 = vand.u32 %v1342, 4294901760
    %1410 = vmatmul.f32.gmra.mxu0 %v1409
    %v1411 = vpop.f32.mrf.mxu0
    %v1412 = vadd.f32 %v1371, %v1411
    %1413 = vdwg.mxu0
    %1414 = vmatpush.msra.mxu0 0.0
    %1415 = vmatpush.msra.mxu0 0.0
    %1416 = vmatpush.msra.mxu0 0.0
    %1417 = vmatpush.msra.mxu0 0.0
    %1418 = vmatpush.msra.mxu0 0.0
    %1419 = vmatpush.msra.mxu0 0.0
    %1420 = vmatpush.msra.mxu0 0.0
    %1421 = vmatpush.msra.mxu0 0.0
    %1422 = vmatpush.msra.mxu0 0.0
    %1423 = vmatpush.msra.mxu0 0.0
    %1424 = vmatpush.msra.mxu0 0.0
    %1425 = vmatpush.msra.mxu0 0.0
    %v1426 = vand.u32 %v86, 4294901760
    %v1427 = vsub.f32 %v86, %v1426
    %1428 = vmatpush.msra.mxu0 %v1427
    %v1429 = vand.u32 %v85, 4294901760
    %v1430 = vsub.f32 %v85, %v1429
    %1431 = vmatpush.msra.mxu0 %v1430
    %v1432 = vand.u32 %v84, 4294901760
    %v1433 = vsub.f32 %v84, %v1432
    %1434 = vmatpush.msra.mxu0 %v1433
    %v1435 = vand.u32 %v83, 4294901760
    %v1436 = vsub.f32 %v83, %v1435
    %1437 = vmatpush.msra.mxu0 %v1436
    %v1438 = vand.u32 %v1342, 4294901760
    %v1439 = vsub.f32 %v1342, %v1438
    %1440 = vmatmul.f32.gmra.mxu0 %v1439
    %v1441 = vpop.f32.mrf.mxu0
    %v1442 = vadd.f32 %v1412, %v1441
    %1443 = vdwg.mxu0
    %1444 = vmatpush.msra.mxu0 0.0
    %1445 = vmatpush.msra.mxu0 0.0
    %1446 = vmatpush.msra.mxu0 0.0
    %1447 = vmatpush.msra.mxu0 0.0
    %1448 = vmatpush.msra.mxu0 0.0
    %1449 = vmatpush.msra.mxu0 0.0
    %1450 = vmatpush.msra.mxu0 0.0
    %1451 = vmatpush.msra.mxu0 0.0
    %1452 = vmatpush.msra.mxu0 0.0
    %1453 = vmatpush.msra.mxu0 0.0
    %1454 = vmatpush.msra.mxu0 0.0
    %1455 = vmatpush.msra.mxu0 0.0
    %v1456 = vand.u32 %v86, 4294901760
    %1457 = vmatpush.msra.mxu0 %v1456
    %v1458 = vand.u32 %v85, 4294901760
    %1459 = vmatpush.msra.mxu0 %v1458
    %v1460 = vand.u32 %v84, 4294901760
    %1461 = vmatpush.msra.mxu0 %v1460
    %v1462 = vand.u32 %v83, 4294901760
    %1463 = vmatpush.msra.mxu0 %v1462
    %v1464 = vand.u32 %v1342, 4294901760
    %v1465 = vsub.f32 %v1342, %v1464
    %v1466 = vand.u32 %v1465, 4294901760
    %1467 = vmatmul.f32.gmra.mxu0 %v1466
    %v1468 = vpop.f32.mrf.mxu0
    %v1469 = vadd.f32 %v1442, %v1468
    %1470 = vdwg.mxu0
    %1471 = vmatpush.msra.mxu0 0.0
    %1472 = vmatpush.msra.mxu0 0.0
    %1473 = vmatpush.msra.mxu0 0.0
    %1474 = vmatpush.msra.mxu0 0.0
    %1475 = vmatpush.msra.mxu0 0.0
    %1476 = vmatpush.msra.mxu0 0.0
    %1477 = vmatpush.msra.mxu0 0.0
    %1478 = vmatpush.msra.mxu0 0.0
    %1479 = vmatpush.msra.mxu0 0.0
    %1480 = vmatpush.msra.mxu0 0.0
    %1481 = vmatpush.msra.mxu0 0.0
    %1482 = vmatpush.msra.mxu0 0.0
    %v1483 = vand.u32 %v86, 4294901760
    %v1484 = vsub.f32 %v86, %v1483
    %v1485 = vand.u32 %v1484, 4294901760
    %1486 = vmatpush.msra.mxu0 %v1485
    %v1487 = vand.u32 %v85, 4294901760
    %v1488 = vsub.f32 %v85, %v1487
    %v1489 = vand.u32 %v1488, 4294901760
    %1490 = vmatpush.msra.mxu0 %v1489
    %v1491 = vand.u32 %v84, 4294901760
    %v1492 = vsub.f32 %v84, %v1491
    %v1493 = vand.u32 %v1492, 4294901760
    %1494 = vmatpush.msra.mxu0 %v1493
    %v1495 = vand.u32 %v83, 4294901760
    %v1496 = vsub.f32 %v83, %v1495
    %v1497 = vand.u32 %v1496, 4294901760
    %1498 = vmatpush.msra.mxu0 %v1497
    %v1499 = vand.u32 %v1342, 4294901760
    %1500 = vmatmul.f32.gmra.mxu0 %v1499
    %v1501 = vpop.f32.mrf.mxu0
    %v1502 = vadd.f32 %v1469, %v1501
    %1503 = vdwg.mxu0
    %1504 = vmatpush.msra.mxu0 0.0
    %1505 = vmatpush.msra.mxu0 0.0
    %1506 = vmatpush.msra.mxu0 0.0
    %1507 = vmatpush.msra.mxu0 0.0
    %1508 = vmatpush.msra.mxu0 0.0
    %1509 = vmatpush.msra.mxu0 0.0
    %1510 = vmatpush.msra.mxu0 0.0
    %1511 = vmatpush.msra.mxu0 0.0
    %1512 = vmatpush.msra.mxu0 0.0
    %1513 = vmatpush.msra.mxu0 0.0
    %1514 = vmatpush.msra.mxu0 0.0
    %1515 = vmatpush.msra.mxu0 0.0
    %v1516 = vand.u32 %v86, 4294901760
    %1517 = vmatpush.msra.mxu0 %v1516
    %v1518 = vand.u32 %v85, 4294901760
    %1519 = vmatpush.msra.mxu0 %v1518
    %v1520 = vand.u32 %v84, 4294901760
    %1521 = vmatpush.msra.mxu0 %v1520
    %v1522 = vand.u32 %v83, 4294901760
    %1523 = vmatpush.msra.mxu0 %v1522
    %v1524 = vand.u32 %v1342, 4294901760
    %1525 = vmatmul.f32.gmra.mxu0 %v1524
    %v1526 = vpop.f32.mrf.mxu0
    %v1527 = vadd.f32 %v1502, %v1526
    %1528 = vdwg.mxu0
    %v1529 = vadd.f32 %v1338, %v1527
    %v1530 = vxor.u32 %v1529, 2147483648
    %v1531 = vmul.f32 %v1530, 1.442695
    %v1532 = vpow.pop %v1531
    %v1533 = vadd.f32 %v1532, 1.0
    %v1534 = vrcp.pop %v1533
    %v1535 = vmul.f32 %v1533, %v1534
    %v1536 = vsub.f32 1.0, %v1535
    %v1537 = vmul.f32 %v1534, %v1536
    %v1538 = vadd.f32 %v1534, %v1537
    %vm1539 = vweird.f32 %v1533
    %vm1540 = vweird.f32 %v1534
    %vm1541 = vmor %vm1539, %vm1540
    %v1542 = vsel %vm1541, %v1534, %v1538
    %v1543 = vand.u32 2147483647, %v1533
    %vm1544 = vcmp.eq.f32.partialorder %v1543, 8.507059e+37
    %v1545 = vand.u32 %v1533, 2147483648
    %v1546 = vor.u32 1.1754944e-38, %v1545
    %v1547 = vsel %vm1544, %v1546, %v1542
    %v1548 = vmul.f32 1.0, %v1547
    %v1549 = vadd.f32 %v1527, %v302
    %1551 = vrot.lane.b32.xlu0 %v1549, 64
    %v1552 = vpop.permute.xlu0 %1551
    %v1554 = vmul.f32 %v1548, %v1552
    %1556 = vrot.lane.b32.xlu0 %v1554, 64
    %v1557 = vpop.permute.xlu0 %1556
    %v1559 = vadd.f32 %v1338, %v1557
    %v1560 = vtanh.pop %v1559
    %v1561 = vsub.f32 1.0, %v1548
    %1563 = vrot.lane.b32.xlu0 %v1560, 96
    %v1564 = vpop.permute.xlu0 %1563
    %v1566 = vmul.f32 %v1561, %v1564
    %1567 = vrot.lane.b32.xlu0 %v1336, 32
    %v1568 = vpop.permute.xlu0 %1567
    %v1570 = vmul.f32 %v1548, %v1568
    %v1571 = vadd.f32 %v1566, %v1570
    %vm1572 = vcmp.gt.f32.partialorder %v1340, 0.5
    %1574 = vrot.lane.b32.xlu0 %v1571, 96
    %v1575 = vpop.permute.xlu0 %1574
    %v1577 = vsel %vm1572, %v1575, 0.0
    %s1578 = scalar_lea.vmem [#allocation2], 20
    %1579 = vst.msk [vmem:[%s1578] sm:$0xf] %vm330, %v1577
    %1581 = vrot.lane.b32.xlu0 %v1577, 112
    %v1582 = vpop.permute.xlu0 %1581
    %s1584 = scalar_lea.vmem [#allocation3], 8
    %1585 = vst.msk [vmem:[%s1584] sm:$0xf] %vm330, %v1582
    %v1586 = vsel %vm1572, %v1575, %v1336
    %s1587 = scalar_lea.vmem %s0, 24
    %v1588 = vld [vmem:[%s1587] sm:$0xf]
    %s1589 = scalar_lea.vmem [#allocation4], 24
    %v1590 = vld [vmem:[%s1589] sm:$0xf]
    %v1592 = vsel %vm90, %v1586, 0
    %1594 = vmatpush.msra.mxu0 0.0
    %1595 = vmatpush.msra.mxu0 0.0
    %1596 = vmatpush.msra.mxu0 0.0
    %1597 = vmatpush.msra.mxu0 0.0
    %1598 = vmatpush.msra.mxu0 0.0
    %1599 = vmatpush.msra.mxu0 0.0
    %1600 = vmatpush.msra.mxu0 0.0
    %1601 = vmatpush.msra.mxu0 0.0
    %1602 = vmatpush.msra.mxu0 0.0
    %1603 = vmatpush.msra.mxu0 0.0
    %1604 = vmatpush.msra.mxu0 0.0
    %1605 = vmatpush.msra.mxu0 0.0
    %v1606 = vand.u32 %v86, 4294901760
    %1607 = vmatpush.msra.mxu0 %v1606
    %v1608 = vand.u32 %v85, 4294901760
    %1609 = vmatpush.msra.mxu0 %v1608
    %v1610 = vand.u32 %v84, 4294901760
    %1611 = vmatpush.msra.mxu0 %v1610
    %v1612 = vand.u32 %v83, 4294901760
    %1613 = vmatpush.msra.mxu0 %v1612
    %v1614 = vand.u32 %v1592, 4294901760
    %v1615 = vsub.f32 %v1592, %v1614
    %v1616 = vand.u32 %v1615, 4294901760
    %v1617 = vsub.f32 %v1615, %v1616
    %v1618 = vand.u32 %v1617, 4294901760
    %1619 = vmatmul.f32.gmra.mxu0 %v1618
    %v1620 = vpop.f32.mrf.mxu0
    %v1621 = vadd.f32 0.0, %v1620
    %1622 = vdwg.mxu0
    %1623 = vmatpush.msra.mxu0 0.0
    %1624 = vmatpush.msra.mxu0 0.0
    %1625 = vmatpush.msra.mxu0 0.0
    %1626 = vmatpush.msra.mxu0 0.0
    %1627 = vmatpush.msra.mxu0 0.0
    %1628 = vmatpush.msra.mxu0 0.0
    %1629 = vmatpush.msra.mxu0 0.0
    %1630 = vmatpush.msra.mxu0 0.0
    %1631 = vmatpush.msra.mxu0 0.0
    %1632 = vmatpush.msra.mxu0 0.0
    %1633 = vmatpush.msra.mxu0 0.0
    %1634 = vmatpush.msra.mxu0 0.0
    %v1635 = vand.u32 %v86, 4294901760
    %v1636 = vsub.f32 %v86, %v1635
    %v1637 = vand.u32 %v1636, 4294901760
    %v1638 = vsub.f32 %v1636, %v1637
    %v1639 = vand.u32 %v1638, 4294901760
    %1640 = vmatpush.msra.mxu0 %v1639
    %v1641 = vand.u32 %v85, 4294901760
    %v1642 = vsub.f32 %v85, %v1641
    %v1643 = vand.u32 %v1642, 4294901760
    %v1644 = vsub.f32 %v1642, %v1643
    %v1645 = vand.u32 %v1644, 4294901760
    %1646 = vmatpush.msra.mxu0 %v1645
    %v1647 = vand.u32 %v84, 4294901760
    %v1648 = vsub.f32 %v84, %v1647
    %v1649 = vand.u32 %v1648, 4294901760
    %v1650 = vsub.f32 %v1648, %v1649
    %v1651 = vand.u32 %v1650, 4294901760
    %1652 = vmatpush.msra.mxu0 %v1651
    %v1653 = vand.u32 %v83, 4294901760
    %v1654 = vsub.f32 %v83, %v1653
    %v1655 = vand.u32 %v1654, 4294901760
    %v1656 = vsub.f32 %v1654, %v1655
    %v1657 = vand.u32 %v1656, 4294901760
    %1658 = vmatpush.msra.mxu0 %v1657
    %v1659 = vand.u32 %v1592, 4294901760
    %1660 = vmatmul.f32.gmra.mxu0 %v1659
    %v1661 = vpop.f32.mrf.mxu0
    %v1662 = vadd.f32 %v1621, %v1661
    %1663 = vdwg.mxu0
    %1664 = vmatpush.msra.mxu0 0.0
    %1665 = vmatpush.msra.mxu0 0.0
    %1666 = vmatpush.msra.mxu0 0.0
    %1667 = vmatpush.msra.mxu0 0.0
    %1668 = vmatpush.msra.mxu0 0.0
    %1669 = vmatpush.msra.mxu0 0.0
    %1670 = vmatpush.msra.mxu0 0.0
    %1671 = vmatpush.msra.mxu0 0.0
    %1672 = vmatpush.msra.mxu0 0.0
    %1673 = vmatpush.msra.mxu0 0.0
    %1674 = vmatpush.msra.mxu0 0.0
    %1675 = vmatpush.msra.mxu0 0.0
    %v1676 = vand.u32 %v86, 4294901760
    %v1677 = vsub.f32 %v86, %v1676
    %1678 = vmatpush.msra.mxu0 %v1677
    %v1679 = vand.u32 %v85, 4294901760
    %v1680 = vsub.f32 %v85, %v1679
    %1681 = vmatpush.msra.mxu0 %v1680
    %v1682 = vand.u32 %v84, 4294901760
    %v1683 = vsub.f32 %v84, %v1682
    %1684 = vmatpush.msra.mxu0 %v1683
    %v1685 = vand.u32 %v83, 4294901760
    %v1686 = vsub.f32 %v83, %v1685
    %1687 = vmatpush.msra.mxu0 %v1686
    %v1688 = vand.u32 %v1592, 4294901760
    %v1689 = vsub.f32 %v1592, %v1688
    %1690 = vmatmul.f32.gmra.mxu0 %v1689
    %v1691 = vpop.f32.mrf.mxu0
    %v1692 = vadd.f32 %v1662, %v1691
    %1693 = vdwg.mxu0
    %1694 = vmatpush.msra.mxu0 0.0
    %1695 = vmatpush.msra.mxu0 0.0
    %1696 = vmatpush.msra.mxu0 0.0
    %1697 = vmatpush.msra.mxu0 0.0
    %1698 = vmatpush.msra.mxu0 0.0
    %1699 = vmatpush.msra.mxu0 0.0
    %1700 = vmatpush.msra.mxu0 0.0
    %1701 = vmatpush.msra.mxu0 0.0
    %1702 = vmatpush.msra.mxu0 0.0
    %1703 = vmatpush.msra.mxu0 0.0
    %1704 = vmatpush.msra.mxu0 0.0
    %1705 = vmatpush.msra.mxu0 0.0
    %v1706 = vand.u32 %v86, 4294901760
    %1707 = vmatpush.msra.mxu0 %v1706
    %v1708 = vand.u32 %v85, 4294901760
    %1709 = vmatpush.msra.mxu0 %v1708
    %v1710 = vand.u32 %v84, 4294901760
    %1711 = vmatpush.msra.mxu0 %v1710
    %v1712 = vand.u32 %v83, 4294901760
    %1713 = vmatpush.msra.mxu0 %v1712
    %v1714 = vand.u32 %v1592, 4294901760
    %v1715 = vsub.f32 %v1592, %v1714
    %v1716 = vand.u32 %v1715, 4294901760
    %1717 = vmatmul.f32.gmra.mxu0 %v1716
    %v1718 = vpop.f32.mrf.mxu0
    %v1719 = vadd.f32 %v1692, %v1718
    %1720 = vdwg.mxu0
    %1721 = vmatpush.msra.mxu0 0.0
    %1722 = vmatpush.msra.mxu0 0.0
    %1723 = vmatpush.msra.mxu0 0.0
    %1724 = vmatpush.msra.mxu0 0.0
    %1725 = vmatpush.msra.mxu0 0.0
    %1726 = vmatpush.msra.mxu0 0.0
    %1727 = vmatpush.msra.mxu0 0.0
    %1728 = vmatpush.msra.mxu0 0.0
    %1729 = vmatpush.msra.mxu0 0.0
    %1730 = vmatpush.msra.mxu0 0.0
    %1731 = vmatpush.msra.mxu0 0.0
    %1732 = vmatpush.msra.mxu0 0.0
    %v1733 = vand.u32 %v86, 4294901760
    %v1734 = vsub.f32 %v86, %v1733
    %v1735 = vand.u32 %v1734, 4294901760
    %1736 = vmatpush.msra.mxu0 %v1735
    %v1737 = vand.u32 %v85, 4294901760
    %v1738 = vsub.f32 %v85, %v1737
    %v1739 = vand.u32 %v1738, 4294901760
    %1740 = vmatpush.msra.mxu0 %v1739
    %v1741 = vand.u32 %v84, 4294901760
    %v1742 = vsub.f32 %v84, %v1741
    %v1743 = vand.u32 %v1742, 4294901760
    %1744 = vmatpush.msra.mxu0 %v1743
    %v1745 = vand.u32 %v83, 4294901760
    %v1746 = vsub.f32 %v83, %v1745
    %v1747 = vand.u32 %v1746, 4294901760
    %1748 = vmatpush.msra.mxu0 %v1747
    %v1749 = vand.u32 %v1592, 4294901760
    %1750 = vmatmul.f32.gmra.mxu0 %v1749
    %v1751 = vpop.f32.mrf.mxu0
    %v1752 = vadd.f32 %v1719, %v1751
    %1753 = vdwg.mxu0
    %1754 = vmatpush.msra.mxu0 0.0
    %1755 = vmatpush.msra.mxu0 0.0
    %1756 = vmatpush.msra.mxu0 0.0
    %1757 = vmatpush.msra.mxu0 0.0
    %1758 = vmatpush.msra.mxu0 0.0
    %1759 = vmatpush.msra.mxu0 0.0
    %1760 = vmatpush.msra.mxu0 0.0
    %1761 = vmatpush.msra.mxu0 0.0
    %1762 = vmatpush.msra.mxu0 0.0
    %1763 = vmatpush.msra.mxu0 0.0
    %1764 = vmatpush.msra.mxu0 0.0
    %1765 = vmatpush.msra.mxu0 0.0
    %v1766 = vand.u32 %v86, 4294901760
    %1767 = vmatpush.msra.mxu0 %v1766
    %v1768 = vand.u32 %v85, 4294901760
    %1769 = vmatpush.msra.mxu0 %v1768
    %v1770 = vand.u32 %v84, 4294901760
    %1771 = vmatpush.msra.mxu0 %v1770
    %v1772 = vand.u32 %v83, 4294901760
    %1773 = vmatpush.msra.mxu0 %v1772
    %v1774 = vand.u32 %v1592, 4294901760
    %1775 = vmatmul.f32.gmra.mxu0 %v1774
    %v1776 = vpop.f32.mrf.mxu0
    %v1777 = vadd.f32 %v1752, %v1776
    %1778 = vdwg.mxu0
    %v1779 = vadd.f32 %v1588, %v1777
    %v1780 = vxor.u32 %v1779, 2147483648
    %v1781 = vmul.f32 %v1780, 1.442695
    %v1782 = vpow.pop %v1781
    %v1783 = vadd.f32 %v1782, 1.0
    %v1784 = vrcp.pop %v1783
    %v1785 = vmul.f32 %v1783, %v1784
    %v1786 = vsub.f32 1.0, %v1785
    %v1787 = vmul.f32 %v1784, %v1786
    %v1788 = vadd.f32 %v1784, %v1787
    %vm1789 = vweird.f32 %v1783
    %vm1790 = vweird.f32 %v1784
    %vm1791 = vmor %vm1789, %vm1790
    %v1792 = vsel %vm1791, %v1784, %v1788
    %v1793 = vand.u32 2147483647, %v1783
    %vm1794 = vcmp.eq.f32.partialorder %v1793, 8.507059e+37
    %v1795 = vand.u32 %v1783, 2147483648
    %v1796 = vor.u32 1.1754944e-38, %v1795
    %v1797 = vsel %vm1794, %v1796, %v1792
    %v1798 = vmul.f32 1.0, %v1797
    %v1799 = vadd.f32 %v1777, %v302
    %1801 = vrot.lane.b32.xlu0 %v1799, 64
    %v1802 = vpop.permute.xlu0 %1801
    %v1804 = vmul.f32 %v1798, %v1802
    %1806 = vrot.lane.b32.xlu0 %v1804, 64
    %v1807 = vpop.permute.xlu0 %1806
    %v1809 = vadd.f32 %v1588, %v1807
    %v1810 = vtanh.pop %v1809
    %v1811 = vsub.f32 1.0, %v1798
    %1813 = vrot.lane.b32.xlu0 %v1810, 96
    %v1814 = vpop.permute.xlu0 %1813
    %v1816 = vmul.f32 %v1811, %v1814
    %1817 = vrot.lane.b32.xlu0 %v1586, 32
    %v1818 = vpop.permute.xlu0 %1817
    %v1820 = vmul.f32 %v1798, %v1818
    %v1821 = vadd.f32 %v1816, %v1820
    %vm1822 = vcmp.gt.f32.partialorder %v1590, 0.5
    %1824 = vrot.lane.b32.xlu0 %v1821, 96
    %v1825 = vpop.permute.xlu0 %1824
    %v1827 = vsel %vm1822, %v1825, 0.0
    %s1828 = scalar_lea.vmem [#allocation2], 24
    %1829 = vst.msk [vmem:[%s1828] sm:$0xf] %vm330, %v1827
    %1831 = vrot.lane.b32.xlu0 %v1827, 112
    %v1832 = vpop.permute.xlu0 %1831
    %s1834 = scalar_lea.vmem [#allocation3], 4
    %1835 = vst.msk [vmem:[%s1834] sm:$0xf] %vm330, %v1832
    %v1836 = vsel %vm1822, %v1825, %v1586
    %s1837 = scalar_lea.vmem %s0, 28
    %v1838 = vld [vmem:[%s1837] sm:$0xf]
    %s1839 = scalar_lea.vmem [#allocation4], 28
    %v1840 = vld [vmem:[%s1839] sm:$0xf]
    %v1842 = vsel %vm90, %v1836, 0
    %1844 = vmatpush.msra.mxu0 0.0
    %1845 = vmatpush.msra.mxu0 0.0
    %1846 = vmatpush.msra.mxu0 0.0
    %1847 = vmatpush.msra.mxu0 0.0
    %1848 = vmatpush.msra.mxu0 0.0
    %1849 = vmatpush.msra.mxu0 0.0
    %1850 = vmatpush.msra.mxu0 0.0
    %1851 = vmatpush.msra.mxu0 0.0
    %1852 = vmatpush.msra.mxu0 0.0
    %1853 = vmatpush.msra.mxu0 0.0
    %1854 = vmatpush.msra.mxu0 0.0
    %1855 = vmatpush.msra.mxu0 0.0
    %v1856 = vand.u32 %v86, 4294901760
    %1857 = vmatpush.msra.mxu0 %v1856
    %v1858 = vand.u32 %v85, 4294901760
    %1859 = vmatpush.msra.mxu0 %v1858
    %v1860 = vand.u32 %v84, 4294901760
    %1861 = vmatpush.msra.mxu0 %v1860
    %v1862 = vand.u32 %v83, 4294901760
    %1863 = vmatpush.msra.mxu0 %v1862
    %v1864 = vand.u32 %v1842, 4294901760
    %v1865 = vsub.f32 %v1842, %v1864
    %v1866 = vand.u32 %v1865, 4294901760
    %v1867 = vsub.f32 %v1865, %v1866
    %v1868 = vand.u32 %v1867, 4294901760
    %1869 = vmatmul.f32.gmra.mxu0 %v1868
    %v1870 = vpop.f32.mrf.mxu0
    %v1871 = vadd.f32 0.0, %v1870
    %1872 = vdwg.mxu0
    %1873 = vmatpush.msra.mxu0 0.0
    %1874 = vmatpush.msra.mxu0 0.0
    %1875 = vmatpush.msra.mxu0 0.0
    %1876 = vmatpush.msra.mxu0 0.0
    %1877 = vmatpush.msra.mxu0 0.0
    %1878 = vmatpush.msra.mxu0 0.0
    %1879 = vmatpush.msra.mxu0 0.0
    %1880 = vmatpush.msra.mxu0 0.0
    %1881 = vmatpush.msra.mxu0 0.0
    %1882 = vmatpush.msra.mxu0 0.0
    %1883 = vmatpush.msra.mxu0 0.0
    %1884 = vmatpush.msra.mxu0 0.0
    %v1885 = vand.u32 %v86, 4294901760
    %v1886 = vsub.f32 %v86, %v1885
    %v1887 = vand.u32 %v1886, 4294901760
    %v1888 = vsub.f32 %v1886, %v1887
    %v1889 = vand.u32 %v1888, 4294901760
    %1890 = vmatpush.msra.mxu0 %v1889
    %v1891 = vand.u32 %v85, 4294901760
    %v1892 = vsub.f32 %v85, %v1891
    %v1893 = vand.u32 %v1892, 4294901760
    %v1894 = vsub.f32 %v1892, %v1893
    %v1895 = vand.u32 %v1894, 4294901760
    %1896 = vmatpush.msra.mxu0 %v1895
    %v1897 = vand.u32 %v84, 4294901760
    %v1898 = vsub.f32 %v84, %v1897
    %v1899 = vand.u32 %v1898, 4294901760
    %v1900 = vsub.f32 %v1898, %v1899
    %v1901 = vand.u32 %v1900, 4294901760
    %1902 = vmatpush.msra.mxu0 %v1901
    %v1903 = vand.u32 %v83, 4294901760
    %v1904 = vsub.f32 %v83, %v1903
    %v1905 = vand.u32 %v1904, 4294901760
    %v1906 = vsub.f32 %v1904, %v1905
    %v1907 = vand.u32 %v1906, 4294901760
    %1908 = vmatpush.msra.mxu0 %v1907
    %v1909 = vand.u32 %v1842, 4294901760
    %1910 = vmatmul.f32.gmra.mxu0 %v1909
    %v1911 = vpop.f32.mrf.mxu0
    %v1912 = vadd.f32 %v1871, %v1911
    %1913 = vdwg.mxu0
    %1914 = vmatpush.msra.mxu0 0.0
    %1915 = vmatpush.msra.mxu0 0.0
    %1916 = vmatpush.msra.mxu0 0.0
    %1917 = vmatpush.msra.mxu0 0.0
    %1918 = vmatpush.msra.mxu0 0.0
    %1919 = vmatpush.msra.mxu0 0.0
    %1920 = vmatpush.msra.mxu0 0.0
    %1921 = vmatpush.msra.mxu0 0.0
    %1922 = vmatpush.msra.mxu0 0.0
    %1923 = vmatpush.msra.mxu0 0.0
    %1924 = vmatpush.msra.mxu0 0.0
    %1925 = vmatpush.msra.mxu0 0.0
    %v1926 = vand.u32 %v86, 4294901760
    %v1927 = vsub.f32 %v86, %v1926
    %1928 = vmatpush.msra.mxu0 %v1927
    %v1929 = vand.u32 %v85, 4294901760
    %v1930 = vsub.f32 %v85, %v1929
    %1931 = vmatpush.msra.mxu0 %v1930
    %v1932 = vand.u32 %v84, 4294901760
    %v1933 = vsub.f32 %v84, %v1932
    %1934 = vmatpush.msra.mxu0 %v1933
    %v1935 = vand.u32 %v83, 4294901760
    %v1936 = vsub.f32 %v83, %v1935
    %1937 = vmatpush.msra.mxu0 %v1936
    %v1938 = vand.u32 %v1842, 4294901760
    %v1939 = vsub.f32 %v1842, %v1938
    %1940 = vmatmul.f32.gmra.mxu0 %v1939
    %v1941 = vpop.f32.mrf.mxu0
    %v1942 = vadd.f32 %v1912, %v1941
    %1943 = vdwg.mxu0
    %1944 = vmatpush.msra.mxu0 0.0
    %1945 = vmatpush.msra.mxu0 0.0
    %1946 = vmatpush.msra.mxu0 0.0
    %1947 = vmatpush.msra.mxu0 0.0
    %1948 = vmatpush.msra.mxu0 0.0
    %1949 = vmatpush.msra.mxu0 0.0
    %1950 = vmatpush.msra.mxu0 0.0
    %1951 = vmatpush.msra.mxu0 0.0
    %1952 = vmatpush.msra.mxu0 0.0
    %1953 = vmatpush.msra.mxu0 0.0
    %1954 = vmatpush.msra.mxu0 0.0
    %1955 = vmatpush.msra.mxu0 0.0
    %v1956 = vand.u32 %v86, 4294901760
    %1957 = vmatpush.msra.mxu0 %v1956
    %v1958 = vand.u32 %v85, 4294901760
    %1959 = vmatpush.msra.mxu0 %v1958
    %v1960 = vand.u32 %v84, 4294901760
    %1961 = vmatpush.msra.mxu0 %v1960
    %v1962 = vand.u32 %v83, 4294901760
    %1963 = vmatpush.msra.mxu0 %v1962
    %v1964 = vand.u32 %v1842, 4294901760
    %v1965 = vsub.f32 %v1842, %v1964
    %v1966 = vand.u32 %v1965, 4294901760
    %1967 = vmatmul.f32.gmra.mxu0 %v1966
    %v1968 = vpop.f32.mrf.mxu0
    %v1969 = vadd.f32 %v1942, %v1968
    %1970 = vdwg.mxu0
    %1971 = vmatpush.msra.mxu0 0.0
    %1972 = vmatpush.msra.mxu0 0.0
    %1973 = vmatpush.msra.mxu0 0.0
    %1974 = vmatpush.msra.mxu0 0.0
    %1975 = vmatpush.msra.mxu0 0.0
    %1976 = vmatpush.msra.mxu0 0.0
    %1977 = vmatpush.msra.mxu0 0.0
    %1978 = vmatpush.msra.mxu0 0.0
    %1979 = vmatpush.msra.mxu0 0.0
    %1980 = vmatpush.msra.mxu0 0.0
    %1981 = vmatpush.msra.mxu0 0.0
    %1982 = vmatpush.msra.mxu0 0.0
    %v1983 = vand.u32 %v86, 4294901760
    %v1984 = vsub.f32 %v86, %v1983
    %v1985 = vand.u32 %v1984, 4294901760
    %1986 = vmatpush.msra.mxu0 %v1985
    %v1987 = vand.u32 %v85, 4294901760
    %v1988 = vsub.f32 %v85, %v1987
    %v1989 = vand.u32 %v1988, 4294901760
    %1990 = vmatpush.msra.mxu0 %v1989
    %v1991 = vand.u32 %v84, 4294901760
    %v1992 = vsub.f32 %v84, %v1991
    %v1993 = vand.u32 %v1992, 4294901760
    %1994 = vmatpush.msra.mxu0 %v1993
    %v1995 = vand.u32 %v83, 4294901760
    %v1996 = vsub.f32 %v83, %v1995
    %v1997 = vand.u32 %v1996, 4294901760
    %1998 = vmatpush.msra.mxu0 %v1997
    %v1999 = vand.u32 %v1842, 4294901760
    %2000 = vmatmul.f32.gmra.mxu0 %v1999
    %v2001 = vpop.f32.mrf.mxu0
    %v2002 = vadd.f32 %v1969, %v2001
    %2003 = vdwg.mxu0
    %2004 = vmatpush.msra.mxu0 0.0
    %2005 = vmatpush.msra.mxu0 0.0
    %2006 = vmatpush.msra.mxu0 0.0
    %2007 = vmatpush.msra.mxu0 0.0
    %2008 = vmatpush.msra.mxu0 0.0
    %2009 = vmatpush.msra.mxu0 0.0
    %2010 = vmatpush.msra.mxu0 0.0
    %2011 = vmatpush.msra.mxu0 0.0
    %2012 = vmatpush.msra.mxu0 0.0
    %2013 = vmatpush.msra.mxu0 0.0
    %2014 = vmatpush.msra.mxu0 0.0
    %2015 = vmatpush.msra.mxu0 0.0
    %v2016 = vand.u32 %v86, 4294901760
    %2017 = vmatpush.msra.mxu0 %v2016
    %v2018 = vand.u32 %v85, 4294901760
    %2019 = vmatpush.msra.mxu0 %v2018
    %v2020 = vand.u32 %v84, 4294901760
    %2021 = vmatpush.msra.mxu0 %v2020
    %v2022 = vand.u32 %v83, 4294901760
    %2023 = vmatpush.msra.mxu0 %v2022
    %v2024 = vand.u32 %v1842, 4294901760
    %2025 = vmatmul.f32.gmra.mxu0 %v2024
    %v2026 = vpop.f32.mrf.mxu0
    %v2027 = vadd.f32 %v2002, %v2026
    %2028 = vdwg.mxu0
    %v2029 = vadd.f32 %v1838, %v2027
    %v2030 = vxor.u32 %v2029, 2147483648
    %v2031 = vmul.f32 %v2030, 1.442695
    %v2032 = vpow.pop %v2031
    %v2033 = vadd.f32 %v2032, 1.0
    %v2034 = vrcp.pop %v2033
    %v2035 = vmul.f32 %v2033, %v2034
    %v2036 = vsub.f32 1.0, %v2035
    %v2037 = vmul.f32 %v2034, %v2036
    %v2038 = vadd.f32 %v2034, %v2037
    %vm2039 = vweird.f32 %v2033
    %vm2040 = vweird.f32 %v2034
    %vm2041 = vmor %vm2039, %vm2040
    %v2042 = vsel %vm2041, %v2034, %v2038
    %v2043 = vand.u32 2147483647, %v2033
    %vm2044 = vcmp.eq.f32.partialorder %v2043, 8.507059e+37
    %v2045 = vand.u32 %v2033, 2147483648
    %v2046 = vor.u32 1.1754944e-38, %v2045
    %v2047 = vsel %vm2044, %v2046, %v2042
    %v2048 = vmul.f32 1.0, %v2047
    %v2049 = vadd.f32 %v2027, %v302
    %2051 = vrot.lane.b32.xlu0 %v2049, 64
    %v2052 = vpop.permute.xlu0 %2051
    %v2054 = vmul.f32 %v2048, %v2052
    %2056 = vrot.lane.b32.xlu0 %v2054, 64
    %v2057 = vpop.permute.xlu0 %2056
    %v2059 = vadd.f32 %v1838, %v2057
    %v2060 = vtanh.pop %v2059
    %v2061 = vsub.f32 1.0, %v2048
    %2063 = vrot.lane.b32.xlu0 %v2060, 96
    %v2064 = vpop.permute.xlu0 %2063
    %v2066 = vmul.f32 %v2061, %v2064
    %2067 = vrot.lane.b32.xlu0 %v1836, 32
    %v2068 = vpop.permute.xlu0 %2067
    %v2070 = vmul.f32 %v2048, %v2068
    %v2071 = vadd.f32 %v2066, %v2070
    %vm2072 = vcmp.gt.f32.partialorder %v1840, 0.5
    %2074 = vrot.lane.b32.xlu0 %v2071, 96
    %v2075 = vpop.permute.xlu0 %2074
    %v2077 = vsel %vm2072, %v2075, 0.0
    %s2078 = scalar_lea.vmem [#allocation2], 28
    %2079 = vst.msk [vmem:[%s2078] sm:$0xf] %vm330, %v2077
    %2081 = vrot.lane.b32.xlu0 %v2077, 112
    %v2082 = vpop.permute.xlu0 %2081
    %2084 = vst.msk [vmem:[#allocation3] sm:$0xf] %vm330, %v2082
    %v2085 = vsel %vm2072, %v2075, %v1836
    %v2086 = vld [vmem:[%s4] sm:$0xff]
    %v2087 = vld [vmem:[%s4 + $0x8] sm:$0xff]
    %v2088 = vld [vmem:[#allocation9] sm:$0xff]
    %v2089 = vld [vmem:[#allocation9 + $0x8] sm:$0xff]
    %v2090 = vld [vmem:[#allocation2] sm:$0xf]
    %v2091 = vld [vmem:[#allocation2 + $0x4] sm:$0xf]
    %v2092 = vld [vmem:[#allocation2 + $0x8] sm:$0xf]
    %v2093 = vld [vmem:[#allocation2 + $0xc] sm:$0xf]
    %v2094 = vld [vmem:[#allocation2 + $0x10] sm:$0xf]
    %v2095 = vld [vmem:[#allocation2 + $0x14] sm:$0xf]
    %v2096 = vld [vmem:[#allocation2 + $0x18] sm:$0xf]
    %v2097 = vld [vmem:[#allocation2 + $0x1c] sm:$0xf]
    %v2098 = vld [vmem:[#allocation3] sm:$0xf]
    %v2099 = vld [vmem:[#allocation3 + $0x4] sm:$0xf]
    %v2100 = vld [vmem:[#allocation3 + $0x8] sm:$0xf]
    %v2101 = vld [vmem:[#allocation3 + $0xc] sm:$0xf]
    %v2102 = vld [vmem:[#allocation3 + $0x10] sm:$0xf]
    %v2103 = vld [vmem:[#allocation3 + $0x14] sm:$0xf]
    %v2104 = vld [vmem:[#allocation3 + $0x18] sm:$0xf]
    %v2105 = vld [vmem:[#allocation3 + $0x1c] sm:$0xf]
    %vm2106 = vcmask 130048
    %v2108 = vsel %vm2106, %v2098, 0
    %2110 = vmatpush.msra.mxu0 0.0
    %2111 = vmatpush.msra.mxu0 0.0
    %2112 = vmatpush.msra.mxu0 0.0
    %2113 = vmatpush.msra.mxu0 0.0
    %2114 = vmatpush.msra.mxu0 0.0
    %2115 = vmatpush.msra.mxu0 0.0
    %2116 = vmatpush.msra.mxu0 0.0
    %2117 = vmatpush.msra.mxu0 0.0
    %2118 = vmatpush.msra.mxu0 0.0
    %2119 = vmatpush.msra.mxu0 0.0
    %2120 = vmatpush.msra.mxu0 0.0
    %2121 = vmatpush.msra.mxu0 0.0
    %2122 = vmatpush.msra.mxu0 0.0
    %2123 = vmatpush.msra.mxu0 0.0
    %v2124 = vand.u32 %v2089, 4294901760
    %2125 = vmatpush.msra.mxu0 %v2124
    %v2126 = vand.u32 %v2088, 4294901760
    %2127 = vmatpush.msra.mxu0 %v2126
    %v2128 = vand.u32 %v2108, 4294901760
    %v2129 = vsub.f32 %v2108, %v2128
    %v2130 = vand.u32 %v2129, 4294901760
    %v2131 = vsub.f32 %v2129, %v2130
    %v2132 = vand.u32 %v2131, 4294901760
    %2133 = vmatmul.f32.gmra.mxu0 %v2132
    %v2134 = vpop.f32.mrf.mxu0
    %v2135 = vadd.f32 0.0, %v2134
    %2136 = vdwg.mxu0
    %2137 = vmatpush.msra.mxu0 0.0
    %2138 = vmatpush.msra.mxu0 0.0
    %2139 = vmatpush.msra.mxu0 0.0
    %2140 = vmatpush.msra.mxu0 0.0
    %2141 = vmatpush.msra.mxu0 0.0
    %2142 = vmatpush.msra.mxu0 0.0
    %2143 = vmatpush.msra.mxu0 0.0
    %2144 = vmatpush.msra.mxu0 0.0
    %2145 = vmatpush.msra.mxu0 0.0
    %2146 = vmatpush.msra.mxu0 0.0
    %2147 = vmatpush.msra.mxu0 0.0
    %2148 = vmatpush.msra.mxu0 0.0
    %2149 = vmatpush.msra.mxu0 0.0
    %2150 = vmatpush.msra.mxu0 0.0
    %v2151 = vand.u32 %v2089, 4294901760
    %v2152 = vsub.f32 %v2089, %v2151
    %v2153 = vand.u32 %v2152, 4294901760
    %v2154 = vsub.f32 %v2152, %v2153
    %v2155 = vand.u32 %v2154, 4294901760
    %2156 = vmatpush.msra.mxu0 %v2155
    %v2157 = vand.u32 %v2088, 4294901760
    %v2158 = vsub.f32 %v2088, %v2157
    %v2159 = vand.u32 %v2158, 4294901760
    %v2160 = vsub.f32 %v2158, %v2159
    %v2161 = vand.u32 %v2160, 4294901760
    %2162 = vmatpush.msra.mxu0 %v2161
    %v2163 = vand.u32 %v2108, 4294901760
    %2164 = vmatmul.f32.gmra.mxu0 %v2163
    %v2165 = vpop.f32.mrf.mxu0
    %v2166 = vadd.f32 %v2135, %v2165
    %2167 = vdwg.mxu0
    %2168 = vmatpush.msra.mxu0 0.0
    %2169 = vmatpush.msra.mxu0 0.0
    %2170 = vmatpush.msra.mxu0 0.0
    %2171 = vmatpush.msra.mxu0 0.0
    %2172 = vmatpush.msra.mxu0 0.0
    %2173 = vmatpush.msra.mxu0 0.0
    %2174 = vmatpush.msra.mxu0 0.0
    %2175 = vmatpush.msra.mxu0 0.0
    %2176 = vmatpush.msra.mxu0 0.0
    %2177 = vmatpush.msra.mxu0 0.0
    %2178 = vmatpush.msra.mxu0 0.0
    %2179 = vmatpush.msra.mxu0 0.0
    %2180 = vmatpush.msra.mxu0 0.0
    %2181 = vmatpush.msra.mxu0 0.0
    %v2182 = vand.u32 %v2089, 4294901760
    %v2183 = vsub.f32 %v2089, %v2182
    %2184 = vmatpush.msra.mxu0 %v2183
    %v2185 = vand.u32 %v2088, 4294901760
    %v2186 = vsub.f32 %v2088, %v2185
    %2187 = vmatpush.msra.mxu0 %v2186
    %v2188 = vand.u32 %v2108, 4294901760
    %v2189 = vsub.f32 %v2108, %v2188
    %2190 = vmatmul.f32.gmra.mxu0 %v2189
    %v2191 = vpop.f32.mrf.mxu0
    %v2192 = vadd.f32 %v2166, %v2191
    %2193 = vdwg.mxu0
    %2194 = vmatpush.msra.mxu0 0.0
    %2195 = vmatpush.msra.mxu0 0.0
    %2196 = vmatpush.msra.mxu0 0.0
    %2197 = vmatpush.msra.mxu0 0.0
    %2198 = vmatpush.msra.mxu0 0.0
    %2199 = vmatpush.msra.mxu0 0.0
    %2200 = vmatpush.msra.mxu0 0.0
    %2201 = vmatpush.msra.mxu0 0.0
    %2202 = vmatpush.msra.mxu0 0.0
    %2203 = vmatpush.msra.mxu0 0.0
    %2204 = vmatpush.msra.mxu0 0.0
    %2205 = vmatpush.msra.mxu0 0.0
    %2206 = vmatpush.msra.mxu0 0.0
    %2207 = vmatpush.msra.mxu0 0.0
    %v2208 = vand.u32 %v2089, 4294901760
    %2209 = vmatpush.msra.mxu0 %v2208
    %v2210 = vand.u32 %v2088, 4294901760
    %2211 = vmatpush.msra.mxu0 %v2210
    %v2212 = vand.u32 %v2108, 4294901760
    %v2213 = vsub.f32 %v2108, %v2212
    %v2214 = vand.u32 %v2213, 4294901760
    %2215 = vmatmul.f32.gmra.mxu0 %v2214
    %v2216 = vpop.f32.mrf.mxu0
    %v2217 = vadd.f32 %v2192, %v2216
    %2218 = vdwg.mxu0
    %2219 = vmatpush.msra.mxu0 0.0
    %2220 = vmatpush.msra.mxu0 0.0
    %2221 = vmatpush.msra.mxu0 0.0
    %2222 = vmatpush.msra.mxu0 0.0
    %2223 = vmatpush.msra.mxu0 0.0
    %2224 = vmatpush.msra.mxu0 0.0
    %2225 = vmatpush.msra.mxu0 0.0
    %2226 = vmatpush.msra.mxu0 0.0
    %2227 = vmatpush.msra.mxu0 0.0
    %2228 = vmatpush.msra.mxu0 0.0
    %2229 = vmatpush.msra.mxu0 0.0
    %2230 = vmatpush.msra.mxu0 0.0
    %2231 = vmatpush.msra.mxu0 0.0
    %2232 = vmatpush.msra.mxu0 0.0
    %v2233 = vand.u32 %v2089, 4294901760
    %v2234 = vsub.f32 %v2089, %v2233
    %v2235 = vand.u32 %v2234, 4294901760
    %2236 = vmatpush.msra.mxu0 %v2235
    %v2237 = vand.u32 %v2088, 4294901760
    %v2238 = vsub.f32 %v2088, %v2237
    %v2239 = vand.u32 %v2238, 4294901760
    %2240 = vmatpush.msra.mxu0 %v2239
    %v2241 = vand.u32 %v2108, 4294901760
    %2242 = vmatmul.f32.gmra.mxu0 %v2241
    %v2243 = vpop.f32.mrf.mxu0
    %v2244 = vadd.f32 %v2217, %v2243
    %2245 = vdwg.mxu0
    %2246 = vmatpush.msra.mxu0 0.0
    %2247 = vmatpush.msra.mxu0 0.0
    %2248 = vmatpush.msra.mxu0 0.0
    %2249 = vmatpush.msra.mxu0 0.0
    %2250 = vmatpush.msra.mxu0 0.0
    %2251 = vmatpush.msra.mxu0 0.0
    %2252 = vmatpush.msra.mxu0 0.0
    %2253 = vmatpush.msra.mxu0 0.0
    %2254 = vmatpush.msra.mxu0 0.0
    %2255 = vmatpush.msra.mxu0 0.0
    %2256 = vmatpush.msra.mxu0 0.0
    %2257 = vmatpush.msra.mxu0 0.0
    %2258 = vmatpush.msra.mxu0 0.0
    %2259 = vmatpush.msra.mxu0 0.0
    %v2260 = vand.u32 %v2089, 4294901760
    %2261 = vmatpush.msra.mxu0 %v2260
    %v2262 = vand.u32 %v2088, 4294901760
    %2263 = vmatpush.msra.mxu0 %v2262
    %v2264 = vand.u32 %v2108, 4294901760
    %2265 = vmatmul.f32.gmra.mxu0 %v2264
    %v2266 = vpop.f32.mrf.mxu0
    %v2267 = vadd.f32 %v2244, %v2266
    %2268 = vdwg.mxu0
    %v2270 = vsel %vm2106, %v2099, 0
    %2272 = vmatpush.msra.mxu0 0.0
    %2273 = vmatpush.msra.mxu0 0.0
    %2274 = vmatpush.msra.mxu0 0.0
    %2275 = vmatpush.msra.mxu0 0.0
    %2276 = vmatpush.msra.mxu0 0.0
    %2277 = vmatpush.msra.mxu0 0.0
    %2278 = vmatpush.msra.mxu0 0.0
    %2279 = vmatpush.msra.mxu0 0.0
    %2280 = vmatpush.msra.mxu0 0.0
    %2281 = vmatpush.msra.mxu0 0.0
    %2282 = vmatpush.msra.mxu0 0.0
    %2283 = vmatpush.msra.mxu0 0.0
    %2284 = vmatpush.msra.mxu0 0.0
    %2285 = vmatpush.msra.mxu0 0.0
    %v2286 = vand.u32 %v2089, 4294901760
    %2287 = vmatpush.msra.mxu0 %v2286
    %v2288 = vand.u32 %v2088, 4294901760
    %2289 = vmatpush.msra.mxu0 %v2288
    %v2290 = vand.u32 %v2270, 4294901760
    %v2291 = vsub.f32 %v2270, %v2290
    %v2292 = vand.u32 %v2291, 4294901760
    %v2293 = vsub.f32 %v2291, %v2292
    %v2294 = vand.u32 %v2293, 4294901760
    %2295 = vmatmul.f32.gmra.mxu0 %v2294
    %v2296 = vpop.f32.mrf.mxu0
    %v2297 = vadd.f32 0.0, %v2296
    %2298 = vdwg.mxu0
    %2299 = vmatpush.msra.mxu0 0.0
    %2300 = vmatpush.msra.mxu0 0.0
    %2301 = vmatpush.msra.mxu0 0.0
    %2302 = vmatpush.msra.mxu0 0.0
    %2303 = vmatpush.msra.mxu0 0.0
    %2304 = vmatpush.msra.mxu0 0.0
    %2305 = vmatpush.msra.mxu0 0.0
    %2306 = vmatpush.msra.mxu0 0.0
    %2307 = vmatpush.msra.mxu0 0.0
    %2308 = vmatpush.msra.mxu0 0.0
    %2309 = vmatpush.msra.mxu0 0.0
    %2310 = vmatpush.msra.mxu0 0.0
    %2311 = vmatpush.msra.mxu0 0.0
    %2312 = vmatpush.msra.mxu0 0.0
    %v2313 = vand.u32 %v2089, 4294901760
    %v2314 = vsub.f32 %v2089, %v2313
    %v2315 = vand.u32 %v2314, 4294901760
    %v2316 = vsub.f32 %v2314, %v2315
    %v2317 = vand.u32 %v2316, 4294901760
    %2318 = vmatpush.msra.mxu0 %v2317
    %v2319 = vand.u32 %v2088, 4294901760
    %v2320 = vsub.f32 %v2088, %v2319
    %v2321 = vand.u32 %v2320, 4294901760
    %v2322 = vsub.f32 %v2320, %v2321
    %v2323 = vand.u32 %v2322, 4294901760
    %2324 = vmatpush.msra.mxu0 %v2323
    %v2325 = vand.u32 %v2270, 4294901760
    %2326 = vmatmul.f32.gmra.mxu0 %v2325
    %v2327 = vpop.f32.mrf.mxu0
    %v2328 = vadd.f32 %v2297, %v2327
    %2329 = vdwg.mxu0
    %2330 = vmatpush.msra.mxu0 0.0
    %2331 = vmatpush.msra.mxu0 0.0
    %2332 = vmatpush.msra.mxu0 0.0
    %2333 = vmatpush.msra.mxu0 0.0
    %2334 = vmatpush.msra.mxu0 0.0
    %2335 = vmatpush.msra.mxu0 0.0
    %2336 = vmatpush.msra.mxu0 0.0
    %2337 = vmatpush.msra.mxu0 0.0
    %2338 = vmatpush.msra.mxu0 0.0
    %2339 = vmatpush.msra.mxu0 0.0
    %2340 = vmatpush.msra.mxu0 0.0
    %2341 = vmatpush.msra.mxu0 0.0
    %2342 = vmatpush.msra.mxu0 0.0
    %2343 = vmatpush.msra.mxu0 0.0
    %v2344 = vand.u32 %v2089, 4294901760
    %v2345 = vsub.f32 %v2089, %v2344
    %2346 = vmatpush.msra.mxu0 %v2345
    %v2347 = vand.u32 %v2088, 4294901760
    %v2348 = vsub.f32 %v2088, %v2347
    %2349 = vmatpush.msra.mxu0 %v2348
    %v2350 = vand.u32 %v2270, 4294901760
    %v2351 = vsub.f32 %v2270, %v2350
    %2352 = vmatmul.f32.gmra.mxu0 %v2351
    %v2353 = vpop.f32.mrf.mxu0
    %v2354 = vadd.f32 %v2328, %v2353
    %2355 = vdwg.mxu0
    %2356 = vmatpush.msra.mxu0 0.0
    %2357 = vmatpush.msra.mxu0 0.0
    %2358 = vmatpush.msra.mxu0 0.0
    %2359 = vmatpush.msra.mxu0 0.0
    %2360 = vmatpush.msra.mxu0 0.0
    %2361 = vmatpush.msra.mxu0 0.0
    %2362 = vmatpush.msra.mxu0 0.0
    %2363 = vmatpush.msra.mxu0 0.0
    %2364 = vmatpush.msra.mxu0 0.0
    %2365 = vmatpush.msra.mxu0 0.0
    %2366 = vmatpush.msra.mxu0 0.0
    %2367 = vmatpush.msra.mxu0 0.0
    %2368 = vmatpush.msra.mxu0 0.0
    %2369 = vmatpush.msra.mxu0 0.0
    %v2370 = vand.u32 %v2089, 4294901760
    %2371 = vmatpush.msra.mxu0 %v2370
    %v2372 = vand.u32 %v2088, 4294901760
    %2373 = vmatpush.msra.mxu0 %v2372
    %v2374 = vand.u32 %v2270, 4294901760
    %v2375 = vsub.f32 %v2270, %v2374
    %v2376 = vand.u32 %v2375, 4294901760
    %2377 = vmatmul.f32.gmra.mxu0 %v2376
    %v2378 = vpop.f32.mrf.mxu0
    %v2379 = vadd.f32 %v2354, %v2378
    %2380 = vdwg.mxu0
    %2381 = vmatpush.msra.mxu0 0.0
    %2382 = vmatpush.msra.mxu0 0.0
    %2383 = vmatpush.msra.mxu0 0.0
    %2384 = vmatpush.msra.mxu0 0.0
    %2385 = vmatpush.msra.mxu0 0.0
    %2386 = vmatpush.msra.mxu0 0.0
    %2387 = vmatpush.msra.mxu0 0.0
    %2388 = vmatpush.msra.mxu0 0.0
    %2389 = vmatpush.msra.mxu0 0.0
    %2390 = vmatpush.msra.mxu0 0.0
    %2391 = vmatpush.msra.mxu0 0.0
    %2392 = vmatpush.msra.mxu0 0.0
    %2393 = vmatpush.msra.mxu0 0.0
    %2394 = vmatpush.msra.mxu0 0.0
    %v2395 = vand.u32 %v2089, 4294901760
    %v2396 = vsub.f32 %v2089, %v2395
    %v2397 = vand.u32 %v2396, 4294901760
    %2398 = vmatpush.msra.mxu0 %v2397
    %v2399 = vand.u32 %v2088, 4294901760
    %v2400 = vsub.f32 %v2088, %v2399
    %v2401 = vand.u32 %v2400, 4294901760
    %2402 = vmatpush.msra.mxu0 %v2401
    %v2403 = vand.u32 %v2270, 4294901760
    %2404 = vmatmul.f32.gmra.mxu0 %v2403
    %v2405 = vpop.f32.mrf.mxu0
    %v2406 = vadd.f32 %v2379, %v2405
    %2407 = vdwg.mxu0
    %2408 = vmatpush.msra.mxu0 0.0
    %2409 = vmatpush.msra.mxu0 0.0
    %2410 = vmatpush.msra.mxu0 0.0
    %2411 = vmatpush.msra.mxu0 0.0
    %2412 = vmatpush.msra.mxu0 0.0
    %2413 = vmatpush.msra.mxu0 0.0
    %2414 = vmatpush.msra.mxu0 0.0
    %2415 = vmatpush.msra.mxu0 0.0
    %2416 = vmatpush.msra.mxu0 0.0
    %2417 = vmatpush.msra.mxu0 0.0
    %2418 = vmatpush.msra.mxu0 0.0
    %2419 = vmatpush.msra.mxu0 0.0
    %2420 = vmatpush.msra.mxu0 0.0
    %2421 = vmatpush.msra.mxu0 0.0
    %v2422 = vand.u32 %v2089, 4294901760
    %2423 = vmatpush.msra.mxu0 %v2422
    %v2424 = vand.u32 %v2088, 4294901760
    %2425 = vmatpush.msra.mxu0 %v2424
    %v2426 = vand.u32 %v2270, 4294901760
    %2427 = vmatmul.f32.gmra.mxu0 %v2426
    %v2428 = vpop.f32.mrf.mxu0
    %v2429 = vadd.f32 %v2406, %v2428
    %2430 = vdwg.mxu0
    %v2432 = vsel %vm2106, %v2100, 0
    %2434 = vmatpush.msra.mxu0 0.0
    %2435 = vmatpush.msra.mxu0 0.0
    %2436 = vmatpush.msra.mxu0 0.0
    %2437 = vmatpush.msra.mxu0 0.0
    %2438 = vmatpush.msra.mxu0 0.0
    %2439 = vmatpush.msra.mxu0 0.0
    %2440 = vmatpush.msra.mxu0 0.0
    %2441 = vmatpush.msra.mxu0 0.0
    %2442 = vmatpush.msra.mxu0 0.0
    %2443 = vmatpush.msra.mxu0 0.0
    %2444 = vmatpush.msra.mxu0 0.0
    %2445 = vmatpush.msra.mxu0 0.0
    %2446 = vmatpush.msra.mxu0 0.0
    %2447 = vmatpush.msra.mxu0 0.0
    %v2448 = vand.u32 %v2089, 4294901760
    %2449 = vmatpush.msra.mxu0 %v2448
    %v2450 = vand.u32 %v2088, 4294901760
    %2451 = vmatpush.msra.mxu0 %v2450
    %v2452 = vand.u32 %v2432, 4294901760
    %v2453 = vsub.f32 %v2432, %v2452
    %v2454 = vand.u32 %v2453, 4294901760
    %v2455 = vsub.f32 %v2453, %v2454
    %v2456 = vand.u32 %v2455, 4294901760
    %2457 = vmatmul.f32.gmra.mxu0 %v2456
    %v2458 = vpop.f32.mrf.mxu0
    %v2459 = vadd.f32 0.0, %v2458
    %2460 = vdwg.mxu0
    %2461 = vmatpush.msra.mxu0 0.0
    %2462 = vmatpush.msra.mxu0 0.0
    %2463 = vmatpush.msra.mxu0 0.0
    %2464 = vmatpush.msra.mxu0 0.0
    %2465 = vmatpush.msra.mxu0 0.0
    %2466 = vmatpush.msra.mxu0 0.0
    %2467 = vmatpush.msra.mxu0 0.0
    %2468 = vmatpush.msra.mxu0 0.0
    %2469 = vmatpush.msra.mxu0 0.0
    %2470 = vmatpush.msra.mxu0 0.0
    %2471 = vmatpush.msra.mxu0 0.0
    %2472 = vmatpush.msra.mxu0 0.0
    %2473 = vmatpush.msra.mxu0 0.0
    %2474 = vmatpush.msra.mxu0 0.0
    %v2475 = vand.u32 %v2089, 4294901760
    %v2476 = vsub.f32 %v2089, %v2475
    %v2477 = vand.u32 %v2476, 4294901760
    %v2478 = vsub.f32 %v2476, %v2477
    %v2479 = vand.u32 %v2478, 4294901760
    %2480 = vmatpush.msra.mxu0 %v2479
    %v2481 = vand.u32 %v2088, 4294901760
    %v2482 = vsub.f32 %v2088, %v2481
    %v2483 = vand.u32 %v2482, 4294901760
    %v2484 = vsub.f32 %v2482, %v2483
    %v2485 = vand.u32 %v2484, 4294901760
    %2486 = vmatpush.msra.mxu0 %v2485
    %v2487 = vand.u32 %v2432, 4294901760
    %2488 = vmatmul.f32.gmra.mxu0 %v2487
    %v2489 = vpop.f32.mrf.mxu0
    %v2490 = vadd.f32 %v2459, %v2489
    %2491 = vdwg.mxu0
    %2492 = vmatpush.msra.mxu0 0.0
    %2493 = vmatpush.msra.mxu0 0.0
    %2494 = vmatpush.msra.mxu0 0.0
    %2495 = vmatpush.msra.mxu0 0.0
    %2496 = vmatpush.msra.mxu0 0.0
    %2497 = vmatpush.msra.mxu0 0.0
    %2498 = vmatpush.msra.mxu0 0.0
    %2499 = vmatpush.msra.mxu0 0.0
    %2500 = vmatpush.msra.mxu0 0.0
    %2501 = vmatpush.msra.mxu0 0.0
    %2502 = vmatpush.msra.mxu0 0.0
    %2503 = vmatpush.msra.mxu0 0.0
    %2504 = vmatpush.msra.mxu0 0.0
    %2505 = vmatpush.msra.mxu0 0.0
    %v2506 = vand.u32 %v2089, 4294901760
    %v2507 = vsub.f32 %v2089, %v2506
    %2508 = vmatpush.msra.mxu0 %v2507
    %v2509 = vand.u32 %v2088, 4294901760
    %v2510 = vsub.f32 %v2088, %v2509
    %2511 = vmatpush.msra.mxu0 %v2510
    %v2512 = vand.u32 %v2432, 4294901760
    %v2513 = vsub.f32 %v2432, %v2512
    %2514 = vmatmul.f32.gmra.mxu0 %v2513
    %v2515 = vpop.f32.mrf.mxu0
    %v2516 = vadd.f32 %v2490, %v2515
    %2517 = vdwg.mxu0
    %2518 = vmatpush.msra.mxu0 0.0
    %2519 = vmatpush.msra.mxu0 0.0
    %2520 = vmatpush.msra.mxu0 0.0
    %2521 = vmatpush.msra.mxu0 0.0
    %2522 = vmatpush.msra.mxu0 0.0
    %2523 = vmatpush.msra.mxu0 0.0
    %2524 = vmatpush.msra.mxu0 0.0
    %2525 = vmatpush.msra.mxu0 0.0
    %2526 = vmatpush.msra.mxu0 0.0
    %2527 = vmatpush.msra.mxu0 0.0
    %2528 = vmatpush.msra.mxu0 0.0
    %2529 = vmatpush.msra.mxu0 0.0
    %2530 = vmatpush.msra.mxu0 0.0
    %2531 = vmatpush.msra.mxu0 0.0
    %v2532 = vand.u32 %v2089, 4294901760
    %2533 = vmatpush.msra.mxu0 %v2532
    %v2534 = vand.u32 %v2088, 4294901760
    %2535 = vmatpush.msra.mxu0 %v2534
    %v2536 = vand.u32 %v2432, 4294901760
    %v2537 = vsub.f32 %v2432, %v2536
    %v2538 = vand.u32 %v2537, 4294901760
    %2539 = vmatmul.f32.gmra.mxu0 %v2538
    %v2540 = vpop.f32.mrf.mxu0
    %v2541 = vadd.f32 %v2516, %v2540
    %2542 = vdwg.mxu0
    %2543 = vmatpush.msra.mxu0 0.0
    %2544 = vmatpush.msra.mxu0 0.0
    %2545 = vmatpush.msra.mxu0 0.0
    %2546 = vmatpush.msra.mxu0 0.0
    %2547 = vmatpush.msra.mxu0 0.0
    %2548 = vmatpush.msra.mxu0 0.0
    %2549 = vmatpush.msra.mxu0 0.0
    %2550 = vmatpush.msra.mxu0 0.0
    %2551 = vmatpush.msra.mxu0 0.0
    %2552 = vmatpush.msra.mxu0 0.0
    %2553 = vmatpush.msra.mxu0 0.0
    %2554 = vmatpush.msra.mxu0 0.0
    %2555 = vmatpush.msra.mxu0 0.0
    %2556 = vmatpush.msra.mxu0 0.0
    %v2557 = vand.u32 %v2089, 4294901760
    %v2558 = vsub.f32 %v2089, %v2557
    %v2559 = vand.u32 %v2558, 4294901760
    %2560 = vmatpush.msra.mxu0 %v2559
    %v2561 = vand.u32 %v2088, 4294901760
    %v2562 = vsub.f32 %v2088, %v2561
    %v2563 = vand.u32 %v2562, 4294901760
    %2564 = vmatpush.msra.mxu0 %v2563
    %v2565 = vand.u32 %v2432, 4294901760
    %2566 = vmatmul.f32.gmra.mxu0 %v2565
    %v2567 = vpop.f32.mrf.mxu0
    %v2568 = vadd.f32 %v2541, %v2567
    %2569 = vdwg.mxu0
    %2570 = vmatpush.msra.mxu0 0.0
    %2571 = vmatpush.msra.mxu0 0.0
    %2572 = vmatpush.msra.mxu0 0.0
    %2573 = vmatpush.msra.mxu0 0.0
    %2574 = vmatpush.msra.mxu0 0.0
    %2575 = vmatpush.msra.mxu0 0.0
    %2576 = vmatpush.msra.mxu0 0.0
    %2577 = vmatpush.msra.mxu0 0.0
    %2578 = vmatpush.msra.mxu0 0.0
    %2579 = vmatpush.msra.mxu0 0.0
    %2580 = vmatpush.msra.mxu0 0.0
    %2581 = vmatpush.msra.mxu0 0.0
    %2582 = vmatpush.msra.mxu0 0.0
    %2583 = vmatpush.msra.mxu0 0.0
    %v2584 = vand.u32 %v2089, 4294901760
    %2585 = vmatpush.msra.mxu0 %v2584
    %v2586 = vand.u32 %v2088, 4294901760
    %2587 = vmatpush.msra.mxu0 %v2586
    %v2588 = vand.u32 %v2432, 4294901760
    %2589 = vmatmul.f32.gmra.mxu0 %v2588
    %v2590 = vpop.f32.mrf.mxu0
    %v2591 = vadd.f32 %v2568, %v2590
    %2592 = vdwg.mxu0
    %v2594 = vsel %vm2106, %v2101, 0
    %2596 = vmatpush.msra.mxu0 0.0
    %2597 = vmatpush.msra.mxu0 0.0
    %2598 = vmatpush.msra.mxu0 0.0
    %2599 = vmatpush.msra.mxu0 0.0
    %2600 = vmatpush.msra.mxu0 0.0
    %2601 = vmatpush.msra.mxu0 0.0
    %2602 = vmatpush.msra.mxu0 0.0
    %2603 = vmatpush.msra.mxu0 0.0
    %2604 = vmatpush.msra.mxu0 0.0
    %2605 = vmatpush.msra.mxu0 0.0
    %2606 = vmatpush.msra.mxu0 0.0
    %2607 = vmatpush.msra.mxu0 0.0
    %2608 = vmatpush.msra.mxu0 0.0
    %2609 = vmatpush.msra.mxu0 0.0
    %v2610 = vand.u32 %v2089, 4294901760
    %2611 = vmatpush.msra.mxu0 %v2610
    %v2612 = vand.u32 %v2088, 4294901760
    %2613 = vmatpush.msra.mxu0 %v2612
    %v2614 = vand.u32 %v2594, 4294901760
    %v2615 = vsub.f32 %v2594, %v2614
    %v2616 = vand.u32 %v2615, 4294901760
    %v2617 = vsub.f32 %v2615, %v2616
    %v2618 = vand.u32 %v2617, 4294901760
    %2619 = vmatmul.f32.gmra.mxu0 %v2618
    %v2620 = vpop.f32.mrf.mxu0
    %v2621 = vadd.f32 0.0, %v2620
    %2622 = vdwg.mxu0
    %2623 = vmatpush.msra.mxu0 0.0
    %2624 = vmatpush.msra.mxu0 0.0
    %2625 = vmatpush.msra.mxu0 0.0
    %2626 = vmatpush.msra.mxu0 0.0
    %2627 = vmatpush.msra.mxu0 0.0
    %2628 = vmatpush.msra.mxu0 0.0
    %2629 = vmatpush.msra.mxu0 0.0
    %2630 = vmatpush.msra.mxu0 0.0
    %2631 = vmatpush.msra.mxu0 0.0
    %2632 = vmatpush.msra.mxu0 0.0
    %2633 = vmatpush.msra.mxu0 0.0
    %2634 = vmatpush.msra.mxu0 0.0
    %2635 = vmatpush.msra.mxu0 0.0
    %2636 = vmatpush.msra.mxu0 0.0
    %v2637 = vand.u32 %v2089, 4294901760
    %v2638 = vsub.f32 %v2089, %v2637
    %v2639 = vand.u32 %v2638, 4294901760
    %v2640 = vsub.f32 %v2638, %v2639
    %v2641 = vand.u32 %v2640, 4294901760
    %2642 = vmatpush.msra.mxu0 %v2641
    %v2643 = vand.u32 %v2088, 4294901760
    %v2644 = vsub.f32 %v2088, %v2643
    %v2645 = vand.u32 %v2644, 4294901760
    %v2646 = vsub.f32 %v2644, %v2645
    %v2647 = vand.u32 %v2646, 4294901760
    %2648 = vmatpush.msra.mxu0 %v2647
    %v2649 = vand.u32 %v2594, 4294901760
    %2650 = vmatmul.f32.gmra.mxu0 %v2649
    %v2651 = vpop.f32.mrf.mxu0
    %v2652 = vadd.f32 %v2621, %v2651
    %2653 = vdwg.mxu0
    %2654 = vmatpush.msra.mxu0 0.0
    %2655 = vmatpush.msra.mxu0 0.0
    %2656 = vmatpush.msra.mxu0 0.0
    %2657 = vmatpush.msra.mxu0 0.0
    %2658 = vmatpush.msra.mxu0 0.0
    %2659 = vmatpush.msra.mxu0 0.0
    %2660 = vmatpush.msra.mxu0 0.0
    %2661 = vmatpush.msra.mxu0 0.0
    %2662 = vmatpush.msra.mxu0 0.0
    %2663 = vmatpush.msra.mxu0 0.0
    %2664 = vmatpush.msra.mxu0 0.0
    %2665 = vmatpush.msra.mxu0 0.0
    %2666 = vmatpush.msra.mxu0 0.0
    %2667 = vmatpush.msra.mxu0 0.0
    %v2668 = vand.u32 %v2089, 4294901760
    %v2669 = vsub.f32 %v2089, %v2668
    %2670 = vmatpush.msra.mxu0 %v2669
    %v2671 = vand.u32 %v2088, 4294901760
    %v2672 = vsub.f32 %v2088, %v2671
    %2673 = vmatpush.msra.mxu0 %v2672
    %v2674 = vand.u32 %v2594, 4294901760
    %v2675 = vsub.f32 %v2594, %v2674
    %2676 = vmatmul.f32.gmra.mxu0 %v2675
    %v2677 = vpop.f32.mrf.mxu0
    %v2678 = vadd.f32 %v2652, %v2677
    %2679 = vdwg.mxu0
    %2680 = vmatpush.msra.mxu0 0.0
    %2681 = vmatpush.msra.mxu0 0.0
    %2682 = vmatpush.msra.mxu0 0.0
    %2683 = vmatpush.msra.mxu0 0.0
    %2684 = vmatpush.msra.mxu0 0.0
    %2685 = vmatpush.msra.mxu0 0.0
    %2686 = vmatpush.msra.mxu0 0.0
    %2687 = vmatpush.msra.mxu0 0.0
    %2688 = vmatpush.msra.mxu0 0.0
    %2689 = vmatpush.msra.mxu0 0.0
    %2690 = vmatpush.msra.mxu0 0.0
    %2691 = vmatpush.msra.mxu0 0.0
    %2692 = vmatpush.msra.mxu0 0.0
    %2693 = vmatpush.msra.mxu0 0.0
    %v2694 = vand.u32 %v2089, 4294901760
    %2695 = vmatpush.msra.mxu0 %v2694
    %v2696 = vand.u32 %v2088, 4294901760
    %2697 = vmatpush.msra.mxu0 %v2696
    %v2698 = vand.u32 %v2594, 4294901760
    %v2699 = vsub.f32 %v2594, %v2698
    %v2700 = vand.u32 %v2699, 4294901760
    %2701 = vmatmul.f32.gmra.mxu0 %v2700
    %v2702 = vpop.f32.mrf.mxu0
    %v2703 = vadd.f32 %v2678, %v2702
    %2704 = vdwg.mxu0
    %2705 = vmatpush.msra.mxu0 0.0
    %2706 = vmatpush.msra.mxu0 0.0
    %2707 = vmatpush.msra.mxu0 0.0
    %2708 = vmatpush.msra.mxu0 0.0
    %2709 = vmatpush.msra.mxu0 0.0
    %2710 = vmatpush.msra.mxu0 0.0
    %2711 = vmatpush.msra.mxu0 0.0
    %2712 = vmatpush.msra.mxu0 0.0
    %2713 = vmatpush.msra.mxu0 0.0
    %2714 = vmatpush.msra.mxu0 0.0
    %2715 = vmatpush.msra.mxu0 0.0
    %2716 = vmatpush.msra.mxu0 0.0
    %2717 = vmatpush.msra.mxu0 0.0
    %2718 = vmatpush.msra.mxu0 0.0
    %v2719 = vand.u32 %v2089, 4294901760
    %v2720 = vsub.f32 %v2089, %v2719
    %v2721 = vand.u32 %v2720, 4294901760
    %2722 = vmatpush.msra.mxu0 %v2721
    %v2723 = vand.u32 %v2088, 4294901760
    %v2724 = vsub.f32 %v2088, %v2723
    %v2725 = vand.u32 %v2724, 4294901760
    %2726 = vmatpush.msra.mxu0 %v2725
    %v2727 = vand.u32 %v2594, 4294901760
    %2728 = vmatmul.f32.gmra.mxu0 %v2727
    %v2729 = vpop.f32.mrf.mxu0
    %v2730 = vadd.f32 %v2703, %v2729
    %2731 = vdwg.mxu0
    %2732 = vmatpush.msra.mxu0 0.0
    %2733 = vmatpush.msra.mxu0 0.0
    %2734 = vmatpush.msra.mxu0 0.0
    %2735 = vmatpush.msra.mxu0 0.0
    %2736 = vmatpush.msra.mxu0 0.0
    %2737 = vmatpush.msra.mxu0 0.0
    %2738 = vmatpush.msra.mxu0 0.0
    %2739 = vmatpush.msra.mxu0 0.0
    %2740 = vmatpush.msra.mxu0 0.0
    %2741 = vmatpush.msra.mxu0 0.0
    %2742 = vmatpush.msra.mxu0 0.0
    %2743 = vmatpush.msra.mxu0 0.0
    %2744 = vmatpush.msra.mxu0 0.0
    %2745 = vmatpush.msra.mxu0 0.0
    %v2746 = vand.u32 %v2089, 4294901760
    %2747 = vmatpush.msra.mxu0 %v2746
    %v2748 = vand.u32 %v2088, 4294901760
    %2749 = vmatpush.msra.mxu0 %v2748
    %v2750 = vand.u32 %v2594, 4294901760
    %2751 = vmatmul.f32.gmra.mxu0 %v2750
    %v2752 = vpop.f32.mrf.mxu0
    %v2753 = vadd.f32 %v2730, %v2752
    %2754 = vdwg.mxu0
    %v2756 = vsel %vm2106, %v2102, 0
    %2758 = vmatpush.msra.mxu0 0.0
    %2759 = vmatpush.msra.mxu0 0.0
    %2760 = vmatpush.msra.mxu0 0.0
    %2761 = vmatpush.msra.mxu0 0.0
    %2762 = vmatpush.msra.mxu0 0.0
    %2763 = vmatpush.msra.mxu0 0.0
    %2764 = vmatpush.msra.mxu0 0.0
    %2765 = vmatpush.msra.mxu0 0.0
    %2766 = vmatpush.msra.mxu0 0.0
    %2767 = vmatpush.msra.mxu0 0.0
    %2768 = vmatpush.msra.mxu0 0.0
    %2769 = vmatpush.msra.mxu0 0.0
    %2770 = vmatpush.msra.mxu0 0.0
    %2771 = vmatpush.msra.mxu0 0.0
    %v2772 = vand.u32 %v2089, 4294901760
    %2773 = vmatpush.msra.mxu0 %v2772
    %v2774 = vand.u32 %v2088, 4294901760
    %2775 = vmatpush.msra.mxu0 %v2774
    %v2776 = vand.u32 %v2756, 4294901760
    %v2777 = vsub.f32 %v2756, %v2776
    %v2778 = vand.u32 %v2777, 4294901760
    %v2779 = vsub.f32 %v2777, %v2778
    %v2780 = vand.u32 %v2779, 4294901760
    %2781 = vmatmul.f32.gmra.mxu0 %v2780
    %v2782 = vpop.f32.mrf.mxu0
    %v2783 = vadd.f32 0.0, %v2782
    %2784 = vdwg.mxu0
    %2785 = vmatpush.msra.mxu0 0.0
    %2786 = vmatpush.msra.mxu0 0.0
    %2787 = vmatpush.msra.mxu0 0.0
    %2788 = vmatpush.msra.mxu0 0.0
    %2789 = vmatpush.msra.mxu0 0.0
    %2790 = vmatpush.msra.mxu0 0.0
    %2791 = vmatpush.msra.mxu0 0.0
    %2792 = vmatpush.msra.mxu0 0.0
    %2793 = vmatpush.msra.mxu0 0.0
    %2794 = vmatpush.msra.mxu0 0.0
    %2795 = vmatpush.msra.mxu0 0.0
    %2796 = vmatpush.msra.mxu0 0.0
    %2797 = vmatpush.msra.mxu0 0.0
    %2798 = vmatpush.msra.mxu0 0.0
    %v2799 = vand.u32 %v2089, 4294901760
    %v2800 = vsub.f32 %v2089, %v2799
    %v2801 = vand.u32 %v2800, 4294901760
    %v2802 = vsub.f32 %v2800, %v2801
    %v2803 = vand.u32 %v2802, 4294901760
    %2804 = vmatpush.msra.mxu0 %v2803
    %v2805 = vand.u32 %v2088, 4294901760
    %v2806 = vsub.f32 %v2088, %v2805
    %v2807 = vand.u32 %v2806, 4294901760
    %v2808 = vsub.f32 %v2806, %v2807
    %v2809 = vand.u32 %v2808, 4294901760
    %2810 = vmatpush.msra.mxu0 %v2809
    %v2811 = vand.u32 %v2756, 4294901760
    %2812 = vmatmul.f32.gmra.mxu0 %v2811
    %v2813 = vpop.f32.mrf.mxu0
    %v2814 = vadd.f32 %v2783, %v2813
    %2815 = vdwg.mxu0
    %2816 = vmatpush.msra.mxu0 0.0
    %2817 = vmatpush.msra.mxu0 0.0
    %2818 = vmatpush.msra.mxu0 0.0
    %2819 = vmatpush.msra.mxu0 0.0
    %2820 = vmatpush.msra.mxu0 0.0
    %2821 = vmatpush.msra.mxu0 0.0
    %2822 = vmatpush.msra.mxu0 0.0
    %2823 = vmatpush.msra.mxu0 0.0
    %2824 = vmatpush.msra.mxu0 0.0
    %2825 = vmatpush.msra.mxu0 0.0
    %2826 = vmatpush.msra.mxu0 0.0
    %2827 = vmatpush.msra.mxu0 0.0
    %2828 = vmatpush.msra.mxu0 0.0
    %2829 = vmatpush.msra.mxu0 0.0
    %v2830 = vand.u32 %v2089, 4294901760
    %v2831 = vsub.f32 %v2089, %v2830
    %2832 = vmatpush.msra.mxu0 %v2831
    %v2833 = vand.u32 %v2088, 4294901760
    %v2834 = vsub.f32 %v2088, %v2833
    %2835 = vmatpush.msra.mxu0 %v2834
    %v2836 = vand.u32 %v2756, 4294901760
    %v2837 = vsub.f32 %v2756, %v2836
    %2838 = vmatmul.f32.gmra.mxu0 %v2837
    %v2839 = vpop.f32.mrf.mxu0
    %v2840 = vadd.f32 %v2814, %v2839
    %2841 = vdwg.mxu0
    %2842 = vmatpush.msra.mxu0 0.0
    %2843 = vmatpush.msra.mxu0 0.0
    %2844 = vmatpush.msra.mxu0 0.0
    %2845 = vmatpush.msra.mxu0 0.0
    %2846 = vmatpush.msra.mxu0 0.0
    %2847 = vmatpush.msra.mxu0 0.0
    %2848 = vmatpush.msra.mxu0 0.0
    %2849 = vmatpush.msra.mxu0 0.0
    %2850 = vmatpush.msra.mxu0 0.0
    %2851 = vmatpush.msra.mxu0 0.0
    %2852 = vmatpush.msra.mxu0 0.0
    %2853 = vmatpush.msra.mxu0 0.0
    %2854 = vmatpush.msra.mxu0 0.0
    %2855 = vmatpush.msra.mxu0 0.0
    %v2856 = vand.u32 %v2089, 4294901760
    %2857 = vmatpush.msra.mxu0 %v2856
    %v2858 = vand.u32 %v2088, 4294901760
    %2859 = vmatpush.msra.mxu0 %v2858
    %v2860 = vand.u32 %v2756, 4294901760
    %v2861 = vsub.f32 %v2756, %v2860
    %v2862 = vand.u32 %v2861, 4294901760
    %2863 = vmatmul.f32.gmra.mxu0 %v2862
    %v2864 = vpop.f32.mrf.mxu0
    %v2865 = vadd.f32 %v2840, %v2864
    %2866 = vdwg.mxu0
    %2867 = vmatpush.msra.mxu0 0.0
    %2868 = vmatpush.msra.mxu0 0.0
    %2869 = vmatpush.msra.mxu0 0.0
    %2870 = vmatpush.msra.mxu0 0.0
    %2871 = vmatpush.msra.mxu0 0.0
    %2872 = vmatpush.msra.mxu0 0.0
    %2873 = vmatpush.msra.mxu0 0.0
    %2874 = vmatpush.msra.mxu0 0.0
    %2875 = vmatpush.msra.mxu0 0.0
    %2876 = vmatpush.msra.mxu0 0.0
    %2877 = vmatpush.msra.mxu0 0.0
    %2878 = vmatpush.msra.mxu0 0.0
    %2879 = vmatpush.msra.mxu0 0.0
    %2880 = vmatpush.msra.mxu0 0.0
    %v2881 = vand.u32 %v2089, 4294901760
    %v2882 = vsub.f32 %v2089, %v2881
    %v2883 = vand.u32 %v2882, 4294901760
    %2884 = vmatpush.msra.mxu0 %v2883
    %v2885 = vand.u32 %v2088, 4294901760
    %v2886 = vsub.f32 %v2088, %v2885
    %v2887 = vand.u32 %v2886, 4294901760
    %2888 = vmatpush.msra.mxu0 %v2887
    %v2889 = vand.u32 %v2756, 4294901760
    %2890 = vmatmul.f32.gmra.mxu0 %v2889
    %v2891 = vpop.f32.mrf.mxu0
    %v2892 = vadd.f32 %v2865, %v2891
    %2893 = vdwg.mxu0
    %2894 = vmatpush.msra.mxu0 0.0
    %2895 = vmatpush.msra.mxu0 0.0
    %2896 = vmatpush.msra.mxu0 0.0
    %2897 = vmatpush.msra.mxu0 0.0
    %2898 = vmatpush.msra.mxu0 0.0
    %2899 = vmatpush.msra.mxu0 0.0
    %2900 = vmatpush.msra.mxu0 0.0
    %2901 = vmatpush.msra.mxu0 0.0
    %2902 = vmatpush.msra.mxu0 0.0
    %2903 = vmatpush.msra.mxu0 0.0
    %2904 = vmatpush.msra.mxu0 0.0
    %2905 = vmatpush.msra.mxu0 0.0
    %2906 = vmatpush.msra.mxu0 0.0
    %2907 = vmatpush.msra.mxu0 0.0
    %v2908 = vand.u32 %v2089, 4294901760
    %2909 = vmatpush.msra.mxu0 %v2908
    %v2910 = vand.u32 %v2088, 4294901760
    %2911 = vmatpush.msra.mxu0 %v2910
    %v2912 = vand.u32 %v2756, 4294901760
    %2913 = vmatmul.f32.gmra.mxu0 %v2912
    %v2914 = vpop.f32.mrf.mxu0
    %v2915 = vadd.f32 %v2892, %v2914
    %2916 = vdwg.mxu0
    %v2918 = vsel %vm2106, %v2103, 0
    %2920 = vmatpush.msra.mxu0 0.0
    %2921 = vmatpush.msra.mxu0 0.0
    %2922 = vmatpush.msra.mxu0 0.0
    %2923 = vmatpush.msra.mxu0 0.0
    %2924 = vmatpush.msra.mxu0 0.0
    %2925 = vmatpush.msra.mxu0 0.0
    %2926 = vmatpush.msra.mxu0 0.0
    %2927 = vmatpush.msra.mxu0 0.0
    %2928 = vmatpush.msra.mxu0 0.0
    %2929 = vmatpush.msra.mxu0 0.0
    %2930 = vmatpush.msra.mxu0 0.0
    %2931 = vmatpush.msra.mxu0 0.0
    %2932 = vmatpush.msra.mxu0 0.0
    %2933 = vmatpush.msra.mxu0 0.0
    %v2934 = vand.u32 %v2089, 4294901760
    %2935 = vmatpush.msra.mxu0 %v2934
    %v2936 = vand.u32 %v2088, 4294901760
    %2937 = vmatpush.msra.mxu0 %v2936
    %v2938 = vand.u32 %v2918, 4294901760
    %v2939 = vsub.f32 %v2918, %v2938
    %v2940 = vand.u32 %v2939, 4294901760
    %v2941 = vsub.f32 %v2939, %v2940
    %v2942 = vand.u32 %v2941, 4294901760
    %2943 = vmatmul.f32.gmra.mxu0 %v2942
    %v2944 = vpop.f32.mrf.mxu0
    %v2945 = vadd.f32 0.0, %v2944
    %2946 = vdwg.mxu0
    %2947 = vmatpush.msra.mxu0 0.0
    %2948 = vmatpush.msra.mxu0 0.0
    %2949 = vmatpush.msra.mxu0 0.0
    %2950 = vmatpush.msra.mxu0 0.0
    %2951 = vmatpush.msra.mxu0 0.0
    %2952 = vmatpush.msra.mxu0 0.0
    %2953 = vmatpush.msra.mxu0 0.0
    %2954 = vmatpush.msra.mxu0 0.0
    %2955 = vmatpush.msra.mxu0 0.0
    %2956 = vmatpush.msra.mxu0 0.0
    %2957 = vmatpush.msra.mxu0 0.0
    %2958 = vmatpush.msra.mxu0 0.0
    %2959 = vmatpush.msra.mxu0 0.0
    %2960 = vmatpush.msra.mxu0 0.0
    %v2961 = vand.u32 %v2089, 4294901760
    %v2962 = vsub.f32 %v2089, %v2961
    %v2963 = vand.u32 %v2962, 4294901760
    %v2964 = vsub.f32 %v2962, %v2963
    %v2965 = vand.u32 %v2964, 4294901760
    %2966 = vmatpush.msra.mxu0 %v2965
    %v2967 = vand.u32 %v2088, 4294901760
    %v2968 = vsub.f32 %v2088, %v2967
    %v2969 = vand.u32 %v2968, 4294901760
    %v2970 = vsub.f32 %v2968, %v2969
    %v2971 = vand.u32 %v2970, 4294901760
    %2972 = vmatpush.msra.mxu0 %v2971
    %v2973 = vand.u32 %v2918, 4294901760
    %2974 = vmatmul.f32.gmra.mxu0 %v2973
    %v2975 = vpop.f32.mrf.mxu0
    %v2976 = vadd.f32 %v2945, %v2975
    %2977 = vdwg.mxu0
    %2978 = vmatpush.msra.mxu0 0.0
    %2979 = vmatpush.msra.mxu0 0.0
    %2980 = vmatpush.msra.mxu0 0.0
    %2981 = vmatpush.msra.mxu0 0.0
    %2982 = vmatpush.msra.mxu0 0.0
    %2983 = vmatpush.msra.mxu0 0.0
    %2984 = vmatpush.msra.mxu0 0.0
    %2985 = vmatpush.msra.mxu0 0.0
    %2986 = vmatpush.msra.mxu0 0.0
    %2987 = vmatpush.msra.mxu0 0.0
    %2988 = vmatpush.msra.mxu0 0.0
    %2989 = vmatpush.msra.mxu0 0.0
    %2990 = vmatpush.msra.mxu0 0.0
    %2991 = vmatpush.msra.mxu0 0.0
    %v2992 = vand.u32 %v2089, 4294901760
    %v2993 = vsub.f32 %v2089, %v2992
    %2994 = vmatpush.msra.mxu0 %v2993
    %v2995 = vand.u32 %v2088, 4294901760
    %v2996 = vsub.f32 %v2088, %v2995
    %2997 = vmatpush.msra.mxu0 %v2996
    %v2998 = vand.u32 %v2918, 4294901760
    %v2999 = vsub.f32 %v2918, %v2998
    %3000 = vmatmul.f32.gmra.mxu0 %v2999
    %v3001 = vpop.f32.mrf.mxu0
    %v3002 = vadd.f32 %v2976, %v3001
    %3003 = vdwg.mxu0
    %3004 = vmatpush.msra.mxu0 0.0
    %3005 = vmatpush.msra.mxu0 0.0
    %3006 = vmatpush.msra.mxu0 0.0
    %3007 = vmatpush.msra.mxu0 0.0
    %3008 = vmatpush.msra.mxu0 0.0
    %3009 = vmatpush.msra.mxu0 0.0
    %3010 = vmatpush.msra.mxu0 0.0
    %3011 = vmatpush.msra.mxu0 0.0
    %3012 = vmatpush.msra.mxu0 0.0
    %3013 = vmatpush.msra.mxu0 0.0
    %3014 = vmatpush.msra.mxu0 0.0
    %3015 = vmatpush.msra.mxu0 0.0
    %3016 = vmatpush.msra.mxu0 0.0
    %3017 = vmatpush.msra.mxu0 0.0
    %v3018 = vand.u32 %v2089, 4294901760
    %3019 = vmatpush.msra.mxu0 %v3018
    %v3020 = vand.u32 %v2088, 4294901760
    %3021 = vmatpush.msra.mxu0 %v3020
    %v3022 = vand.u32 %v2918, 4294901760
    %v3023 = vsub.f32 %v2918, %v3022
    %v3024 = vand.u32 %v3023, 4294901760
    %3025 = vmatmul.f32.gmra.mxu0 %v3024
    %v3026 = vpop.f32.mrf.mxu0
    %v3027 = vadd.f32 %v3002, %v3026
    %3028 = vdwg.mxu0
    %3029 = vmatpush.msra.mxu0 0.0
    %3030 = vmatpush.msra.mxu0 0.0
    %3031 = vmatpush.msra.mxu0 0.0
    %3032 = vmatpush.msra.mxu0 0.0
    %3033 = vmatpush.msra.mxu0 0.0
    %3034 = vmatpush.msra.mxu0 0.0
    %3035 = vmatpush.msra.mxu0 0.0
    %3036 = vmatpush.msra.mxu0 0.0
    %3037 = vmatpush.msra.mxu0 0.0
    %3038 = vmatpush.msra.mxu0 0.0
    %3039 = vmatpush.msra.mxu0 0.0
    %3040 = vmatpush.msra.mxu0 0.0
    %3041 = vmatpush.msra.mxu0 0.0
    %3042 = vmatpush.msra.mxu0 0.0
    %v3043 = vand.u32 %v2089, 4294901760
    %v3044 = vsub.f32 %v2089, %v3043
    %v3045 = vand.u32 %v3044, 4294901760
    %3046 = vmatpush.msra.mxu0 %v3045
    %v3047 = vand.u32 %v2088, 4294901760
    %v3048 = vsub.f32 %v2088, %v3047
    %v3049 = vand.u32 %v3048, 4294901760
    %3050 = vmatpush.msra.mxu0 %v3049
    %v3051 = vand.u32 %v2918, 4294901760
    %3052 = vmatmul.f32.gmra.mxu0 %v3051
    %v3053 = vpop.f32.mrf.mxu0
    %v3054 = vadd.f32 %v3027, %v3053
    %3055 = vdwg.mxu0
    %3056 = vmatpush.msra.mxu0 0.0
    %3057 = vmatpush.msra.mxu0 0.0
    %3058 = vmatpush.msra.mxu0 0.0
    %3059 = vmatpush.msra.mxu0 0.0
    %3060 = vmatpush.msra.mxu0 0.0
    %3061 = vmatpush.msra.mxu0 0.0
    %3062 = vmatpush.msra.mxu0 0.0
    %3063 = vmatpush.msra.mxu0 0.0
    %3064 = vmatpush.msra.mxu0 0.0
    %3065 = vmatpush.msra.mxu0 0.0
    %3066 = vmatpush.msra.mxu0 0.0
    %3067 = vmatpush.msra.mxu0 0.0
    %3068 = vmatpush.msra.mxu0 0.0
    %3069 = vmatpush.msra.mxu0 0.0
    %v3070 = vand.u32 %v2089, 4294901760
    %3071 = vmatpush.msra.mxu0 %v3070
    %v3072 = vand.u32 %v2088, 4294901760
    %3073 = vmatpush.msra.mxu0 %v3072
    %v3074 = vand.u32 %v2918, 4294901760
    %3075 = vmatmul.f32.gmra.mxu0 %v3074
    %v3076 = vpop.f32.mrf.mxu0
    %v3077 = vadd.f32 %v3054, %v3076
    %3078 = vdwg.mxu0
    %v3080 = vsel %vm2106, %v2104, 0
    %3082 = vmatpush.msra.mxu0 0.0
    %3083 = vmatpush.msra.mxu0 0.0
    %3084 = vmatpush.msra.mxu0 0.0
    %3085 = vmatpush.msra.mxu0 0.0
    %3086 = vmatpush.msra.mxu0 0.0
    %3087 = vmatpush.msra.mxu0 0.0
    %3088 = vmatpush.msra.mxu0 0.0
    %3089 = vmatpush.msra.mxu0 0.0
    %3090 = vmatpush.msra.mxu0 0.0
    %3091 = vmatpush.msra.mxu0 0.0
    %3092 = vmatpush.msra.mxu0 0.0
    %3093 = vmatpush.msra.mxu0 0.0
    %3094 = vmatpush.msra.mxu0 0.0
    %3095 = vmatpush.msra.mxu0 0.0
    %v3096 = vand.u32 %v2089, 4294901760
    %3097 = vmatpush.msra.mxu0 %v3096
    %v3098 = vand.u32 %v2088, 4294901760
    %3099 = vmatpush.msra.mxu0 %v3098
    %v3100 = vand.u32 %v3080, 4294901760
    %v3101 = vsub.f32 %v3080, %v3100
    %v3102 = vand.u32 %v3101, 4294901760
    %v3103 = vsub.f32 %v3101, %v3102
    %v3104 = vand.u32 %v3103, 4294901760
    %3105 = vmatmul.f32.gmra.mxu0 %v3104
    %v3106 = vpop.f32.mrf.mxu0
    %v3107 = vadd.f32 0.0, %v3106
    %3108 = vdwg.mxu0
    %3109 = vmatpush.msra.mxu0 0.0
    %3110 = vmatpush.msra.mxu0 0.0
    %3111 = vmatpush.msra.mxu0 0.0
    %3112 = vmatpush.msra.mxu0 0.0
    %3113 = vmatpush.msra.mxu0 0.0
    %3114 = vmatpush.msra.mxu0 0.0
    %3115 = vmatpush.msra.mxu0 0.0
    %3116 = vmatpush.msra.mxu0 0.0
    %3117 = vmatpush.msra.mxu0 0.0
    %3118 = vmatpush.msra.mxu0 0.0
    %3119 = vmatpush.msra.mxu0 0.0
    %3120 = vmatpush.msra.mxu0 0.0
    %3121 = vmatpush.msra.mxu0 0.0
    %3122 = vmatpush.msra.mxu0 0.0
    %v3123 = vand.u32 %v2089, 4294901760
    %v3124 = vsub.f32 %v2089, %v3123
    %v3125 = vand.u32 %v3124, 4294901760
    %v3126 = vsub.f32 %v3124, %v3125
    %v3127 = vand.u32 %v3126, 4294901760
    %3128 = vmatpush.msra.mxu0 %v3127
    %v3129 = vand.u32 %v2088, 4294901760
    %v3130 = vsub.f32 %v2088, %v3129
    %v3131 = vand.u32 %v3130, 4294901760
    %v3132 = vsub.f32 %v3130, %v3131
    %v3133 = vand.u32 %v3132, 4294901760
    %3134 = vmatpush.msra.mxu0 %v3133
    %v3135 = vand.u32 %v3080, 4294901760
    %3136 = vmatmul.f32.gmra.mxu0 %v3135
    %v3137 = vpop.f32.mrf.mxu0
    %v3138 = vadd.f32 %v3107, %v3137
    %3139 = vdwg.mxu0
    %3140 = vmatpush.msra.mxu0 0.0
    %3141 = vmatpush.msra.mxu0 0.0
    %3142 = vmatpush.msra.mxu0 0.0
    %3143 = vmatpush.msra.mxu0 0.0
    %3144 = vmatpush.msra.mxu0 0.0
    %3145 = vmatpush.msra.mxu0 0.0
    %3146 = vmatpush.msra.mxu0 0.0
    %3147 = vmatpush.msra.mxu0 0.0
    %3148 = vmatpush.msra.mxu0 0.0
    %3149 = vmatpush.msra.mxu0 0.0
    %3150 = vmatpush.msra.mxu0 0.0
    %3151 = vmatpush.msra.mxu0 0.0
    %3152 = vmatpush.msra.mxu0 0.0
    %3153 = vmatpush.msra.mxu0 0.0
    %v3154 = vand.u32 %v2089, 4294901760
    %v3155 = vsub.f32 %v2089, %v3154
    %3156 = vmatpush.msra.mxu0 %v3155
    %v3157 = vand.u32 %v2088, 4294901760
    %v3158 = vsub.f32 %v2088, %v3157
    %3159 = vmatpush.msra.mxu0 %v3158
    %v3160 = vand.u32 %v3080, 4294901760
    %v3161 = vsub.f32 %v3080, %v3160
    %3162 = vmatmul.f32.gmra.mxu0 %v3161
    %v3163 = vpop.f32.mrf.mxu0
    %v3164 = vadd.f32 %v3138, %v3163
    %3165 = vdwg.mxu0
    %3166 = vmatpush.msra.mxu0 0.0
    %3167 = vmatpush.msra.mxu0 0.0
    %3168 = vmatpush.msra.mxu0 0.0
    %3169 = vmatpush.msra.mxu0 0.0
    %3170 = vmatpush.msra.mxu0 0.0
    %3171 = vmatpush.msra.mxu0 0.0
    %3172 = vmatpush.msra.mxu0 0.0
    %3173 = vmatpush.msra.mxu0 0.0
    %3174 = vmatpush.msra.mxu0 0.0
    %3175 = vmatpush.msra.mxu0 0.0
    %3176 = vmatpush.msra.mxu0 0.0
    %3177 = vmatpush.msra.mxu0 0.0
    %3178 = vmatpush.msra.mxu0 0.0
    %3179 = vmatpush.msra.mxu0 0.0
    %v3180 = vand.u32 %v2089, 4294901760
    %3181 = vmatpush.msra.mxu0 %v3180
    %v3182 = vand.u32 %v2088, 4294901760
    %3183 = vmatpush.msra.mxu0 %v3182
    %v3184 = vand.u32 %v3080, 4294901760
    %v3185 = vsub.f32 %v3080, %v3184
    %v3186 = vand.u32 %v3185, 4294901760
    %3187 = vmatmul.f32.gmra.mxu0 %v3186
    %v3188 = vpop.f32.mrf.mxu0
    %v3189 = vadd.f32 %v3164, %v3188
    %3190 = vdwg.mxu0
    %3191 = vmatpush.msra.mxu0 0.0
    %3192 = vmatpush.msra.mxu0 0.0
    %3193 = vmatpush.msra.mxu0 0.0
    %3194 = vmatpush.msra.mxu0 0.0
    %3195 = vmatpush.msra.mxu0 0.0
    %3196 = vmatpush.msra.mxu0 0.0
    %3197 = vmatpush.msra.mxu0 0.0
    %3198 = vmatpush.msra.mxu0 0.0
    %3199 = vmatpush.msra.mxu0 0.0
    %3200 = vmatpush.msra.mxu0 0.0
    %3201 = vmatpush.msra.mxu0 0.0
    %3202 = vmatpush.msra.mxu0 0.0
    %3203 = vmatpush.msra.mxu0 0.0
    %3204 = vmatpush.msra.mxu0 0.0
    %v3205 = vand.u32 %v2089, 4294901760
    %v3206 = vsub.f32 %v2089, %v3205
    %v3207 = vand.u32 %v3206, 4294901760
    %3208 = vmatpush.msra.mxu0 %v3207
    %v3209 = vand.u32 %v2088, 4294901760
    %v3210 = vsub.f32 %v2088, %v3209
    %v3211 = vand.u32 %v3210, 4294901760
    %3212 = vmatpush.msra.mxu0 %v3211
    %v3213 = vand.u32 %v3080, 4294901760
    %3214 = vmatmul.f32.gmra.mxu0 %v3213
    %v3215 = vpop.f32.mrf.mxu0
    %v3216 = vadd.f32 %v3189, %v3215
    %3217 = vdwg.mxu0
    %3218 = vmatpush.msra.mxu0 0.0
    %3219 = vmatpush.msra.mxu0 0.0
    %3220 = vmatpush.msra.mxu0 0.0
    %3221 = vmatpush.msra.mxu0 0.0
    %3222 = vmatpush.msra.mxu0 0.0
    %3223 = vmatpush.msra.mxu0 0.0
    %3224 = vmatpush.msra.mxu0 0.0
    %3225 = vmatpush.msra.mxu0 0.0
    %3226 = vmatpush.msra.mxu0 0.0
    %3227 = vmatpush.msra.mxu0 0.0
    %3228 = vmatpush.msra.mxu0 0.0
    %3229 = vmatpush.msra.mxu0 0.0
    %3230 = vmatpush.msra.mxu0 0.0
    %3231 = vmatpush.msra.mxu0 0.0
    %v3232 = vand.u32 %v2089, 4294901760
    %3233 = vmatpush.msra.mxu0 %v3232
    %v3234 = vand.u32 %v2088, 4294901760
    %3235 = vmatpush.msra.mxu0 %v3234
    %v3236 = vand.u32 %v3080, 4294901760
    %3237 = vmatmul.f32.gmra.mxu0 %v3236
    %v3238 = vpop.f32.mrf.mxu0
    %v3239 = vadd.f32 %v3216, %v3238
    %3240 = vdwg.mxu0
    %v3242 = vsel %vm2106, %v2105, 0
    %3244 = vmatpush.msra.mxu0 0.0
    %3245 = vmatpush.msra.mxu0 0.0
    %3246 = vmatpush.msra.mxu0 0.0
    %3247 = vmatpush.msra.mxu0 0.0
    %3248 = vmatpush.msra.mxu0 0.0
    %3249 = vmatpush.msra.mxu0 0.0
    %3250 = vmatpush.msra.mxu0 0.0
    %3251 = vmatpush.msra.mxu0 0.0
    %3252 = vmatpush.msra.mxu0 0.0
    %3253 = vmatpush.msra.mxu0 0.0
    %3254 = vmatpush.msra.mxu0 0.0
    %3255 = vmatpush.msra.mxu0 0.0
    %3256 = vmatpush.msra.mxu0 0.0
    %3257 = vmatpush.msra.mxu0 0.0
    %v3258 = vand.u32 %v2089, 4294901760
    %3259 = vmatpush.msra.mxu0 %v3258
    %v3260 = vand.u32 %v2088, 4294901760
    %3261 = vmatpush.msra.mxu0 %v3260
    %v3262 = vand.u32 %v3242, 4294901760
    %v3263 = vsub.f32 %v3242, %v3262
    %v3264 = vand.u32 %v3263, 4294901760
    %v3265 = vsub.f32 %v3263, %v3264
    %v3266 = vand.u32 %v3265, 4294901760
    %3267 = vmatmul.f32.gmra.mxu0 %v3266
    %v3268 = vpop.f32.mrf.mxu0
    %v3269 = vadd.f32 0.0, %v3268
    %3270 = vdwg.mxu0
    %3271 = vmatpush.msra.mxu0 0.0
    %3272 = vmatpush.msra.mxu0 0.0
    %3273 = vmatpush.msra.mxu0 0.0
    %3274 = vmatpush.msra.mxu0 0.0
    %3275 = vmatpush.msra.mxu0 0.0
    %3276 = vmatpush.msra.mxu0 0.0
    %3277 = vmatpush.msra.mxu0 0.0
    %3278 = vmatpush.msra.mxu0 0.0
    %3279 = vmatpush.msra.mxu0 0.0
    %3280 = vmatpush.msra.mxu0 0.0
    %3281 = vmatpush.msra.mxu0 0.0
    %3282 = vmatpush.msra.mxu0 0.0
    %3283 = vmatpush.msra.mxu0 0.0
    %3284 = vmatpush.msra.mxu0 0.0
    %v3285 = vand.u32 %v2089, 4294901760
    %v3286 = vsub.f32 %v2089, %v3285
    %v3287 = vand.u32 %v3286, 4294901760
    %v3288 = vsub.f32 %v3286, %v3287
    %v3289 = vand.u32 %v3288, 4294901760
    %3290 = vmatpush.msra.mxu0 %v3289
    %v3291 = vand.u32 %v2088, 4294901760
    %v3292 = vsub.f32 %v2088, %v3291
    %v3293 = vand.u32 %v3292, 4294901760
    %v3294 = vsub.f32 %v3292, %v3293
    %v3295 = vand.u32 %v3294, 4294901760
    %3296 = vmatpush.msra.mxu0 %v3295
    %v3297 = vand.u32 %v3242, 4294901760
    %3298 = vmatmul.f32.gmra.mxu0 %v3297
    %v3299 = vpop.f32.mrf.mxu0
    %v3300 = vadd.f32 %v3269, %v3299
    %3301 = vdwg.mxu0
    %3302 = vmatpush.msra.mxu0 0.0
    %3303 = vmatpush.msra.mxu0 0.0
    %3304 = vmatpush.msra.mxu0 0.0
    %3305 = vmatpush.msra.mxu0 0.0
    %3306 = vmatpush.msra.mxu0 0.0
    %3307 = vmatpush.msra.mxu0 0.0
    %3308 = vmatpush.msra.mxu0 0.0
    %3309 = vmatpush.msra.mxu0 0.0
    %3310 = vmatpush.msra.mxu0 0.0
    %3311 = vmatpush.msra.mxu0 0.0
    %3312 = vmatpush.msra.mxu0 0.0
    %3313 = vmatpush.msra.mxu0 0.0
    %3314 = vmatpush.msra.mxu0 0.0
    %3315 = vmatpush.msra.mxu0 0.0
    %v3316 = vand.u32 %v2089, 4294901760
    %v3317 = vsub.f32 %v2089, %v3316
    %3318 = vmatpush.msra.mxu0 %v3317
    %v3319 = vand.u32 %v2088, 4294901760
    %v3320 = vsub.f32 %v2088, %v3319
    %3321 = vmatpush.msra.mxu0 %v3320
    %v3322 = vand.u32 %v3242, 4294901760
    %v3323 = vsub.f32 %v3242, %v3322
    %3324 = vmatmul.f32.gmra.mxu0 %v3323
    %v3325 = vpop.f32.mrf.mxu0
    %v3326 = vadd.f32 %v3300, %v3325
    %3327 = vdwg.mxu0
    %3328 = vmatpush.msra.mxu0 0.0
    %3329 = vmatpush.msra.mxu0 0.0
    %3330 = vmatpush.msra.mxu0 0.0
    %3331 = vmatpush.msra.mxu0 0.0
    %3332 = vmatpush.msra.mxu0 0.0
    %3333 = vmatpush.msra.mxu0 0.0
    %3334 = vmatpush.msra.mxu0 0.0
    %3335 = vmatpush.msra.mxu0 0.0
    %3336 = vmatpush.msra.mxu0 0.0
    %3337 = vmatpush.msra.mxu0 0.0
    %3338 = vmatpush.msra.mxu0 0.0
    %3339 = vmatpush.msra.mxu0 0.0
    %3340 = vmatpush.msra.mxu0 0.0
    %3341 = vmatpush.msra.mxu0 0.0
    %v3342 = vand.u32 %v2089, 4294901760
    %3343 = vmatpush.msra.mxu0 %v3342
    %v3344 = vand.u32 %v2088, 4294901760
    %3345 = vmatpush.msra.mxu0 %v3344
    %v3346 = vand.u32 %v3242, 4294901760
    %v3347 = vsub.f32 %v3242, %v3346
    %v3348 = vand.u32 %v3347, 4294901760
    %3349 = vmatmul.f32.gmra.mxu0 %v3348
    %v3350 = vpop.f32.mrf.mxu0
    %v3351 = vadd.f32 %v3326, %v3350
    %3352 = vdwg.mxu0
    %3353 = vmatpush.msra.mxu0 0.0
    %3354 = vmatpush.msra.mxu0 0.0
    %3355 = vmatpush.msra.mxu0 0.0
    %3356 = vmatpush.msra.mxu0 0.0
    %3357 = vmatpush.msra.mxu0 0.0
    %3358 = vmatpush.msra.mxu0 0.0
    %3359 = vmatpush.msra.mxu0 0.0
    %3360 = vmatpush.msra.mxu0 0.0
    %3361 = vmatpush.msra.mxu0 0.0
    %3362 = vmatpush.msra.mxu0 0.0
    %3363 = vmatpush.msra.mxu0 0.0
    %3364 = vmatpush.msra.mxu0 0.0
    %3365 = vmatpush.msra.mxu0 0.0
    %3366 = vmatpush.msra.mxu0 0.0
    %v3367 = vand.u32 %v2089, 4294901760
    %v3368 = vsub.f32 %v2089, %v3367
    %v3369 = vand.u32 %v3368, 4294901760
    %3370 = vmatpush.msra.mxu0 %v3369
    %v3371 = vand.u32 %v2088, 4294901760
    %v3372 = vsub.f32 %v2088, %v3371
    %v3373 = vand.u32 %v3372, 4294901760
    %3374 = vmatpush.msra.mxu0 %v3373
    %v3375 = vand.u32 %v3242, 4294901760
    %3376 = vmatmul.f32.gmra.mxu0 %v3375
    %v3377 = vpop.f32.mrf.mxu0
    %v3378 = vadd.f32 %v3351, %v3377
    %3379 = vdwg.mxu0
    %3380 = vmatpush.msra.mxu0 0.0
    %3381 = vmatpush.msra.mxu0 0.0
    %3382 = vmatpush.msra.mxu0 0.0
    %3383 = vmatpush.msra.mxu0 0.0
    %3384 = vmatpush.msra.mxu0 0.0
    %3385 = vmatpush.msra.mxu0 0.0
    %3386 = vmatpush.msra.mxu0 0.0
    %3387 = vmatpush.msra.mxu0 0.0
    %3388 = vmatpush.msra.mxu0 0.0
    %3389 = vmatpush.msra.mxu0 0.0
    %3390 = vmatpush.msra.mxu0 0.0
    %3391 = vmatpush.msra.mxu0 0.0
    %3392 = vmatpush.msra.mxu0 0.0
    %3393 = vmatpush.msra.mxu0 0.0
    %v3394 = vand.u32 %v2089, 4294901760
    %3395 = vmatpush.msra.mxu0 %v3394
    %v3396 = vand.u32 %v2088, 4294901760
    %3397 = vmatpush.msra.mxu0 %v3396
    %v3398 = vand.u32 %v3242, 4294901760
    %3399 = vmatmul.f32.gmra.mxu0 %v3398
    %v3400 = vpop.f32.mrf.mxu0
    %v3401 = vadd.f32 %v3378, %v3400
    %3402 = vdwg.mxu0
    %v3404 = vsel %vm2106, %v2090, 0
    %3406 = vmatpush.msra.mxu0 0.0
    %3407 = vmatpush.msra.mxu0 0.0
    %3408 = vmatpush.msra.mxu0 0.0
    %3409 = vmatpush.msra.mxu0 0.0
    %3410 = vmatpush.msra.mxu0 0.0
    %3411 = vmatpush.msra.mxu0 0.0
    %3412 = vmatpush.msra.mxu0 0.0
    %3413 = vmatpush.msra.mxu0 0.0
    %3414 = vmatpush.msra.mxu0 0.0
    %3415 = vmatpush.msra.mxu0 0.0
    %3416 = vmatpush.msra.mxu0 0.0
    %3417 = vmatpush.msra.mxu0 0.0
    %3418 = vmatpush.msra.mxu0 0.0
    %3419 = vmatpush.msra.mxu0 0.0
    %v3420 = vand.u32 %v2087, 4294901760
    %3421 = vmatpush.msra.mxu0 %v3420
    %v3422 = vand.u32 %v2086, 4294901760
    %3423 = vmatpush.msra.mxu0 %v3422
    %v3424 = vand.u32 %v3404, 4294901760
    %v3425 = vsub.f32 %v3404, %v3424
    %v3426 = vand.u32 %v3425, 4294901760
    %v3427 = vsub.f32 %v3425, %v3426
    %v3428 = vand.u32 %v3427, 4294901760
    %3429 = vmatmul.f32.gmra.mxu0 %v3428
    %v3430 = vpop.f32.mrf.mxu0
    %v3431 = vadd.f32 %v2267, %v3430
    %3432 = vdwg.mxu0
    %3433 = vmatpush.msra.mxu0 0.0
    %3434 = vmatpush.msra.mxu0 0.0
    %3435 = vmatpush.msra.mxu0 0.0
    %3436 = vmatpush.msra.mxu0 0.0
    %3437 = vmatpush.msra.mxu0 0.0
    %3438 = vmatpush.msra.mxu0 0.0
    %3439 = vmatpush.msra.mxu0 0.0
    %3440 = vmatpush.msra.mxu0 0.0
    %3441 = vmatpush.msra.mxu0 0.0
    %3442 = vmatpush.msra.mxu0 0.0
    %3443 = vmatpush.msra.mxu0 0.0
    %3444 = vmatpush.msra.mxu0 0.0
    %3445 = vmatpush.msra.mxu0 0.0
    %3446 = vmatpush.msra.mxu0 0.0
    %v3447 = vand.u32 %v2087, 4294901760
    %v3448 = vsub.f32 %v2087, %v3447
    %v3449 = vand.u32 %v3448, 4294901760
    %v3450 = vsub.f32 %v3448, %v3449
    %v3451 = vand.u32 %v3450, 4294901760
    %3452 = vmatpush.msra.mxu0 %v3451
    %v3453 = vand.u32 %v2086, 4294901760
    %v3454 = vsub.f32 %v2086, %v3453
    %v3455 = vand.u32 %v3454, 4294901760
    %v3456 = vsub.f32 %v3454, %v3455
    %v3457 = vand.u32 %v3456, 4294901760
    %3458 = vmatpush.msra.mxu0 %v3457
    %v3459 = vand.u32 %v3404, 4294901760
    %3460 = vmatmul.f32.gmra.mxu0 %v3459
    %v3461 = vpop.f32.mrf.mxu0
    %v3462 = vadd.f32 %v3431, %v3461
    %3463 = vdwg.mxu0
    %3464 = vmatpush.msra.mxu0 0.0
    %3465 = vmatpush.msra.mxu0 0.0
    %3466 = vmatpush.msra.mxu0 0.0
    %3467 = vmatpush.msra.mxu0 0.0
    %3468 = vmatpush.msra.mxu0 0.0
    %3469 = vmatpush.msra.mxu0 0.0
    %3470 = vmatpush.msra.mxu0 0.0
    %3471 = vmatpush.msra.mxu0 0.0
    %3472 = vmatpush.msra.mxu0 0.0
    %3473 = vmatpush.msra.mxu0 0.0
    %3474 = vmatpush.msra.mxu0 0.0
    %3475 = vmatpush.msra.mxu0 0.0
    %3476 = vmatpush.msra.mxu0 0.0
    %3477 = vmatpush.msra.mxu0 0.0
    %v3478 = vand.u32 %v2087, 4294901760
    %v3479 = vsub.f32 %v2087, %v3478
    %3480 = vmatpush.msra.mxu0 %v3479
    %v3481 = vand.u32 %v2086, 4294901760
    %v3482 = vsub.f32 %v2086, %v3481
    %3483 = vmatpush.msra.mxu0 %v3482
    %v3484 = vand.u32 %v3404, 4294901760
    %v3485 = vsub.f32 %v3404, %v3484
    %3486 = vmatmul.f32.gmra.mxu0 %v3485
    %v3487 = vpop.f32.mrf.mxu0
    %v3488 = vadd.f32 %v3462, %v3487
    %3489 = vdwg.mxu0
    %3490 = vmatpush.msra.mxu0 0.0
    %3491 = vmatpush.msra.mxu0 0.0
    %3492 = vmatpush.msra.mxu0 0.0
    %3493 = vmatpush.msra.mxu0 0.0
    %3494 = vmatpush.msra.mxu0 0.0
    %3495 = vmatpush.msra.mxu0 0.0
    %3496 = vmatpush.msra.mxu0 0.0
    %3497 = vmatpush.msra.mxu0 0.0
    %3498 = vmatpush.msra.mxu0 0.0
    %3499 = vmatpush.msra.mxu0 0.0
    %3500 = vmatpush.msra.mxu0 0.0
    %3501 = vmatpush.msra.mxu0 0.0
    %3502 = vmatpush.msra.mxu0 0.0
    %3503 = vmatpush.msra.mxu0 0.0
    %v3504 = vand.u32 %v2087, 4294901760
    %3505 = vmatpush.msra.mxu0 %v3504
    %v3506 = vand.u32 %v2086, 4294901760
    %3507 = vmatpush.msra.mxu0 %v3506
    %v3508 = vand.u32 %v3404, 4294901760
    %v3509 = vsub.f32 %v3404, %v3508
    %v3510 = vand.u32 %v3509, 4294901760
    %3511 = vmatmul.f32.gmra.mxu0 %v3510
    %v3512 = vpop.f32.mrf.mxu0
    %v3513 = vadd.f32 %v3488, %v3512
    %3514 = vdwg.mxu0
    %3515 = vmatpush.msra.mxu0 0.0
    %3516 = vmatpush.msra.mxu0 0.0
    %3517 = vmatpush.msra.mxu0 0.0
    %3518 = vmatpush.msra.mxu0 0.0
    %3519 = vmatpush.msra.mxu0 0.0
    %3520 = vmatpush.msra.mxu0 0.0
    %3521 = vmatpush.msra.mxu0 0.0
    %3522 = vmatpush.msra.mxu0 0.0
    %3523 = vmatpush.msra.mxu0 0.0
    %3524 = vmatpush.msra.mxu0 0.0
    %3525 = vmatpush.msra.mxu0 0.0
    %3526 = vmatpush.msra.mxu0 0.0
    %3527 = vmatpush.msra.mxu0 0.0
    %3528 = vmatpush.msra.mxu0 0.0
    %v3529 = vand.u32 %v2087, 4294901760
    %v3530 = vsub.f32 %v2087, %v3529
    %v3531 = vand.u32 %v3530, 4294901760
    %3532 = vmatpush.msra.mxu0 %v3531
    %v3533 = vand.u32 %v2086, 4294901760
    %v3534 = vsub.f32 %v2086, %v3533
    %v3535 = vand.u32 %v3534, 4294901760
    %3536 = vmatpush.msra.mxu0 %v3535
    %v3537 = vand.u32 %v3404, 4294901760
    %3538 = vmatmul.f32.gmra.mxu0 %v3537
    %v3539 = vpop.f32.mrf.mxu0
    %v3540 = vadd.f32 %v3513, %v3539
    %3541 = vdwg.mxu0
    %3542 = vmatpush.msra.mxu0 0.0
    %3543 = vmatpush.msra.mxu0 0.0
    %3544 = vmatpush.msra.mxu0 0.0
    %3545 = vmatpush.msra.mxu0 0.0
    %3546 = vmatpush.msra.mxu0 0.0
    %3547 = vmatpush.msra.mxu0 0.0
    %3548 = vmatpush.msra.mxu0 0.0
    %3549 = vmatpush.msra.mxu0 0.0
    %3550 = vmatpush.msra.mxu0 0.0
    %3551 = vmatpush.msra.mxu0 0.0
    %3552 = vmatpush.msra.mxu0 0.0
    %3553 = vmatpush.msra.mxu0 0.0
    %3554 = vmatpush.msra.mxu0 0.0
    %3555 = vmatpush.msra.mxu0 0.0
    %v3556 = vand.u32 %v2087, 4294901760
    %3557 = vmatpush.msra.mxu0 %v3556
    %v3558 = vand.u32 %v2086, 4294901760
    %3559 = vmatpush.msra.mxu0 %v3558
    %v3560 = vand.u32 %v3404, 4294901760
    %3561 = vmatmul.f32.gmra.mxu0 %v3560
    %v3562 = vpop.f32.mrf.mxu0
    %v3563 = vadd.f32 %v3540, %v3562
    %3564 = vdwg.mxu0
    %v3566 = vsel %vm2106, %v2091, 0
    %3568 = vmatpush.msra.mxu0 0.0
    %3569 = vmatpush.msra.mxu0 0.0
    %3570 = vmatpush.msra.mxu0 0.0
    %3571 = vmatpush.msra.mxu0 0.0
    %3572 = vmatpush.msra.mxu0 0.0
    %3573 = vmatpush.msra.mxu0 0.0
    %3574 = vmatpush.msra.mxu0 0.0
    %3575 = vmatpush.msra.mxu0 0.0
    %3576 = vmatpush.msra.mxu0 0.0
    %3577 = vmatpush.msra.mxu0 0.0
    %3578 = vmatpush.msra.mxu0 0.0
    %3579 = vmatpush.msra.mxu0 0.0
    %3580 = vmatpush.msra.mxu0 0.0
    %3581 = vmatpush.msra.mxu0 0.0
    %v3582 = vand.u32 %v2087, 4294901760
    %3583 = vmatpush.msra.mxu0 %v3582
    %v3584 = vand.u32 %v2086, 4294901760
    %3585 = vmatpush.msra.mxu0 %v3584
    %v3586 = vand.u32 %v3566, 4294901760
    %v3587 = vsub.f32 %v3566, %v3586
    %v3588 = vand.u32 %v3587, 4294901760
    %v3589 = vsub.f32 %v3587, %v3588
    %v3590 = vand.u32 %v3589, 4294901760
    %3591 = vmatmul.f32.gmra.mxu0 %v3590
    %v3592 = vpop.f32.mrf.mxu0
    %v3593 = vadd.f32 %v2429, %v3592
    %3594 = vdwg.mxu0
    %3595 = vmatpush.msra.mxu0 0.0
    %3596 = vmatpush.msra.mxu0 0.0
    %3597 = vmatpush.msra.mxu0 0.0
    %3598 = vmatpush.msra.mxu0 0.0
    %3599 = vmatpush.msra.mxu0 0.0
    %3600 = vmatpush.msra.mxu0 0.0
    %3601 = vmatpush.msra.mxu0 0.0
    %3602 = vmatpush.msra.mxu0 0.0
    %3603 = vmatpush.msra.mxu0 0.0
    %3604 = vmatpush.msra.mxu0 0.0
    %3605 = vmatpush.msra.mxu0 0.0
    %3606 = vmatpush.msra.mxu0 0.0
    %3607 = vmatpush.msra.mxu0 0.0
    %3608 = vmatpush.msra.mxu0 0.0
    %v3609 = vand.u32 %v2087, 4294901760
    %v3610 = vsub.f32 %v2087, %v3609
    %v3611 = vand.u32 %v3610, 4294901760
    %v3612 = vsub.f32 %v3610, %v3611
    %v3613 = vand.u32 %v3612, 4294901760
    %3614 = vmatpush.msra.mxu0 %v3613
    %v3615 = vand.u32 %v2086, 4294901760
    %v3616 = vsub.f32 %v2086, %v3615
    %v3617 = vand.u32 %v3616, 4294901760
    %v3618 = vsub.f32 %v3616, %v3617
    %v3619 = vand.u32 %v3618, 4294901760
    %3620 = vmatpush.msra.mxu0 %v3619
    %v3621 = vand.u32 %v3566, 4294901760
    %3622 = vmatmul.f32.gmra.mxu0 %v3621
    %v3623 = vpop.f32.mrf.mxu0
    %v3624 = vadd.f32 %v3593, %v3623
    %3625 = vdwg.mxu0
    %3626 = vmatpush.msra.mxu0 0.0
    %3627 = vmatpush.msra.mxu0 0.0
    %3628 = vmatpush.msra.mxu0 0.0
    %3629 = vmatpush.msra.mxu0 0.0
    %3630 = vmatpush.msra.mxu0 0.0
    %3631 = vmatpush.msra.mxu0 0.0
    %3632 = vmatpush.msra.mxu0 0.0
    %3633 = vmatpush.msra.mxu0 0.0
    %3634 = vmatpush.msra.mxu0 0.0
    %3635 = vmatpush.msra.mxu0 0.0
    %3636 = vmatpush.msra.mxu0 0.0
    %3637 = vmatpush.msra.mxu0 0.0
    %3638 = vmatpush.msra.mxu0 0.0
    %3639 = vmatpush.msra.mxu0 0.0
    %v3640 = vand.u32 %v2087, 4294901760
    %v3641 = vsub.f32 %v2087, %v3640
    %3642 = vmatpush.msra.mxu0 %v3641
    %v3643 = vand.u32 %v2086, 4294901760
    %v3644 = vsub.f32 %v2086, %v3643
    %3645 = vmatpush.msra.mxu0 %v3644
    %v3646 = vand.u32 %v3566, 4294901760
    %v3647 = vsub.f32 %v3566, %v3646
    %3648 = vmatmul.f32.gmra.mxu0 %v3647
    %v3649 = vpop.f32.mrf.mxu0
    %v3650 = vadd.f32 %v3624, %v3649
    %3651 = vdwg.mxu0
    %3652 = vmatpush.msra.mxu0 0.0
    %3653 = vmatpush.msra.mxu0 0.0
    %3654 = vmatpush.msra.mxu0 0.0
    %3655 = vmatpush.msra.mxu0 0.0
    %3656 = vmatpush.msra.mxu0 0.0
    %3657 = vmatpush.msra.mxu0 0.0
    %3658 = vmatpush.msra.mxu0 0.0
    %3659 = vmatpush.msra.mxu0 0.0
    %3660 = vmatpush.msra.mxu0 0.0
    %3661 = vmatpush.msra.mxu0 0.0
    %3662 = vmatpush.msra.mxu0 0.0
    %3663 = vmatpush.msra.mxu0 0.0
    %3664 = vmatpush.msra.mxu0 0.0
    %3665 = vmatpush.msra.mxu0 0.0
    %v3666 = vand.u32 %v2087, 4294901760
    %3667 = vmatpush.msra.mxu0 %v3666
    %v3668 = vand.u32 %v2086, 4294901760
    %3669 = vmatpush.msra.mxu0 %v3668
    %v3670 = vand.u32 %v3566, 4294901760
    %v3671 = vsub.f32 %v3566, %v3670
    %v3672 = vand.u32 %v3671, 4294901760
    %3673 = vmatmul.f32.gmra.mxu0 %v3672
    %v3674 = vpop.f32.mrf.mxu0
    %v3675 = vadd.f32 %v3650, %v3674
    %3676 = vdwg.mxu0
    %3677 = vmatpush.msra.mxu0 0.0
    %3678 = vmatpush.msra.mxu0 0.0
    %3679 = vmatpush.msra.mxu0 0.0
    %3680 = vmatpush.msra.mxu0 0.0
    %3681 = vmatpush.msra.mxu0 0.0
    %3682 = vmatpush.msra.mxu0 0.0
    %3683 = vmatpush.msra.mxu0 0.0
    %3684 = vmatpush.msra.mxu0 0.0
    %3685 = vmatpush.msra.mxu0 0.0
    %3686 = vmatpush.msra.mxu0 0.0
    %3687 = vmatpush.msra.mxu0 0.0
    %3688 = vmatpush.msra.mxu0 0.0
    %3689 = vmatpush.msra.mxu0 0.0
    %3690 = vmatpush.msra.mxu0 0.0
    %v3691 = vand.u32 %v2087, 4294901760
    %v3692 = vsub.f32 %v2087, %v3691
    %v3693 = vand.u32 %v3692, 4294901760
    %3694 = vmatpush.msra.mxu0 %v3693
    %v3695 = vand.u32 %v2086, 4294901760
    %v3696 = vsub.f32 %v2086, %v3695
    %v3697 = vand.u32 %v3696, 4294901760
    %3698 = vmatpush.msra.mxu0 %v3697
    %v3699 = vand.u32 %v3566, 4294901760
    %3700 = vmatmul.f32.gmra.mxu0 %v3699
    %v3701 = vpop.f32.mrf.mxu0
    %v3702 = vadd.f32 %v3675, %v3701
    %3703 = vdwg.mxu0
    %3704 = vmatpush.msra.mxu0 0.0
    %3705 = vmatpush.msra.mxu0 0.0
    %3706 = vmatpush.msra.mxu0 0.0
    %3707 = vmatpush.msra.mxu0 0.0
    %3708 = vmatpush.msra.mxu0 0.0
    %3709 = vmatpush.msra.mxu0 0.0
    %3710 = vmatpush.msra.mxu0 0.0
    %3711 = vmatpush.msra.mxu0 0.0
    %3712 = vmatpush.msra.mxu0 0.0
    %3713 = vmatpush.msra.mxu0 0.0
    %3714 = vmatpush.msra.mxu0 0.0
    %3715 = vmatpush.msra.mxu0 0.0
    %3716 = vmatpush.msra.mxu0 0.0
    %3717 = vmatpush.msra.mxu0 0.0
    %v3718 = vand.u32 %v2087, 4294901760
    %3719 = vmatpush.msra.mxu0 %v3718
    %v3720 = vand.u32 %v2086, 4294901760
    %3721 = vmatpush.msra.mxu0 %v3720
    %v3722 = vand.u32 %v3566, 4294901760
    %3723 = vmatmul.f32.gmra.mxu0 %v3722
    %v3724 = vpop.f32.mrf.mxu0
    %v3725 = vadd.f32 %v3702, %v3724
    %3726 = vdwg.mxu0
    %v3728 = vsel %vm2106, %v2092, 0
    %3730 = vmatpush.msra.mxu0 0.0
    %3731 = vmatpush.msra.mxu0 0.0
    %3732 = vmatpush.msra.mxu0 0.0
    %3733 = vmatpush.msra.mxu0 0.0
    %3734 = vmatpush.msra.mxu0 0.0
    %3735 = vmatpush.msra.mxu0 0.0
    %3736 = vmatpush.msra.mxu0 0.0
    %3737 = vmatpush.msra.mxu0 0.0
    %3738 = vmatpush.msra.mxu0 0.0
    %3739 = vmatpush.msra.mxu0 0.0
    %3740 = vmatpush.msra.mxu0 0.0
    %3741 = vmatpush.msra.mxu0 0.0
    %3742 = vmatpush.msra.mxu0 0.0
    %3743 = vmatpush.msra.mxu0 0.0
    %v3744 = vand.u32 %v2087, 4294901760
    %3745 = vmatpush.msra.mxu0 %v3744
    %v3746 = vand.u32 %v2086, 4294901760
    %3747 = vmatpush.msra.mxu0 %v3746
    %v3748 = vand.u32 %v3728, 4294901760
    %v3749 = vsub.f32 %v3728, %v3748
    %v3750 = vand.u32 %v3749, 4294901760
    %v3751 = vsub.f32 %v3749, %v3750
    %v3752 = vand.u32 %v3751, 4294901760
    %3753 = vmatmul.f32.gmra.mxu0 %v3752
    %v3754 = vpop.f32.mrf.mxu0
    %v3755 = vadd.f32 %v2591, %v3754
    %3756 = vdwg.mxu0
    %3757 = vmatpush.msra.mxu0 0.0
    %3758 = vmatpush.msra.mxu0 0.0
    %3759 = vmatpush.msra.mxu0 0.0
    %3760 = vmatpush.msra.mxu0 0.0
    %3761 = vmatpush.msra.mxu0 0.0
    %3762 = vmatpush.msra.mxu0 0.0
    %3763 = vmatpush.msra.mxu0 0.0
    %3764 = vmatpush.msra.mxu0 0.0
    %3765 = vmatpush.msra.mxu0 0.0
    %3766 = vmatpush.msra.mxu0 0.0
    %3767 = vmatpush.msra.mxu0 0.0
    %3768 = vmatpush.msra.mxu0 0.0
    %3769 = vmatpush.msra.mxu0 0.0
    %3770 = vmatpush.msra.mxu0 0.0
    %v3771 = vand.u32 %v2087, 4294901760
    %v3772 = vsub.f32 %v2087, %v3771
    %v3773 = vand.u32 %v3772, 4294901760
    %v3774 = vsub.f32 %v3772, %v3773
    %v3775 = vand.u32 %v3774, 4294901760
    %3776 = vmatpush.msra.mxu0 %v3775
    %v3777 = vand.u32 %v2086, 4294901760
    %v3778 = vsub.f32 %v2086, %v3777
    %v3779 = vand.u32 %v3778, 4294901760
    %v3780 = vsub.f32 %v3778, %v3779
    %v3781 = vand.u32 %v3780, 4294901760
    %3782 = vmatpush.msra.mxu0 %v3781
    %v3783 = vand.u32 %v3728, 4294901760
    %3784 = vmatmul.f32.gmra.mxu0 %v3783
    %v3785 = vpop.f32.mrf.mxu0
    %v3786 = vadd.f32 %v3755, %v3785
    %3787 = vdwg.mxu0
    %3788 = vmatpush.msra.mxu0 0.0
    %3789 = vmatpush.msra.mxu0 0.0
    %3790 = vmatpush.msra.mxu0 0.0
    %3791 = vmatpush.msra.mxu0 0.0
    %3792 = vmatpush.msra.mxu0 0.0
    %3793 = vmatpush.msra.mxu0 0.0
    %3794 = vmatpush.msra.mxu0 0.0
    %3795 = vmatpush.msra.mxu0 0.0
    %3796 = vmatpush.msra.mxu0 0.0
    %3797 = vmatpush.msra.mxu0 0.0
    %3798 = vmatpush.msra.mxu0 0.0
    %3799 = vmatpush.msra.mxu0 0.0
    %3800 = vmatpush.msra.mxu0 0.0
    %3801 = vmatpush.msra.mxu0 0.0
    %v3802 = vand.u32 %v2087, 4294901760
    %v3803 = vsub.f32 %v2087, %v3802
    %3804 = vmatpush.msra.mxu0 %v3803
    %v3805 = vand.u32 %v2086, 4294901760
    %v3806 = vsub.f32 %v2086, %v3805
    %3807 = vmatpush.msra.mxu0 %v3806
    %v3808 = vand.u32 %v3728, 4294901760
    %v3809 = vsub.f32 %v3728, %v3808
    %3810 = vmatmul.f32.gmra.mxu0 %v3809
    %v3811 = vpop.f32.mrf.mxu0
    %v3812 = vadd.f32 %v3786, %v3811
    %3813 = vdwg.mxu0
    %3814 = vmatpush.msra.mxu0 0.0
    %3815 = vmatpush.msra.mxu0 0.0
    %3816 = vmatpush.msra.mxu0 0.0
    %3817 = vmatpush.msra.mxu0 0.0
    %3818 = vmatpush.msra.mxu0 0.0
    %3819 = vmatpush.msra.mxu0 0.0
    %3820 = vmatpush.msra.mxu0 0.0
    %3821 = vmatpush.msra.mxu0 0.0
    %3822 = vmatpush.msra.mxu0 0.0
    %3823 = vmatpush.msra.mxu0 0.0
    %3824 = vmatpush.msra.mxu0 0.0
    %3825 = vmatpush.msra.mxu0 0.0
    %3826 = vmatpush.msra.mxu0 0.0
    %3827 = vmatpush.msra.mxu0 0.0
    %v3828 = vand.u32 %v2087, 4294901760
    %3829 = vmatpush.msra.mxu0 %v3828
    %v3830 = vand.u32 %v2086, 4294901760
    %3831 = vmatpush.msra.mxu0 %v3830
    %v3832 = vand.u32 %v3728, 4294901760
    %v3833 = vsub.f32 %v3728, %v3832
    %v3834 = vand.u32 %v3833, 4294901760
    %3835 = vmatmul.f32.gmra.mxu0 %v3834
    %v3836 = vpop.f32.mrf.mxu0
    %v3837 = vadd.f32 %v3812, %v3836
    %3838 = vdwg.mxu0
    %3839 = vmatpush.msra.mxu0 0.0
    %3840 = vmatpush.msra.mxu0 0.0
    %3841 = vmatpush.msra.mxu0 0.0
    %3842 = vmatpush.msra.mxu0 0.0
    %3843 = vmatpush.msra.mxu0 0.0
    %3844 = vmatpush.msra.mxu0 0.0
    %3845 = vmatpush.msra.mxu0 0.0
    %3846 = vmatpush.msra.mxu0 0.0
    %3847 = vmatpush.msra.mxu0 0.0
    %3848 = vmatpush.msra.mxu0 0.0
    %3849 = vmatpush.msra.mxu0 0.0
    %3850 = vmatpush.msra.mxu0 0.0
    %3851 = vmatpush.msra.mxu0 0.0
    %3852 = vmatpush.msra.mxu0 0.0
    %v3853 = vand.u32 %v2087, 4294901760
    %v3854 = vsub.f32 %v2087, %v3853
    %v3855 = vand.u32 %v3854, 4294901760
    %3856 = vmatpush.msra.mxu0 %v3855
    %v3857 = vand.u32 %v2086, 4294901760
    %v3858 = vsub.f32 %v2086, %v3857
    %v3859 = vand.u32 %v3858, 4294901760
    %3860 = vmatpush.msra.mxu0 %v3859
    %v3861 = vand.u32 %v3728, 4294901760
    %3862 = vmatmul.f32.gmra.mxu0 %v3861
    %v3863 = vpop.f32.mrf.mxu0
    %v3864 = vadd.f32 %v3837, %v3863
    %3865 = vdwg.mxu0
    %3866 = vmatpush.msra.mxu0 0.0
    %3867 = vmatpush.msra.mxu0 0.0
    %3868 = vmatpush.msra.mxu0 0.0
    %3869 = vmatpush.msra.mxu0 0.0
    %3870 = vmatpush.msra.mxu0 0.0
    %3871 = vmatpush.msra.mxu0 0.0
    %3872 = vmatpush.msra.mxu0 0.0
    %3873 = vmatpush.msra.mxu0 0.0
    %3874 = vmatpush.msra.mxu0 0.0
    %3875 = vmatpush.msra.mxu0 0.0
    %3876 = vmatpush.msra.mxu0 0.0
    %3877 = vmatpush.msra.mxu0 0.0
    %3878 = vmatpush.msra.mxu0 0.0
    %3879 = vmatpush.msra.mxu0 0.0
    %v3880 = vand.u32 %v2087, 4294901760
    %3881 = vmatpush.msra.mxu0 %v3880
    %v3882 = vand.u32 %v2086, 4294901760
    %3883 = vmatpush.msra.mxu0 %v3882
    %v3884 = vand.u32 %v3728, 4294901760
    %3885 = vmatmul.f32.gmra.mxu0 %v3884
    %v3886 = vpop.f32.mrf.mxu0
    %v3887 = vadd.f32 %v3864, %v3886
    %3888 = vdwg.mxu0
    %v3890 = vsel %vm2106, %v2093, 0
    %3892 = vmatpush.msra.mxu0 0.0
    %3893 = vmatpush.msra.mxu0 0.0
    %3894 = vmatpush.msra.mxu0 0.0
    %3895 = vmatpush.msra.mxu0 0.0
    %3896 = vmatpush.msra.mxu0 0.0
    %3897 = vmatpush.msra.mxu0 0.0
    %3898 = vmatpush.msra.mxu0 0.0
    %3899 = vmatpush.msra.mxu0 0.0
    %3900 = vmatpush.msra.mxu0 0.0
    %3901 = vmatpush.msra.mxu0 0.0
    %3902 = vmatpush.msra.mxu0 0.0
    %3903 = vmatpush.msra.mxu0 0.0
    %3904 = vmatpush.msra.mxu0 0.0
    %3905 = vmatpush.msra.mxu0 0.0
    %v3906 = vand.u32 %v2087, 4294901760
    %3907 = vmatpush.msra.mxu0 %v3906
    %v3908 = vand.u32 %v2086, 4294901760
    %3909 = vmatpush.msra.mxu0 %v3908
    %v3910 = vand.u32 %v3890, 4294901760
    %v3911 = vsub.f32 %v3890, %v3910
    %v3912 = vand.u32 %v3911, 4294901760
    %v3913 = vsub.f32 %v3911, %v3912
    %v3914 = vand.u32 %v3913, 4294901760
    %3915 = vmatmul.f32.gmra.mxu0 %v3914
    %v3916 = vpop.f32.mrf.mxu0
    %v3917 = vadd.f32 %v2753, %v3916
    %3918 = vdwg.mxu0
    %3919 = vmatpush.msra.mxu0 0.0
    %3920 = vmatpush.msra.mxu0 0.0
    %3921 = vmatpush.msra.mxu0 0.0
    %3922 = vmatpush.msra.mxu0 0.0
    %3923 = vmatpush.msra.mxu0 0.0
    %3924 = vmatpush.msra.mxu0 0.0
    %3925 = vmatpush.msra.mxu0 0.0
    %3926 = vmatpush.msra.mxu0 0.0
    %3927 = vmatpush.msra.mxu0 0.0
    %3928 = vmatpush.msra.mxu0 0.0
    %3929 = vmatpush.msra.mxu0 0.0
    %3930 = vmatpush.msra.mxu0 0.0
    %3931 = vmatpush.msra.mxu0 0.0
    %3932 = vmatpush.msra.mxu0 0.0
    %v3933 = vand.u32 %v2087, 4294901760
    %v3934 = vsub.f32 %v2087, %v3933
    %v3935 = vand.u32 %v3934, 4294901760
    %v3936 = vsub.f32 %v3934, %v3935
    %v3937 = vand.u32 %v3936, 4294901760
    %3938 = vmatpush.msra.mxu0 %v3937
    %v3939 = vand.u32 %v2086, 4294901760
    %v3940 = vsub.f32 %v2086, %v3939
    %v3941 = vand.u32 %v3940, 4294901760
    %v3942 = vsub.f32 %v3940, %v3941
    %v3943 = vand.u32 %v3942, 4294901760
    %3944 = vmatpush.msra.mxu0 %v3943
    %v3945 = vand.u32 %v3890, 4294901760
    %3946 = vmatmul.f32.gmra.mxu0 %v3945
    %v3947 = vpop.f32.mrf.mxu0
    %v3948 = vadd.f32 %v3917, %v3947
    %3949 = vdwg.mxu0
    %3950 = vmatpush.msra.mxu0 0.0
    %3951 = vmatpush.msra.mxu0 0.0
    %3952 = vmatpush.msra.mxu0 0.0
    %3953 = vmatpush.msra.mxu0 0.0
    %3954 = vmatpush.msra.mxu0 0.0
    %3955 = vmatpush.msra.mxu0 0.0
    %3956 = vmatpush.msra.mxu0 0.0
    %3957 = vmatpush.msra.mxu0 0.0
    %3958 = vmatpush.msra.mxu0 0.0
    %3959 = vmatpush.msra.mxu0 0.0
    %3960 = vmatpush.msra.mxu0 0.0
    %3961 = vmatpush.msra.mxu0 0.0
    %3962 = vmatpush.msra.mxu0 0.0
    %3963 = vmatpush.msra.mxu0 0.0
    %v3964 = vand.u32 %v2087, 4294901760
    %v3965 = vsub.f32 %v2087, %v3964
    %3966 = vmatpush.msra.mxu0 %v3965
    %v3967 = vand.u32 %v2086, 4294901760
    %v3968 = vsub.f32 %v2086, %v3967
    %3969 = vmatpush.msra.mxu0 %v3968
    %v3970 = vand.u32 %v3890, 4294901760
    %v3971 = vsub.f32 %v3890, %v3970
    %3972 = vmatmul.f32.gmra.mxu0 %v3971
    %v3973 = vpop.f32.mrf.mxu0
    %v3974 = vadd.f32 %v3948, %v3973
    %3975 = vdwg.mxu0
    %3976 = vmatpush.msra.mxu0 0.0
    %3977 = vmatpush.msra.mxu0 0.0
    %3978 = vmatpush.msra.mxu0 0.0
    %3979 = vmatpush.msra.mxu0 0.0
    %3980 = vmatpush.msra.mxu0 0.0
    %3981 = vmatpush.msra.mxu0 0.0
    %3982 = vmatpush.msra.mxu0 0.0
    %3983 = vmatpush.msra.mxu0 0.0
    %3984 = vmatpush.msra.mxu0 0.0
    %3985 = vmatpush.msra.mxu0 0.0
    %3986 = vmatpush.msra.mxu0 0.0
    %3987 = vmatpush.msra.mxu0 0.0
    %3988 = vmatpush.msra.mxu0 0.0
    %3989 = vmatpush.msra.mxu0 0.0
    %v3990 = vand.u32 %v2087, 4294901760
    %3991 = vmatpush.msra.mxu0 %v3990
    %v3992 = vand.u32 %v2086, 4294901760
    %3993 = vmatpush.msra.mxu0 %v3992
    %v3994 = vand.u32 %v3890, 4294901760
    %v3995 = vsub.f32 %v3890, %v3994
    %v3996 = vand.u32 %v3995, 4294901760
    %3997 = vmatmul.f32.gmra.mxu0 %v3996
    %v3998 = vpop.f32.mrf.mxu0
    %v3999 = vadd.f32 %v3974, %v3998
    %4000 = vdwg.mxu0
    %4001 = vmatpush.msra.mxu0 0.0
    %4002 = vmatpush.msra.mxu0 0.0
    %4003 = vmatpush.msra.mxu0 0.0
    %4004 = vmatpush.msra.mxu0 0.0
    %4005 = vmatpush.msra.mxu0 0.0
    %4006 = vmatpush.msra.mxu0 0.0
    %4007 = vmatpush.msra.mxu0 0.0
    %4008 = vmatpush.msra.mxu0 0.0
    %4009 = vmatpush.msra.mxu0 0.0
    %4010 = vmatpush.msra.mxu0 0.0
    %4011 = vmatpush.msra.mxu0 0.0
    %4012 = vmatpush.msra.mxu0 0.0
    %4013 = vmatpush.msra.mxu0 0.0
    %4014 = vmatpush.msra.mxu0 0.0
    %v4015 = vand.u32 %v2087, 4294901760
    %v4016 = vsub.f32 %v2087, %v4015
    %v4017 = vand.u32 %v4016, 4294901760
    %4018 = vmatpush.msra.mxu0 %v4017
    %v4019 = vand.u32 %v2086, 4294901760
    %v4020 = vsub.f32 %v2086, %v4019
    %v4021 = vand.u32 %v4020, 4294901760
    %4022 = vmatpush.msra.mxu0 %v4021
    %v4023 = vand.u32 %v3890, 4294901760
    %4024 = vmatmul.f32.gmra.mxu0 %v4023
    %v4025 = vpop.f32.mrf.mxu0
    %v4026 = vadd.f32 %v3999, %v4025
    %4027 = vdwg.mxu0
    %4028 = vmatpush.msra.mxu0 0.0
    %4029 = vmatpush.msra.mxu0 0.0
    %4030 = vmatpush.msra.mxu0 0.0
    %4031 = vmatpush.msra.mxu0 0.0
    %4032 = vmatpush.msra.mxu0 0.0
    %4033 = vmatpush.msra.mxu0 0.0
    %4034 = vmatpush.msra.mxu0 0.0
    %4035 = vmatpush.msra.mxu0 0.0
    %4036 = vmatpush.msra.mxu0 0.0
    %4037 = vmatpush.msra.mxu0 0.0
    %4038 = vmatpush.msra.mxu0 0.0
    %4039 = vmatpush.msra.mxu0 0.0
    %4040 = vmatpush.msra.mxu0 0.0
    %4041 = vmatpush.msra.mxu0 0.0
    %v4042 = vand.u32 %v2087, 4294901760
    %4043 = vmatpush.msra.mxu0 %v4042
    %v4044 = vand.u32 %v2086, 4294901760
    %4045 = vmatpush.msra.mxu0 %v4044
    %v4046 = vand.u32 %v3890, 4294901760
    %4047 = vmatmul.f32.gmra.mxu0 %v4046
    %v4048 = vpop.f32.mrf.mxu0
    %v4049 = vadd.f32 %v4026, %v4048
    %4050 = vdwg.mxu0
    %v4052 = vsel %vm2106, %v2094, 0
    %4054 = vmatpush.msra.mxu0 0.0
    %4055 = vmatpush.msra.mxu0 0.0
    %4056 = vmatpush.msra.mxu0 0.0
    %4057 = vmatpush.msra.mxu0 0.0
    %4058 = vmatpush.msra.mxu0 0.0
    %4059 = vmatpush.msra.mxu0 0.0
    %4060 = vmatpush.msra.mxu0 0.0
    %4061 = vmatpush.msra.mxu0 0.0
    %4062 = vmatpush.msra.mxu0 0.0
    %4063 = vmatpush.msra.mxu0 0.0
    %4064 = vmatpush.msra.mxu0 0.0
    %4065 = vmatpush.msra.mxu0 0.0
    %4066 = vmatpush.msra.mxu0 0.0
    %4067 = vmatpush.msra.mxu0 0.0
    %v4068 = vand.u32 %v2087, 4294901760
    %4069 = vmatpush.msra.mxu0 %v4068
    %v4070 = vand.u32 %v2086, 4294901760
    %4071 = vmatpush.msra.mxu0 %v4070
    %v4072 = vand.u32 %v4052, 4294901760
    %v4073 = vsub.f32 %v4052, %v4072
    %v4074 = vand.u32 %v4073, 4294901760
    %v4075 = vsub.f32 %v4073, %v4074
    %v4076 = vand.u32 %v4075, 4294901760
    %4077 = vmatmul.f32.gmra.mxu0 %v4076
    %v4078 = vpop.f32.mrf.mxu0
    %v4079 = vadd.f32 %v2915, %v4078
    %4080 = vdwg.mxu0
    %4081 = vmatpush.msra.mxu0 0.0
    %4082 = vmatpush.msra.mxu0 0.0
    %4083 = vmatpush.msra.mxu0 0.0
    %4084 = vmatpush.msra.mxu0 0.0
    %4085 = vmatpush.msra.mxu0 0.0
    %4086 = vmatpush.msra.mxu0 0.0
    %4087 = vmatpush.msra.mxu0 0.0
    %4088 = vmatpush.msra.mxu0 0.0
    %4089 = vmatpush.msra.mxu0 0.0
    %4090 = vmatpush.msra.mxu0 0.0
    %4091 = vmatpush.msra.mxu0 0.0
    %4092 = vmatpush.msra.mxu0 0.0
    %4093 = vmatpush.msra.mxu0 0.0
    %4094 = vmatpush.msra.mxu0 0.0
    %v4095 = vand.u32 %v2087, 4294901760
    %v4096 = vsub.f32 %v2087, %v4095
    %v4097 = vand.u32 %v4096, 4294901760
    %v4098 = vsub.f32 %v4096, %v4097
    %v4099 = vand.u32 %v4098, 4294901760
    %4100 = vmatpush.msra.mxu0 %v4099
    %v4101 = vand.u32 %v2086, 4294901760
    %v4102 = vsub.f32 %v2086, %v4101
    %v4103 = vand.u32 %v4102, 4294901760
    %v4104 = vsub.f32 %v4102, %v4103
    %v4105 = vand.u32 %v4104, 4294901760
    %4106 = vmatpush.msra.mxu0 %v4105
    %v4107 = vand.u32 %v4052, 4294901760
    %4108 = vmatmul.f32.gmra.mxu0 %v4107
    %v4109 = vpop.f32.mrf.mxu0
    %v4110 = vadd.f32 %v4079, %v4109
    %4111 = vdwg.mxu0
    %4112 = vmatpush.msra.mxu0 0.0
    %4113 = vmatpush.msra.mxu0 0.0
    %4114 = vmatpush.msra.mxu0 0.0
    %4115 = vmatpush.msra.mxu0 0.0
    %4116 = vmatpush.msra.mxu0 0.0
    %4117 = vmatpush.msra.mxu0 0.0
    %4118 = vmatpush.msra.mxu0 0.0
    %4119 = vmatpush.msra.mxu0 0.0
    %4120 = vmatpush.msra.mxu0 0.0
    %4121 = vmatpush.msra.mxu0 0.0
    %4122 = vmatpush.msra.mxu0 0.0
    %4123 = vmatpush.msra.mxu0 0.0
    %4124 = vmatpush.msra.mxu0 0.0
    %4125 = vmatpush.msra.mxu0 0.0
    %v4126 = vand.u32 %v2087, 4294901760
    %v4127 = vsub.f32 %v2087, %v4126
    %4128 = vmatpush.msra.mxu0 %v4127
    %v4129 = vand.u32 %v2086, 4294901760
    %v4130 = vsub.f32 %v2086, %v4129
    %4131 = vmatpush.msra.mxu0 %v4130
    %v4132 = vand.u32 %v4052, 4294901760
    %v4133 = vsub.f32 %v4052, %v4132
    %4134 = vmatmul.f32.gmra.mxu0 %v4133
    %v4135 = vpop.f32.mrf.mxu0
    %v4136 = vadd.f32 %v4110, %v4135
    %4137 = vdwg.mxu0
    %4138 = vmatpush.msra.mxu0 0.0
    %4139 = vmatpush.msra.mxu0 0.0
    %4140 = vmatpush.msra.mxu0 0.0
    %4141 = vmatpush.msra.mxu0 0.0
    %4142 = vmatpush.msra.mxu0 0.0
    %4143 = vmatpush.msra.mxu0 0.0
    %4144 = vmatpush.msra.mxu0 0.0
    %4145 = vmatpush.msra.mxu0 0.0
    %4146 = vmatpush.msra.mxu0 0.0
    %4147 = vmatpush.msra.mxu0 0.0
    %4148 = vmatpush.msra.mxu0 0.0
    %4149 = vmatpush.msra.mxu0 0.0
    %4150 = vmatpush.msra.mxu0 0.0
    %4151 = vmatpush.msra.mxu0 0.0
    %v4152 = vand.u32 %v2087, 4294901760
    %4153 = vmatpush.msra.mxu0 %v4152
    %v4154 = vand.u32 %v2086, 4294901760
    %4155 = vmatpush.msra.mxu0 %v4154
    %v4156 = vand.u32 %v4052, 4294901760
    %v4157 = vsub.f32 %v4052, %v4156
    %v4158 = vand.u32 %v4157, 4294901760
    %4159 = vmatmul.f32.gmra.mxu0 %v4158
    %v4160 = vpop.f32.mrf.mxu0
    %v4161 = vadd.f32 %v4136, %v4160
    %4162 = vdwg.mxu0
    %4163 = vmatpush.msra.mxu0 0.0
    %4164 = vmatpush.msra.mxu0 0.0
    %4165 = vmatpush.msra.mxu0 0.0
    %4166 = vmatpush.msra.mxu0 0.0
    %4167 = vmatpush.msra.mxu0 0.0
    %4168 = vmatpush.msra.mxu0 0.0
    %4169 = vmatpush.msra.mxu0 0.0
    %4170 = vmatpush.msra.mxu0 0.0
    %4171 = vmatpush.msra.mxu0 0.0
    %4172 = vmatpush.msra.mxu0 0.0
    %4173 = vmatpush.msra.mxu0 0.0
    %4174 = vmatpush.msra.mxu0 0.0
    %4175 = vmatpush.msra.mxu0 0.0
    %4176 = vmatpush.msra.mxu0 0.0
    %v4177 = vand.u32 %v2087, 4294901760
    %v4178 = vsub.f32 %v2087, %v4177
    %v4179 = vand.u32 %v4178, 4294901760
    %4180 = vmatpush.msra.mxu0 %v4179
    %v4181 = vand.u32 %v2086, 4294901760
    %v4182 = vsub.f32 %v2086, %v4181
    %v4183 = vand.u32 %v4182, 4294901760
    %4184 = vmatpush.msra.mxu0 %v4183
    %v4185 = vand.u32 %v4052, 4294901760
    %4186 = vmatmul.f32.gmra.mxu0 %v4185
    %v4187 = vpop.f32.mrf.mxu0
    %v4188 = vadd.f32 %v4161, %v4187
    %4189 = vdwg.mxu0
    %4190 = vmatpush.msra.mxu0 0.0
    %4191 = vmatpush.msra.mxu0 0.0
    %4192 = vmatpush.msra.mxu0 0.0
    %4193 = vmatpush.msra.mxu0 0.0
    %4194 = vmatpush.msra.mxu0 0.0
    %4195 = vmatpush.msra.mxu0 0.0
    %4196 = vmatpush.msra.mxu0 0.0
    %4197 = vmatpush.msra.mxu0 0.0
    %4198 = vmatpush.msra.mxu0 0.0
    %4199 = vmatpush.msra.mxu0 0.0
    %4200 = vmatpush.msra.mxu0 0.0
    %4201 = vmatpush.msra.mxu0 0.0
    %4202 = vmatpush.msra.mxu0 0.0
    %4203 = vmatpush.msra.mxu0 0.0
    %v4204 = vand.u32 %v2087, 4294901760
    %4205 = vmatpush.msra.mxu0 %v4204
    %v4206 = vand.u32 %v2086, 4294901760
    %4207 = vmatpush.msra.mxu0 %v4206
    %v4208 = vand.u32 %v4052, 4294901760
    %4209 = vmatmul.f32.gmra.mxu0 %v4208
    %v4210 = vpop.f32.mrf.mxu0
    %v4211 = vadd.f32 %v4188, %v4210
    %4212 = vdwg.mxu0
    %v4214 = vsel %vm2106, %v2095, 0
    %4216 = vmatpush.msra.mxu0 0.0
    %4217 = vmatpush.msra.mxu0 0.0
    %4218 = vmatpush.msra.mxu0 0.0
    %4219 = vmatpush.msra.mxu0 0.0
    %4220 = vmatpush.msra.mxu0 0.0
    %4221 = vmatpush.msra.mxu0 0.0
    %4222 = vmatpush.msra.mxu0 0.0
    %4223 = vmatpush.msra.mxu0 0.0
    %4224 = vmatpush.msra.mxu0 0.0
    %4225 = vmatpush.msra.mxu0 0.0
    %4226 = vmatpush.msra.mxu0 0.0
    %4227 = vmatpush.msra.mxu0 0.0
    %4228 = vmatpush.msra.mxu0 0.0
    %4229 = vmatpush.msra.mxu0 0.0
    %v4230 = vand.u32 %v2087, 4294901760
    %4231 = vmatpush.msra.mxu0 %v4230
    %v4232 = vand.u32 %v2086, 4294901760
    %4233 = vmatpush.msra.mxu0 %v4232
    %v4234 = vand.u32 %v4214, 4294901760
    %v4235 = vsub.f32 %v4214, %v4234
    %v4236 = vand.u32 %v4235, 4294901760
    %v4237 = vsub.f32 %v4235, %v4236
    %v4238 = vand.u32 %v4237, 4294901760
    %4239 = vmatmul.f32.gmra.mxu0 %v4238
    %v4240 = vpop.f32.mrf.mxu0
    %v4241 = vadd.f32 %v3077, %v4240
    %4242 = vdwg.mxu0
    %4243 = vmatpush.msra.mxu0 0.0
    %4244 = vmatpush.msra.mxu0 0.0
    %4245 = vmatpush.msra.mxu0 0.0
    %4246 = vmatpush.msra.mxu0 0.0
    %4247 = vmatpush.msra.mxu0 0.0
    %4248 = vmatpush.msra.mxu0 0.0
    %4249 = vmatpush.msra.mxu0 0.0
    %4250 = vmatpush.msra.mxu0 0.0
    %4251 = vmatpush.msra.mxu0 0.0
    %4252 = vmatpush.msra.mxu0 0.0
    %4253 = vmatpush.msra.mxu0 0.0
    %4254 = vmatpush.msra.mxu0 0.0
    %4255 = vmatpush.msra.mxu0 0.0
    %4256 = vmatpush.msra.mxu0 0.0
    %v4257 = vand.u32 %v2087, 4294901760
    %v4258 = vsub.f32 %v2087, %v4257
    %v4259 = vand.u32 %v4258, 4294901760
    %v4260 = vsub.f32 %v4258, %v4259
    %v4261 = vand.u32 %v4260, 4294901760
    %4262 = vmatpush.msra.mxu0 %v4261
    %v4263 = vand.u32 %v2086, 4294901760
    %v4264 = vsub.f32 %v2086, %v4263
    %v4265 = vand.u32 %v4264, 4294901760
    %v4266 = vsub.f32 %v4264, %v4265
    %v4267 = vand.u32 %v4266, 4294901760
    %4268 = vmatpush.msra.mxu0 %v4267
    %v4269 = vand.u32 %v4214, 4294901760
    %4270 = vmatmul.f32.gmra.mxu0 %v4269
    %v4271 = vpop.f32.mrf.mxu0
    %v4272 = vadd.f32 %v4241, %v4271
    %4273 = vdwg.mxu0
    %4274 = vmatpush.msra.mxu0 0.0
    %4275 = vmatpush.msra.mxu0 0.0
    %4276 = vmatpush.msra.mxu0 0.0
    %4277 = vmatpush.msra.mxu0 0.0
    %4278 = vmatpush.msra.mxu0 0.0
    %4279 = vmatpush.msra.mxu0 0.0
    %4280 = vmatpush.msra.mxu0 0.0
    %4281 = vmatpush.msra.mxu0 0.0
    %4282 = vmatpush.msra.mxu0 0.0
    %4283 = vmatpush.msra.mxu0 0.0
    %4284 = vmatpush.msra.mxu0 0.0
    %4285 = vmatpush.msra.mxu0 0.0
    %4286 = vmatpush.msra.mxu0 0.0
    %4287 = vmatpush.msra.mxu0 0.0
    %v4288 = vand.u32 %v2087, 4294901760
    %v4289 = vsub.f32 %v2087, %v4288
    %4290 = vmatpush.msra.mxu0 %v4289
    %v4291 = vand.u32 %v2086, 4294901760
    %v4292 = vsub.f32 %v2086, %v4291
    %4293 = vmatpush.msra.mxu0 %v4292
    %v4294 = vand.u32 %v4214, 4294901760
    %v4295 = vsub.f32 %v4214, %v4294
    %4296 = vmatmul.f32.gmra.mxu0 %v4295
    %v4297 = vpop.f32.mrf.mxu0
    %v4298 = vadd.f32 %v4272, %v4297
    %4299 = vdwg.mxu0
    %4300 = vmatpush.msra.mxu0 0.0
    %4301 = vmatpush.msra.mxu0 0.0
    %4302 = vmatpush.msra.mxu0 0.0
    %4303 = vmatpush.msra.mxu0 0.0
    %4304 = vmatpush.msra.mxu0 0.0
    %4305 = vmatpush.msra.mxu0 0.0
    %4306 = vmatpush.msra.mxu0 0.0
    %4307 = vmatpush.msra.mxu0 0.0
    %4308 = vmatpush.msra.mxu0 0.0
    %4309 = vmatpush.msra.mxu0 0.0
    %4310 = vmatpush.msra.mxu0 0.0
    %4311 = vmatpush.msra.mxu0 0.0
    %4312 = vmatpush.msra.mxu0 0.0
    %4313 = vmatpush.msra.mxu0 0.0
    %v4314 = vand.u32 %v2087, 4294901760
    %4315 = vmatpush.msra.mxu0 %v4314
    %v4316 = vand.u32 %v2086, 4294901760
    %4317 = vmatpush.msra.mxu0 %v4316
    %v4318 = vand.u32 %v4214, 4294901760
    %v4319 = vsub.f32 %v4214, %v4318
    %v4320 = vand.u32 %v4319, 4294901760
    %4321 = vmatmul.f32.gmra.mxu0 %v4320
    %v4322 = vpop.f32.mrf.mxu0
    %v4323 = vadd.f32 %v4298, %v4322
    %4324 = vdwg.mxu0
    %4325 = vmatpush.msra.mxu0 0.0
    %4326 = vmatpush.msra.mxu0 0.0
    %4327 = vmatpush.msra.mxu0 0.0
    %4328 = vmatpush.msra.mxu0 0.0
    %4329 = vmatpush.msra.mxu0 0.0
    %4330 = vmatpush.msra.mxu0 0.0
    %4331 = vmatpush.msra.mxu0 0.0
    %4332 = vmatpush.msra.mxu0 0.0
    %4333 = vmatpush.msra.mxu0 0.0
    %4334 = vmatpush.msra.mxu0 0.0
    %4335 = vmatpush.msra.mxu0 0.0
    %4336 = vmatpush.msra.mxu0 0.0
    %4337 = vmatpush.msra.mxu0 0.0
    %4338 = vmatpush.msra.mxu0 0.0
    %v4339 = vand.u32 %v2087, 4294901760
    %v4340 = vsub.f32 %v2087, %v4339
    %v4341 = vand.u32 %v4340, 4294901760
    %4342 = vmatpush.msra.mxu0 %v4341
    %v4343 = vand.u32 %v2086, 4294901760
    %v4344 = vsub.f32 %v2086, %v4343
    %v4345 = vand.u32 %v4344, 4294901760
    %4346 = vmatpush.msra.mxu0 %v4345
    %v4347 = vand.u32 %v4214, 4294901760
    %4348 = vmatmul.f32.gmra.mxu0 %v4347
    %v4349 = vpop.f32.mrf.mxu0
    %v4350 = vadd.f32 %v4323, %v4349
    %4351 = vdwg.mxu0
    %4352 = vmatpush.msra.mxu0 0.0
    %4353 = vmatpush.msra.mxu0 0.0
    %4354 = vmatpush.msra.mxu0 0.0
    %4355 = vmatpush.msra.mxu0 0.0
    %4356 = vmatpush.msra.mxu0 0.0
    %4357 = vmatpush.msra.mxu0 0.0
    %4358 = vmatpush.msra.mxu0 0.0
    %4359 = vmatpush.msra.mxu0 0.0
    %4360 = vmatpush.msra.mxu0 0.0
    %4361 = vmatpush.msra.mxu0 0.0
    %4362 = vmatpush.msra.mxu0 0.0
    %4363 = vmatpush.msra.mxu0 0.0
    %4364 = vmatpush.msra.mxu0 0.0
    %4365 = vmatpush.msra.mxu0 0.0
    %v4366 = vand.u32 %v2087, 4294901760
    %4367 = vmatpush.msra.mxu0 %v4366
    %v4368 = vand.u32 %v2086, 4294901760
    %4369 = vmatpush.msra.mxu0 %v4368
    %v4370 = vand.u32 %v4214, 4294901760
    %4371 = vmatmul.f32.gmra.mxu0 %v4370
    %v4372 = vpop.f32.mrf.mxu0
    %v4373 = vadd.f32 %v4350, %v4372
    %4374 = vdwg.mxu0
    %v4376 = vsel %vm2106, %v2096, 0
    %4378 = vmatpush.msra.mxu0 0.0
    %4379 = vmatpush.msra.mxu0 0.0
    %4380 = vmatpush.msra.mxu0 0.0
    %4381 = vmatpush.msra.mxu0 0.0
    %4382 = vmatpush.msra.mxu0 0.0
    %4383 = vmatpush.msra.mxu0 0.0
    %4384 = vmatpush.msra.mxu0 0.0
    %4385 = vmatpush.msra.mxu0 0.0
    %4386 = vmatpush.msra.mxu0 0.0
    %4387 = vmatpush.msra.mxu0 0.0
    %4388 = vmatpush.msra.mxu0 0.0
    %4389 = vmatpush.msra.mxu0 0.0
    %4390 = vmatpush.msra.mxu0 0.0
    %4391 = vmatpush.msra.mxu0 0.0
    %v4392 = vand.u32 %v2087, 4294901760
    %4393 = vmatpush.msra.mxu0 %v4392
    %v4394 = vand.u32 %v2086, 4294901760
    %4395 = vmatpush.msra.mxu0 %v4394
    %v4396 = vand.u32 %v4376, 4294901760
    %v4397 = vsub.f32 %v4376, %v4396
    %v4398 = vand.u32 %v4397, 4294901760
    %v4399 = vsub.f32 %v4397, %v4398
    %v4400 = vand.u32 %v4399, 4294901760
    %4401 = vmatmul.f32.gmra.mxu0 %v4400
    %v4402 = vpop.f32.mrf.mxu0
    %v4403 = vadd.f32 %v3239, %v4402
    %4404 = vdwg.mxu0
    %4405 = vmatpush.msra.mxu0 0.0
    %4406 = vmatpush.msra.mxu0 0.0
    %4407 = vmatpush.msra.mxu0 0.0
    %4408 = vmatpush.msra.mxu0 0.0
    %4409 = vmatpush.msra.mxu0 0.0
    %4410 = vmatpush.msra.mxu0 0.0
    %4411 = vmatpush.msra.mxu0 0.0
    %4412 = vmatpush.msra.mxu0 0.0
    %4413 = vmatpush.msra.mxu0 0.0
    %4414 = vmatpush.msra.mxu0 0.0
    %4415 = vmatpush.msra.mxu0 0.0
    %4416 = vmatpush.msra.mxu0 0.0
    %4417 = vmatpush.msra.mxu0 0.0
    %4418 = vmatpush.msra.mxu0 0.0
    %v4419 = vand.u32 %v2087, 4294901760
    %v4420 = vsub.f32 %v2087, %v4419
    %v4421 = vand.u32 %v4420, 4294901760
    %v4422 = vsub.f32 %v4420, %v4421
    %v4423 = vand.u32 %v4422, 4294901760
    %4424 = vmatpush.msra.mxu0 %v4423
    %v4425 = vand.u32 %v2086, 4294901760
    %v4426 = vsub.f32 %v2086, %v4425
    %v4427 = vand.u32 %v4426, 4294901760
    %v4428 = vsub.f32 %v4426, %v4427
    %v4429 = vand.u32 %v4428, 4294901760
    %4430 = vmatpush.msra.mxu0 %v4429
    %v4431 = vand.u32 %v4376, 4294901760
    %4432 = vmatmul.f32.gmra.mxu0 %v4431
    %v4433 = vpop.f32.mrf.mxu0
    %v4434 = vadd.f32 %v4403, %v4433
    %4435 = vdwg.mxu0
    %4436 = vmatpush.msra.mxu0 0.0
    %4437 = vmatpush.msra.mxu0 0.0
    %4438 = vmatpush.msra.mxu0 0.0
    %4439 = vmatpush.msra.mxu0 0.0
    %4440 = vmatpush.msra.mxu0 0.0
    %4441 = vmatpush.msra.mxu0 0.0
    %4442 = vmatpush.msra.mxu0 0.0
    %4443 = vmatpush.msra.mxu0 0.0
    %4444 = vmatpush.msra.mxu0 0.0
    %4445 = vmatpush.msra.mxu0 0.0
    %4446 = vmatpush.msra.mxu0 0.0
    %4447 = vmatpush.msra.mxu0 0.0
    %4448 = vmatpush.msra.mxu0 0.0
    %4449 = vmatpush.msra.mxu0 0.0
    %v4450 = vand.u32 %v2087, 4294901760
    %v4451 = vsub.f32 %v2087, %v4450
    %4452 = vmatpush.msra.mxu0 %v4451
    %v4453 = vand.u32 %v2086, 4294901760
    %v4454 = vsub.f32 %v2086, %v4453
    %4455 = vmatpush.msra.mxu0 %v4454
    %v4456 = vand.u32 %v4376, 4294901760
    %v4457 = vsub.f32 %v4376, %v4456
    %4458 = vmatmul.f32.gmra.mxu0 %v4457
    %v4459 = vpop.f32.mrf.mxu0
    %v4460 = vadd.f32 %v4434, %v4459
    %4461 = vdwg.mxu0
    %4462 = vmatpush.msra.mxu0 0.0
    %4463 = vmatpush.msra.mxu0 0.0
    %4464 = vmatpush.msra.mxu0 0.0
    %4465 = vmatpush.msra.mxu0 0.0
    %4466 = vmatpush.msra.mxu0 0.0
    %4467 = vmatpush.msra.mxu0 0.0
    %4468 = vmatpush.msra.mxu0 0.0
    %4469 = vmatpush.msra.mxu0 0.0
    %4470 = vmatpush.msra.mxu0 0.0
    %4471 = vmatpush.msra.mxu0 0.0
    %4472 = vmatpush.msra.mxu0 0.0
    %4473 = vmatpush.msra.mxu0 0.0
    %4474 = vmatpush.msra.mxu0 0.0
    %4475 = vmatpush.msra.mxu0 0.0
    %v4476 = vand.u32 %v2087, 4294901760
    %4477 = vmatpush.msra.mxu0 %v4476
    %v4478 = vand.u32 %v2086, 4294901760
    %4479 = vmatpush.msra.mxu0 %v4478
    %v4480 = vand.u32 %v4376, 4294901760
    %v4481 = vsub.f32 %v4376, %v4480
    %v4482 = vand.u32 %v4481, 4294901760
    %4483 = vmatmul.f32.gmra.mxu0 %v4482
    %v4484 = vpop.f32.mrf.mxu0
    %v4485 = vadd.f32 %v4460, %v4484
    %4486 = vdwg.mxu0
    %4487 = vmatpush.msra.mxu0 0.0
    %4488 = vmatpush.msra.mxu0 0.0
    %4489 = vmatpush.msra.mxu0 0.0
    %4490 = vmatpush.msra.mxu0 0.0
    %4491 = vmatpush.msra.mxu0 0.0
    %4492 = vmatpush.msra.mxu0 0.0
    %4493 = vmatpush.msra.mxu0 0.0
    %4494 = vmatpush.msra.mxu0 0.0
    %4495 = vmatpush.msra.mxu0 0.0
    %4496 = vmatpush.msra.mxu0 0.0
    %4497 = vmatpush.msra.mxu0 0.0
    %4498 = vmatpush.msra.mxu0 0.0
    %4499 = vmatpush.msra.mxu0 0.0
    %4500 = vmatpush.msra.mxu0 0.0
    %v4501 = vand.u32 %v2087, 4294901760
    %v4502 = vsub.f32 %v2087, %v4501
    %v4503 = vand.u32 %v4502, 4294901760
    %4504 = vmatpush.msra.mxu0 %v4503
    %v4505 = vand.u32 %v2086, 4294901760
    %v4506 = vsub.f32 %v2086, %v4505
    %v4507 = vand.u32 %v4506, 4294901760
    %4508 = vmatpush.msra.mxu0 %v4507
    %v4509 = vand.u32 %v4376, 4294901760
    %4510 = vmatmul.f32.gmra.mxu0 %v4509
    %v4511 = vpop.f32.mrf.mxu0
    %v4512 = vadd.f32 %v4485, %v4511
    %4513 = vdwg.mxu0
    %4514 = vmatpush.msra.mxu0 0.0
    %4515 = vmatpush.msra.mxu0 0.0
    %4516 = vmatpush.msra.mxu0 0.0
    %4517 = vmatpush.msra.mxu0 0.0
    %4518 = vmatpush.msra.mxu0 0.0
    %4519 = vmatpush.msra.mxu0 0.0
    %4520 = vmatpush.msra.mxu0 0.0
    %4521 = vmatpush.msra.mxu0 0.0
    %4522 = vmatpush.msra.mxu0 0.0
    %4523 = vmatpush.msra.mxu0 0.0
    %4524 = vmatpush.msra.mxu0 0.0
    %4525 = vmatpush.msra.mxu0 0.0
    %4526 = vmatpush.msra.mxu0 0.0
    %4527 = vmatpush.msra.mxu0 0.0
    %v4528 = vand.u32 %v2087, 4294901760
    %4529 = vmatpush.msra.mxu0 %v4528
    %v4530 = vand.u32 %v2086, 4294901760
    %4531 = vmatpush.msra.mxu0 %v4530
    %v4532 = vand.u32 %v4376, 4294901760
    %4533 = vmatmul.f32.gmra.mxu0 %v4532
    %v4534 = vpop.f32.mrf.mxu0
    %v4535 = vadd.f32 %v4512, %v4534
    %4536 = vdwg.mxu0
    %v4538 = vsel %vm2106, %v2097, 0
    %4540 = vmatpush.msra.mxu0 0.0
    %4541 = vmatpush.msra.mxu0 0.0
    %4542 = vmatpush.msra.mxu0 0.0
    %4543 = vmatpush.msra.mxu0 0.0
    %4544 = vmatpush.msra.mxu0 0.0
    %4545 = vmatpush.msra.mxu0 0.0
    %4546 = vmatpush.msra.mxu0 0.0
    %4547 = vmatpush.msra.mxu0 0.0
    %4548 = vmatpush.msra.mxu0 0.0
    %4549 = vmatpush.msra.mxu0 0.0
    %4550 = vmatpush.msra.mxu0 0.0
    %4551 = vmatpush.msra.mxu0 0.0
    %4552 = vmatpush.msra.mxu0 0.0
    %4553 = vmatpush.msra.mxu0 0.0
    %v4554 = vand.u32 %v2087, 4294901760
    %4555 = vmatpush.msra.mxu0 %v4554
    %v4556 = vand.u32 %v2086, 4294901760
    %4557 = vmatpush.msra.mxu0 %v4556
    %v4558 = vand.u32 %v4538, 4294901760
    %v4559 = vsub.f32 %v4538, %v4558
    %v4560 = vand.u32 %v4559, 4294901760
    %v4561 = vsub.f32 %v4559, %v4560
    %v4562 = vand.u32 %v4561, 4294901760
    %4563 = vmatmul.f32.gmra.mxu0 %v4562
    %v4564 = vpop.f32.mrf.mxu0
    %v4565 = vadd.f32 %v3401, %v4564
    %4566 = vdwg.mxu0
    %4567 = vmatpush.msra.mxu0 0.0
    %4568 = vmatpush.msra.mxu0 0.0
    %4569 = vmatpush.msra.mxu0 0.0
    %4570 = vmatpush.msra.mxu0 0.0
    %4571 = vmatpush.msra.mxu0 0.0
    %4572 = vmatpush.msra.mxu0 0.0
    %4573 = vmatpush.msra.mxu0 0.0
    %4574 = vmatpush.msra.mxu0 0.0
    %4575 = vmatpush.msra.mxu0 0.0
    %4576 = vmatpush.msra.mxu0 0.0
    %4577 = vmatpush.msra.mxu0 0.0
    %4578 = vmatpush.msra.mxu0 0.0
    %4579 = vmatpush.msra.mxu0 0.0
    %4580 = vmatpush.msra.mxu0 0.0
    %v4581 = vand.u32 %v2087, 4294901760
    %v4582 = vsub.f32 %v2087, %v4581
    %v4583 = vand.u32 %v4582, 4294901760
    %v4584 = vsub.f32 %v4582, %v4583
    %v4585 = vand.u32 %v4584, 4294901760
    %4586 = vmatpush.msra.mxu0 %v4585
    %v4587 = vand.u32 %v2086, 4294901760
    %v4588 = vsub.f32 %v2086, %v4587
    %v4589 = vand.u32 %v4588, 4294901760
    %v4590 = vsub.f32 %v4588, %v4589
    %v4591 = vand.u32 %v4590, 4294901760
    %4592 = vmatpush.msra.mxu0 %v4591
    %v4593 = vand.u32 %v4538, 4294901760
    %4594 = vmatmul.f32.gmra.mxu0 %v4593
    %v4595 = vpop.f32.mrf.mxu0
    %v4596 = vadd.f32 %v4565, %v4595
    %4597 = vdwg.mxu0
    %4598 = vmatpush.msra.mxu0 0.0
    %4599 = vmatpush.msra.mxu0 0.0
    %4600 = vmatpush.msra.mxu0 0.0
    %4601 = vmatpush.msra.mxu0 0.0
    %4602 = vmatpush.msra.mxu0 0.0
    %4603 = vmatpush.msra.mxu0 0.0
    %4604 = vmatpush.msra.mxu0 0.0
    %4605 = vmatpush.msra.mxu0 0.0
    %4606 = vmatpush.msra.mxu0 0.0
    %4607 = vmatpush.msra.mxu0 0.0
    %4608 = vmatpush.msra.mxu0 0.0
    %4609 = vmatpush.msra.mxu0 0.0
    %4610 = vmatpush.msra.mxu0 0.0
    %4611 = vmatpush.msra.mxu0 0.0
    %v4612 = vand.u32 %v2087, 4294901760
    %v4613 = vsub.f32 %v2087, %v4612
    %4614 = vmatpush.msra.mxu0 %v4613
    %v4615 = vand.u32 %v2086, 4294901760
    %v4616 = vsub.f32 %v2086, %v4615
    %4617 = vmatpush.msra.mxu0 %v4616
    %v4618 = vand.u32 %v4538, 4294901760
    %v4619 = vsub.f32 %v4538, %v4618
    %4620 = vmatmul.f32.gmra.mxu0 %v4619
    %v4621 = vpop.f32.mrf.mxu0
    %v4622 = vadd.f32 %v4596, %v4621
    %4623 = vdwg.mxu0
    %4624 = vmatpush.msra.mxu0 0.0
    %4625 = vmatpush.msra.mxu0 0.0
    %4626 = vmatpush.msra.mxu0 0.0
    %4627 = vmatpush.msra.mxu0 0.0
    %4628 = vmatpush.msra.mxu0 0.0
    %4629 = vmatpush.msra.mxu0 0.0
    %4630 = vmatpush.msra.mxu0 0.0
    %4631 = vmatpush.msra.mxu0 0.0
    %4632 = vmatpush.msra.mxu0 0.0
    %4633 = vmatpush.msra.mxu0 0.0
    %4634 = vmatpush.msra.mxu0 0.0
    %4635 = vmatpush.msra.mxu0 0.0
    %4636 = vmatpush.msra.mxu0 0.0
    %4637 = vmatpush.msra.mxu0 0.0
    %v4638 = vand.u32 %v2087, 4294901760
    %4639 = vmatpush.msra.mxu0 %v4638
    %v4640 = vand.u32 %v2086, 4294901760
    %4641 = vmatpush.msra.mxu0 %v4640
    %v4642 = vand.u32 %v4538, 4294901760
    %v4643 = vsub.f32 %v4538, %v4642
    %v4644 = vand.u32 %v4643, 4294901760
    %4645 = vmatmul.f32.gmra.mxu0 %v4644
    %v4646 = vpop.f32.mrf.mxu0
    %v4647 = vadd.f32 %v4622, %v4646
    %4648 = vdwg.mxu0
    %4649 = vmatpush.msra.mxu0 0.0
    %4650 = vmatpush.msra.mxu0 0.0
    %4651 = vmatpush.msra.mxu0 0.0
    %4652 = vmatpush.msra.mxu0 0.0
    %4653 = vmatpush.msra.mxu0 0.0
    %4654 = vmatpush.msra.mxu0 0.0
    %4655 = vmatpush.msra.mxu0 0.0
    %4656 = vmatpush.msra.mxu0 0.0
    %4657 = vmatpush.msra.mxu0 0.0
    %4658 = vmatpush.msra.mxu0 0.0
    %4659 = vmatpush.msra.mxu0 0.0
    %4660 = vmatpush.msra.mxu0 0.0
    %4661 = vmatpush.msra.mxu0 0.0
    %4662 = vmatpush.msra.mxu0 0.0
    %v4663 = vand.u32 %v2087, 4294901760
    %v4664 = vsub.f32 %v2087, %v4663
    %v4665 = vand.u32 %v4664, 4294901760
    %4666 = vmatpush.msra.mxu0 %v4665
    %v4667 = vand.u32 %v2086, 4294901760
    %v4668 = vsub.f32 %v2086, %v4667
    %v4669 = vand.u32 %v4668, 4294901760
    %4670 = vmatpush.msra.mxu0 %v4669
    %v4671 = vand.u32 %v4538, 4294901760
    %4672 = vmatmul.f32.gmra.mxu0 %v4671
    %v4673 = vpop.f32.mrf.mxu0
    %v4674 = vadd.f32 %v4647, %v4673
    %4675 = vdwg.mxu0
    %4676 = vmatpush.msra.mxu0 0.0
    %4677 = vmatpush.msra.mxu0 0.0
    %4678 = vmatpush.msra.mxu0 0.0
    %4679 = vmatpush.msra.mxu0 0.0
    %4680 = vmatpush.msra.mxu0 0.0
    %4681 = vmatpush.msra.mxu0 0.0
    %4682 = vmatpush.msra.mxu0 0.0
    %4683 = vmatpush.msra.mxu0 0.0
    %4684 = vmatpush.msra.mxu0 0.0
    %4685 = vmatpush.msra.mxu0 0.0
    %4686 = vmatpush.msra.mxu0 0.0
    %4687 = vmatpush.msra.mxu0 0.0
    %4688 = vmatpush.msra.mxu0 0.0
    %4689 = vmatpush.msra.mxu0 0.0
    %v4690 = vand.u32 %v2087, 4294901760
    %4691 = vmatpush.msra.mxu0 %v4690
    %v4692 = vand.u32 %v2086, 4294901760
    %4693 = vmatpush.msra.mxu0 %v4692
    %v4694 = vand.u32 %v4538, 4294901760
    %4695 = vmatmul.f32.gmra.mxu0 %v4694
    %v4696 = vpop.f32.mrf.mxu0
    %v4697 = vadd.f32 %v4674, %v4696
    %4698 = vdwg.mxu0
    %v4699 = vld [vmem:[%s6] sm:$0x1]
    %v4701 = vperm.slane %v4699, 0
    %v4703 = vadd.f32 %v3563, %v4701
    %v4704 = vadd.f32 %v3725, %v4701
    %v4705 = vadd.f32 %v3887, %v4701
    %v4706 = vadd.f32 %v4049, %v4701
    %v4707 = vadd.f32 %v4211, %v4701
    %v4708 = vadd.f32 %v4373, %v4701
    %v4709 = vadd.f32 %v4535, %v4701
    %v4710 = vadd.f32 %v4697, %v4701
    %4711 = vst.msk [vmem:[#allocation10] sm:$0xf] %vm330, %v4703
    %4712 = vst.msk [vmem:[#allocation10 + $0x4] sm:$0xf] %vm330, %v4704
    %4713 = vst.msk [vmem:[#allocation10 + $0x8] sm:$0xf] %vm330, %v4705
    %4714 = vst.msk [vmem:[#allocation10 + $0xc] sm:$0xf] %vm330, %v4706
    %4715 = vst.msk [vmem:[#allocation10 + $0x10] sm:$0xf] %vm330, %v4707
    %4716 = vst.msk [vmem:[#allocation10 + $0x14] sm:$0xf] %vm330, %v4708
    %4717 = vst.msk [vmem:[#allocation10 + $0x18] sm:$0xf] %vm330, %v4709
    %4718 = vst.msk [vmem:[#allocation10 + $0x1c] sm:$0xf] %vm330, %v4710
    %v4719 = vld [vmem:[%s7] sm:$0xff]
    %v4720 = vld [vmem:[%s7 + $0x8] sm:$0xff]
    %v4721 = vld [vmem:[%s7 + $0x10] sm:$0xff]
    %v4722 = vld [vmem:[%s7 + $0x18] sm:$0xff]
    %v4723 = vld [vmem:[%s8] sm:$0x1]
    %v4725 = vperm.slane %v4723, 0
    %v4728 = vsel %vm90, %v2085, 0
    %4730 = vmatpush.msra.mxu0 0.0
    %4731 = vmatpush.msra.mxu0 0.0
    %4732 = vmatpush.msra.mxu0 0.0
    %4733 = vmatpush.msra.mxu0 0.0
    %4734 = vmatpush.msra.mxu0 0.0
    %4735 = vmatpush.msra.mxu0 0.0
    %4736 = vmatpush.msra.mxu0 0.0
    %4737 = vmatpush.msra.mxu0 0.0
    %4738 = vmatpush.msra.mxu0 0.0
    %4739 = vmatpush.msra.mxu0 0.0
    %4740 = vmatpush.msra.mxu0 0.0
    %4741 = vmatpush.msra.mxu0 0.0
    %v4742 = vand.u32 %v4722, 4294901760
    %4743 = vmatpush.msra.mxu0 %v4742
    %v4744 = vand.u32 %v4721, 4294901760
    %4745 = vmatpush.msra.mxu0 %v4744
    %v4746 = vand.u32 %v4720, 4294901760
    %4747 = vmatpush.msra.mxu0 %v4746
    %v4748 = vand.u32 %v4719, 4294901760
    %4749 = vmatpush.msra.mxu0 %v4748
    %v4750 = vand.u32 %v4728, 4294901760
    %v4751 = vsub.f32 %v4728, %v4750
    %v4752 = vand.u32 %v4751, 4294901760
    %v4753 = vsub.f32 %v4751, %v4752
    %v4754 = vand.u32 %v4753, 4294901760
    %4755 = vmatmul.f32.gmra.mxu0 %v4754
    %v4756 = vpop.f32.mrf.mxu0
    %v4757 = vadd.f32 %v4725, %v4756
    %4758 = vdwg.mxu0
    %4759 = vmatpush.msra.mxu0 0.0
    %4760 = vmatpush.msra.mxu0 0.0
    %4761 = vmatpush.msra.mxu0 0.0
    %4762 = vmatpush.msra.mxu0 0.0
    %4763 = vmatpush.msra.mxu0 0.0
    %4764 = vmatpush.msra.mxu0 0.0
    %4765 = vmatpush.msra.mxu0 0.0
    %4766 = vmatpush.msra.mxu0 0.0
    %4767 = vmatpush.msra.mxu0 0.0
    %4768 = vmatpush.msra.mxu0 0.0
    %4769 = vmatpush.msra.mxu0 0.0
    %4770 = vmatpush.msra.mxu0 0.0
    %v4771 = vand.u32 %v4722, 4294901760
    %v4772 = vsub.f32 %v4722, %v4771
    %v4773 = vand.u32 %v4772, 4294901760
    %v4774 = vsub.f32 %v4772, %v4773
    %v4775 = vand.u32 %v4774, 4294901760
    %4776 = vmatpush.msra.mxu0 %v4775
    %v4777 = vand.u32 %v4721, 4294901760
    %v4778 = vsub.f32 %v4721, %v4777
    %v4779 = vand.u32 %v4778, 4294901760
    %v4780 = vsub.f32 %v4778, %v4779
    %v4781 = vand.u32 %v4780, 4294901760
    %4782 = vmatpush.msra.mxu0 %v4781
    %v4783 = vand.u32 %v4720, 4294901760
    %v4784 = vsub.f32 %v4720, %v4783
    %v4785 = vand.u32 %v4784, 4294901760
    %v4786 = vsub.f32 %v4784, %v4785
    %v4787 = vand.u32 %v4786, 4294901760
    %4788 = vmatpush.msra.mxu0 %v4787
    %v4789 = vand.u32 %v4719, 4294901760
    %v4790 = vsub.f32 %v4719, %v4789
    %v4791 = vand.u32 %v4790, 4294901760
    %v4792 = vsub.f32 %v4790, %v4791
    %v4793 = vand.u32 %v4792, 4294901760
    %4794 = vmatpush.msra.mxu0 %v4793
    %v4795 = vand.u32 %v4728, 4294901760
    %4796 = vmatmul.f32.gmra.mxu0 %v4795
    %v4797 = vpop.f32.mrf.mxu0
    %v4798 = vadd.f32 %v4757, %v4797
    %4799 = vdwg.mxu0
    %4800 = vmatpush.msra.mxu0 0.0
    %4801 = vmatpush.msra.mxu0 0.0
    %4802 = vmatpush.msra.mxu0 0.0
    %4803 = vmatpush.msra.mxu0 0.0
    %4804 = vmatpush.msra.mxu0 0.0
    %4805 = vmatpush.msra.mxu0 0.0
    %4806 = vmatpush.msra.mxu0 0.0
    %4807 = vmatpush.msra.mxu0 0.0
    %4808 = vmatpush.msra.mxu0 0.0
    %4809 = vmatpush.msra.mxu0 0.0
    %4810 = vmatpush.msra.mxu0 0.0
    %4811 = vmatpush.msra.mxu0 0.0
    %v4812 = vand.u32 %v4722, 4294901760
    %v4813 = vsub.f32 %v4722, %v4812
    %4814 = vmatpush.msra.mxu0 %v4813
    %v4815 = vand.u32 %v4721, 4294901760
    %v4816 = vsub.f32 %v4721, %v4815
    %4817 = vmatpush.msra.mxu0 %v4816
    %v4818 = vand.u32 %v4720, 4294901760
    %v4819 = vsub.f32 %v4720, %v4818
    %4820 = vmatpush.msra.mxu0 %v4819
    %v4821 = vand.u32 %v4719, 4294901760
    %v4822 = vsub.f32 %v4719, %v4821
    %4823 = vmatpush.msra.mxu0 %v4822
    %v4824 = vand.u32 %v4728, 4294901760
    %v4825 = vsub.f32 %v4728, %v4824
    %4826 = vmatmul.f32.gmra.mxu0 %v4825
    %v4827 = vpop.f32.mrf.mxu0
    %v4828 = vadd.f32 %v4798, %v4827
    %4829 = vdwg.mxu0
    %4830 = vmatpush.msra.mxu0 0.0
    %4831 = vmatpush.msra.mxu0 0.0
    %4832 = vmatpush.msra.mxu0 0.0
    %4833 = vmatpush.msra.mxu0 0.0
    %4834 = vmatpush.msra.mxu0 0.0
    %4835 = vmatpush.msra.mxu0 0.0
    %4836 = vmatpush.msra.mxu0 0.0
    %4837 = vmatpush.msra.mxu0 0.0
    %4838 = vmatpush.msra.mxu0 0.0
    %4839 = vmatpush.msra.mxu0 0.0
    %4840 = vmatpush.msra.mxu0 0.0
    %4841 = vmatpush.msra.mxu0 0.0
    %v4842 = vand.u32 %v4722, 4294901760
    %4843 = vmatpush.msra.mxu0 %v4842
    %v4844 = vand.u32 %v4721, 4294901760
    %4845 = vmatpush.msra.mxu0 %v4844
    %v4846 = vand.u32 %v4720, 4294901760
    %4847 = vmatpush.msra.mxu0 %v4846
    %v4848 = vand.u32 %v4719, 4294901760
    %4849 = vmatpush.msra.mxu0 %v4848
    %v4850 = vand.u32 %v4728, 4294901760
    %v4851 = vsub.f32 %v4728, %v4850
    %v4852 = vand.u32 %v4851, 4294901760
    %4853 = vmatmul.f32.gmra.mxu0 %v4852
    %v4854 = vpop.f32.mrf.mxu0
    %v4855 = vadd.f32 %v4828, %v4854
    %4856 = vdwg.mxu0
    %4857 = vmatpush.msra.mxu0 0.0
    %4858 = vmatpush.msra.mxu0 0.0
    %4859 = vmatpush.msra.mxu0 0.0
    %4860 = vmatpush.msra.mxu0 0.0
    %4861 = vmatpush.msra.mxu0 0.0
    %4862 = vmatpush.msra.mxu0 0.0
    %4863 = vmatpush.msra.mxu0 0.0
    %4864 = vmatpush.msra.mxu0 0.0
    %4865 = vmatpush.msra.mxu0 0.0
    %4866 = vmatpush.msra.mxu0 0.0
    %4867 = vmatpush.msra.mxu0 0.0
    %4868 = vmatpush.msra.mxu0 0.0
    %v4869 = vand.u32 %v4722, 4294901760
    %v4870 = vsub.f32 %v4722, %v4869
    %v4871 = vand.u32 %v4870, 4294901760
    %4872 = vmatpush.msra.mxu0 %v4871
    %v4873 = vand.u32 %v4721, 4294901760
    %v4874 = vsub.f32 %v4721, %v4873
    %v4875 = vand.u32 %v4874, 4294901760
    %4876 = vmatpush.msra.mxu0 %v4875
    %v4877 = vand.u32 %v4720, 4294901760
    %v4878 = vsub.f32 %v4720, %v4877
    %v4879 = vand.u32 %v4878, 4294901760
    %4880 = vmatpush.msra.mxu0 %v4879
    %v4881 = vand.u32 %v4719, 4294901760
    %v4882 = vsub.f32 %v4719, %v4881
    %v4883 = vand.u32 %v4882, 4294901760
    %4884 = vmatpush.msra.mxu0 %v4883
    %v4885 = vand.u32 %v4728, 4294901760
    %4886 = vmatmul.f32.gmra.mxu0 %v4885
    %v4887 = vpop.f32.mrf.mxu0
    %v4888 = vadd.f32 %v4855, %v4887
    %4889 = vdwg.mxu0
    %4890 = vmatpush.msra.mxu0 0.0
    %4891 = vmatpush.msra.mxu0 0.0
    %4892 = vmatpush.msra.mxu0 0.0
    %4893 = vmatpush.msra.mxu0 0.0
    %4894 = vmatpush.msra.mxu0 0.0
    %4895 = vmatpush.msra.mxu0 0.0
    %4896 = vmatpush.msra.mxu0 0.0
    %4897 = vmatpush.msra.mxu0 0.0
    %4898 = vmatpush.msra.mxu0 0.0
    %4899 = vmatpush.msra.mxu0 0.0
    %4900 = vmatpush.msra.mxu0 0.0
    %4901 = vmatpush.msra.mxu0 0.0
    %v4902 = vand.u32 %v4722, 4294901760
    %4903 = vmatpush.msra.mxu0 %v4902
    %v4904 = vand.u32 %v4721, 4294901760
    %4905 = vmatpush.msra.mxu0 %v4904
    %v4906 = vand.u32 %v4720, 4294901760
    %4907 = vmatpush.msra.mxu0 %v4906
    %v4908 = vand.u32 %v4719, 4294901760
    %4909 = vmatpush.msra.mxu0 %v4908
    %v4910 = vand.u32 %v4728, 4294901760
    %4911 = vmatmul.f32.gmra.mxu0 %v4910
    %v4912 = vpop.f32.mrf.mxu0
    %v4913 = vadd.f32 %v4888, %v4912
    %4914 = vdwg.mxu0
    %v4915 = vmax.f32 %v4913, 0.0
    %4916 = vst.msk [vmem:[#allocation11] sm:$0xf] %vm330, %v4915
    // Predicated region
    $region50: #{tpu_custom_call.1} parent=1 // pred_check
      _
    $region51: #{tpu_custom_call.1} parent=1 // pred_check_branch
      %4918 = sbr.rel (0) target = $region53
    $region52: #{tpu_custom_call.1} parent=1 // pred_region
      %4920 = vsyncadd [#allocation6], 0
      %s4921 = sshll.u32 [#allocation10], 4
      %s4922 = int_to_ptr.vmem [resolvable:$true] %s4921
      %s4923 = sshll.u32 %s9, 4
      %s4924 = int_to_ptr.hbm [resolvable:$true] %s4923
      %4929 = dma.vmem_to_hbm [thread:$0]  %s4922, 512, %s4924, [#allocation6], 64, 64, 4
    $region53: #{tpu_custom_call.1} parent=1 // pred_fallthru
      _
    // Predicated region
    $region54: #{tpu_custom_call.1} parent=1 // pred_check
      _
    $region55: #{tpu_custom_call.1} parent=1 // pred_check_branch
      %4931 = sbr.rel (0) target = $region57
    $region56: #{tpu_custom_call.1} parent=1 // pred_region
      %4933 = vsyncadd [#allocation12], 0
      %s4935 = sshll.u32 [#allocation11], 4
      %s4936 = int_to_ptr.vmem [resolvable:$true] %s4935
      %s4937 = sshll.u32 %s10, 4
      %s4938 = int_to_ptr.hbm [resolvable:$true] %s4937
      %4940 = dma.vmem_to_hbm [thread:$0]  %s4936, 64, %s4938, [#allocation12]
    $region57: #{tpu_custom_call.1} parent=1 // pred_fallthru
      _
    // Predicated region
    $region58: #{tpu_custom_call.1} parent=1 // pred_check
      _
    $region59: #{tpu_custom_call.1} parent=1 // pred_check_branch
      %4942 = sbr.rel (0) target = $region61
    $region60: #{tpu_custom_call.1} parent=1 // pred_region
      %4944 = dma.done [#allocation6], 512
    $region61: #{tpu_custom_call.1} parent=1 // pred_fallthru
      _
    // Predicated region
    $region62: #{tpu_custom_call.1} parent=1 // pred_check
      _
    $region63: #{tpu_custom_call.1} parent=1 // pred_check_branch
      %4946 = sbr.rel (0) target = $region65
    $region64: #{tpu_custom_call.1} parent=1 // pred_region
      %4948 = dma.done [#allocation12], 64
    $region65: #{tpu_custom_call.1} parent=1 // pred_fallthru
      _
    %4949 = vsyncpa [#allocation5], 1
    %4950 = vsyncpa [#allocation8], 1
    %4951 = vsyncpa [#allocation6], 1
    %4952 = vsyncpa [#allocation12], 1

</llo_original>
